<compile_context>
chip_gen: v6e
topology: v6e:2x2x1
jax: 0.10.0
libtpu: 0.0.40
codegen_flags: <defaults>
</compile_context>

<pallas_src>
import math

import jax
import jax.numpy as jnp
from jax.experimental import pallas as pl
from jax.experimental.pallas import tpu as pltpu

# -------- scaled-down config (consistent with RainbowGPT.ModelStruct) --------
VOCAB = 65           # vocab_size (kept)
VOCAB_PAD = 128      # lane-dense padded vocab for the LM-head output
N_EMBD = 128         # n_embd (scaled down from 384, multiple of 128 lanes)
BLOCK_SIZE = 16      # block_size (max positions, scaled down from 256)
N_BLOCKS = 2         # n_blocks (scaled down from 6)
N_HEADS = 4          # num_heads (scaled down from 6)
HEAD_DIM = N_EMBD // N_HEADS
FF_HIDDEN = 4 * N_EMBD
LN_EPS = 1e-5
NEG_INF = -1e30


def _layernorm(x, gamma, beta):
    mu = jnp.mean(x, axis=-1, keepdims=True)
    var = jnp.mean((x - mu) ** 2, axis=-1, keepdims=True)
    return (x - mu) * jax.lax.rsqrt(var + LN_EPS) * gamma + beta


# ----------------------------- fused Pallas kernel ----------------------------
def fused_gpt_kernel(x_ref,
                     ln1_g_ref, ln1_b_ref,
                     wqkv_ref, wo_ref, bo_ref,
                     ln2_g_ref, ln2_b_ref,
                     wfc_ref, bfc_ref, wproj_ref, bproj_ref,
                     lnf_g_ref, lnf_b_ref, lm_w_ref, lm_b_ref,
                     o_ref,
                     heads_ref):
    x = x_ref[0]                          # (T, C) f32 residual stream (one batch)
    T = x.shape[0]

    # In-kernel additive causal mask (no HBM DMA, built once per grid step).
    row = jax.lax.broadcasted_iota(jnp.int32, (T, T), 0)
    col = jax.lax.broadcasted_iota(jnp.int32, (T, T), 1)
    mask = jnp.where(col <= row, 0.0, NEG_INF).astype(jnp.float32)

    for blk in range(N_BLOCKS):           # static unroll; weights VMEM-resident
        # ---------- causal multi-head self-attention (pre-LN) ----------
        h = _layernorm(x, ln1_g_ref[blk], ln1_b_ref[blk]).astype(jnp.bfloat16)
        # Single fused QKV matmul (scale already folded into the Q columns).
        qkv = jnp.dot(h, wqkv_ref[blk], preferred_element_type=jnp.float32)  # (T, 3C)
        q = qkv[:, :N_EMBD]
        k = qkv[:, N_EMBD:2 * N_EMBD]
        v = qkv[:, 2 * N_EMBD:]

        for hi in range(N_HEADS):          # static unroll (N_HEADS = 4)
            sl = slice(hi * HEAD_DIM, (hi + 1) * HEAD_DIM)
            qh = q[:, sl].astype(jnp.bfloat16)
            kh = k[:, sl].astype(jnp.bfloat16)
            vh = v[:, sl].astype(jnp.bfloat16)
            # q @ k.T (NT matmul) without materializing a transpose
            s = jax.lax.dot_general(qh, kh, (((1,), (1,)), ((), ())),
                                    preferred_element_type=jnp.float32)
            s = s + mask
            s = s - jnp.max(s, axis=-1, keepdims=True)
            p = jnp.exp(s)
            p = p * pl.reciprocal(jnp.sum(p, axis=-1, keepdims=True), approx=True)
            oh = jnp.dot(p.astype(jnp.bfloat16), vh,
                         preferred_element_type=jnp.float32)                 # (T, hd)
            # write this head's output into its lane slice of the bf16 scratch
            heads_ref[:, sl] = oh.astype(jnp.bfloat16)

        # One well-fed (T,C)@(C,C) output projection instead of 4 K=32 matmuls.
        attn = jnp.dot(heads_ref[...], wo_ref[blk],
                       preferred_element_type=jnp.float32)
        x = x + attn + bo_ref[blk]         # res_dropout == identity (eval)

        # ---------- feed-forward (pre-LN) ----------
        h2 = _layernorm(x, ln2_g_ref[blk], ln2_b_ref[blk]).astype(jnp.bfloat16)
        ff = jnp.dot(h2, wfc_ref[blk],
                     preferred_element_type=jnp.float32).astype(jnp.bfloat16)
        ff = jnp.maximum(ff + bfc_ref[blk], 0)          # bf16 bias + ReLU
        ff = jnp.dot(ff, wproj_ref[blk],
                     preferred_element_type=jnp.float32) + bproj_ref[blk]
        x = x + ff                         # fw_dropout == identity (eval)

    # ---------- final LayerNorm + LM head (vocab padded to 128 lanes) ----------
    hf = _layernorm(x, lnf_g_ref[...], lnf_b_ref[...]).astype(jnp.bfloat16)
    logits = jnp.dot(hf, lm_w_ref[...],
                     preferred_element_type=jnp.float32) + lm_b_ref[...]
    o_ref[0] = logits.astype(o_ref.dtype)


# ------------------------------ kernel wrapper --------------------------------
def rainbow_gpt_apply(x, w):
    """x: (B, T, C) f32 embeddings -> (B, T, VOCAB_PAD) f32 logits."""
    B, T, C = x.shape
    args = [x,
            w['ln1_g'], w['ln1_b'],
            w['wqkv'], w['wo'], w['bo'],
            w['ln2_g'], w['ln2_b'],
            w['wfc'], w['bfc'], w['wproj'], w['bproj'],
            w['lnf_g'], w['lnf_b'], w['lm_w'], w['lm_b']]

    x_spec = pl.BlockSpec((1, T, C), lambda b: (b, 0, 0))
    # Grid-invariant weights: constant index_map -> no re-DMA across grid steps.
    # TODO(synk): at the real config add pipeline_mode=pl.Buffered(1) here to
    # halve resident-weight VMEM on v7x's 64 MiB VMEM.
    weight_specs = [
        pl.BlockSpec(a.shape, lambda b, _nd=a.ndim: (0,) * _nd)
        for a in args[1:]
    ]
    out_spec = pl.BlockSpec((1, T, VOCAB_PAD), lambda b: (b, 0, 0))

    return pl.pallas_call(
        fused_gpt_kernel,
        out_shape=jax.ShapeDtypeStruct((B, T, VOCAB_PAD), jnp.float32),
        grid_spec=pltpu.PrefetchScalarGridSpec(
            num_scalar_prefetch=0,
            grid=(B,),
            in_specs=[x_spec] + weight_specs,
            out_specs=out_spec,
            scratch_shapes=[pltpu.VMEM((T, N_EMBD), jnp.bfloat16)],
        ),
        compiler_params=pltpu.CompilerParams(
            dimension_semantics=("parallel",),      # batch split across TCs (v7x)
            vmem_limit_bytes=64 << 20),
    )(*args)


# ------------------------------- parameters ----------------------------------
def init_params(key):
    def nrm(k, shape, std=0.02):
        return (std * jax.random.normal(k, shape)).astype(jnp.float32)

    keys = jax.random.split(key, 3 + N_BLOCKS)
    params = {
        'wte': nrm(keys[0], (VOCAB, N_EMBD)),
        'wpe': nrm(keys[1], (BLOCK_SIZE, N_EMBD)),
        'blocks': [],
        'ln_f': {'g': jnp.ones((N_EMBD,), jnp.float32),
                 'b': jnp.zeros((N_EMBD,), jnp.float32)},
        'lm_head': {'w': nrm(keys[2], (N_EMBD, VOCAB)),
                    'b': jnp.zeros((VOCAB,), jnp.float32)},
    }
    for i in range(N_BLOCKS):
        bk = jax.random.split(keys[3 + i], 6)
        params['blocks'].append({
            'ln1_g': jnp.ones((N_EMBD,), jnp.float32),
            'ln1_b': jnp.zeros((N_EMBD,), jnp.float32),
            'wq': nrm(bk[0], (N_EMBD, N_EMBD)),
            'wk': nrm(bk[1], (N_EMBD, N_EMBD)),
            'wv': nrm(bk[2], (N_EMBD, N_EMBD)),
            'wo': nrm(bk[3], (N_EMBD, N_EMBD)),
            'bo': jnp.zeros((N_EMBD,), jnp.float32),
            'ln2_g': jnp.ones((N_EMBD,), jnp.float32),
            'ln2_b': jnp.zeros((N_EMBD,), jnp.float32),
            'wfc': nrm(bk[4], (N_EMBD, FF_HIDDEN)),
            'bfc': jnp.zeros((FF_HIDDEN,), jnp.float32),
            'wproj': nrm(bk[5], (FF_HIDDEN, N_EMBD)),
            'bproj': jnp.zeros((N_EMBD,), jnp.float32),
        })
    return params


def pack_weights(params):
    """Stack per-block weights, fuse QKV (with folded 1/sqrt(hd) scale on Q),
    cast MXU operands to bf16, pad LM head to 128 lanes."""
    bf16 = jnp.bfloat16
    scale = 1.0 / math.sqrt(HEAD_DIM)

    def stack(name):
        return jnp.stack([b[name] for b in params['blocks']], axis=0)

    wqkv = jnp.concatenate(
        [stack('wq') * scale, stack('wk'), stack('wv')], axis=-1).astype(bf16)

    lm_w = jnp.zeros((N_EMBD, VOCAB_PAD), bf16)
    lm_w = lm_w.at[:, :VOCAB].set(params['lm_head']['w'].astype(bf16))
    lm_b = jnp.zeros((1, VOCAB_PAD), jnp.float32)
    lm_b = lm_b.at[0, :VOCAB].set(params['lm_head']['b'])

    return {
        'ln1_g': stack('ln1_g')[:, None, :],                                # (NB,1,C) f32
        'ln1_b': stack('ln1_b')[:, None, :],
        'wqkv': wqkv,                                                       # (NB,C,3C) bf16
        'wo': stack('wo').astype(bf16),                                     # (NB,C,C) bf16
        'bo': stack('bo')[:, None, :],                                      # (NB,1,C) f32
        'ln2_g': stack('ln2_g')[:, None, :],
        'ln2_b': stack('ln2_b')[:, None, :],
        'wfc': stack('wfc').astype(bf16),                                   # (NB,C,4C)
        'bfc': stack('bfc')[:, None, :].astype(bf16),                       # bf16 bias+ReLU
        'wproj': stack('wproj').astype(bf16),                               # (NB,4C,C)
        'bproj': stack('bproj')[:, None, :],
        'lnf_g': params['ln_f']['g'][None, :],
        'lnf_b': params['ln_f']['b'][None, :],
        'lm_w': lm_w,
        'lm_b': lm_b,
    }


# --------------------------------- forward -----------------------------------
def rainbow_gpt_forward(idx, params, packed=None, target=None):
    if packed is None:
        packed = pack_weights(params)
    B, T = idx.shape
    # TODO(synk): token-embedding gather kept as plain-JAX glue (tiny gather).
    tok_emd = jnp.take(params['wte'], idx, axis=0)        # (B, T, C)
    pos_emd = params['wpe'][:T]                           # (T, C)
    x = tok_emd + pos_emd[None, :, :]                     # (B, T, C)

    logits_pad = rainbow_gpt_apply(x, packed)             # (B, T, 128)
    logits = logits_pad[..., :VOCAB]                      # (B, T, VOCAB)

    if target is None:
        loss = None
    else:
        flat = logits.reshape(B * T, VOCAB)
        logp = jax.nn.log_softmax(flat, axis=-1)
        loss = -jnp.mean(jnp.take_along_axis(
            logp, target.reshape(B * T, 1), axis=-1))
    return logits, loss


if __name__ == "__main__":
    key = jax.random.PRNGKey(0)
    pkey, ikey = jax.random.split(key)
    params = init_params(pkey)
    packed = pack_weights(params)

    B, T = 2, 8                          # grid=(2,): one (T,C) slab per grid step
    idx = jax.random.randint(ikey, (B, T), 0, VOCAB, dtype=jnp.int32)

    logits, loss = rainbow_gpt_forward(idx, params, packed=packed, target=None)
    logits = jax.block_until_ready(logits)
    assert logits.shape == (B, T, VOCAB)
    assert logits.dtype == jnp.float32
    print("KERNEL_OK")
</pallas_src>

<mosaic_0001>
module attributes {stable_mosaic.version = 11 : i64} {
  func.func @fused_gpt_kernel(%arg0: i32, %arg1: memref<1x8x128xf32, #tpu.memory_space<vmem>>, %arg2: memref<2x1x128xf32, #tpu.memory_space<vmem>>, %arg3: memref<2x1x128xf32, #tpu.memory_space<vmem>>, %arg4: memref<2x128x384xbf16, #tpu.memory_space<vmem>>, %arg5: memref<2x128x128xbf16, #tpu.memory_space<vmem>>, %arg6: memref<2x1x128xf32, #tpu.memory_space<vmem>>, %arg7: memref<2x1x128xf32, #tpu.memory_space<vmem>>, %arg8: memref<2x1x128xf32, #tpu.memory_space<vmem>>, %arg9: memref<2x128x512xbf16, #tpu.memory_space<vmem>>, %arg10: memref<2x1x512xbf16, #tpu.memory_space<vmem>>, %arg11: memref<2x512x128xbf16, #tpu.memory_space<vmem>>, %arg12: memref<2x1x128xf32, #tpu.memory_space<vmem>>, %arg13: memref<1x128xf32, #tpu.memory_space<vmem>>, %arg14: memref<1x128xf32, #tpu.memory_space<vmem>>, %arg15: memref<128x128xbf16, #tpu.memory_space<vmem>>, %arg16: memref<1x128xf32, #tpu.memory_space<vmem>>, %arg17: memref<1x8x128xf32, #tpu.memory_space<vmem>>, %arg18: memref<8x128xbf16, #tpu.memory_space<vmem>>) attributes {dimension_semantics = [#tpu.dimension_semantics<parallel>], iteration_bounds = array<i64: 2>, scalar_prefetch = 0 : i64, scratch_operands = 1 : i64, tpu.core_type = #tpu.core_type<tc>, window_params = [{transform_indices = @transform_0, window_bounds = array<i64: 1, 8, 128>}, {pipeline_mode = #tpu.pipeline_mode<synchronous>, transform_indices = @transform_1, window_bounds = array<i64: 2, 1, 128>}, {pipeline_mode = #tpu.pipeline_mode<synchronous>, transform_indices = @transform_2, window_bounds = array<i64: 2, 1, 128>}, {pipeline_mode = #tpu.pipeline_mode<synchronous>, transform_indices = @transform_3, window_bounds = array<i64: 2, 128, 384>}, {pipeline_mode = #tpu.pipeline_mode<synchronous>, transform_indices = @transform_4, window_bounds = array<i64: 2, 128, 128>}, {pipeline_mode = #tpu.pipeline_mode<synchronous>, transform_indices = @transform_5, window_bounds = array<i64: 2, 1, 128>}, {pipeline_mode = #tpu.pipeline_mode<synchronous>, transform_indices = @transform_6, window_bounds = array<i64: 2, 1, 128>}, {pipeline_mode = #tpu.pipeline_mode<synchronous>, transform_indices = @transform_7, window_bounds = array<i64: 2, 1, 128>}, {pipeline_mode = #tpu.pipeline_mode<synchronous>, transform_indices = @transform_8, window_bounds = array<i64: 2, 128, 512>}, {pipeline_mode = #tpu.pipeline_mode<synchronous>, transform_indices = @transform_9, window_bounds = array<i64: 2, 1, 512>}, {pipeline_mode = #tpu.pipeline_mode<synchronous>, transform_indices = @transform_10, window_bounds = array<i64: 2, 512, 128>}, {pipeline_mode = #tpu.pipeline_mode<synchronous>, transform_indices = @transform_11, window_bounds = array<i64: 2, 1, 128>}, {pipeline_mode = #tpu.pipeline_mode<synchronous>, transform_indices = @transform_12, window_bounds = array<i64: 1, 128>}, {pipeline_mode = #tpu.pipeline_mode<synchronous>, transform_indices = @transform_13, window_bounds = array<i64: 1, 128>}, {pipeline_mode = #tpu.pipeline_mode<synchronous>, transform_indices = @transform_14, window_bounds = array<i64: 128, 128>}, {pipeline_mode = #tpu.pipeline_mode<synchronous>, transform_indices = @transform_15, window_bounds = array<i64: 1, 128>}, {transform_indices = @transform_16, window_bounds = array<i64: 1, 8, 128>}]} {
    %c0 = arith.constant 0 : index
    %c0_0 = arith.constant 0 : index
    %c0_1 = arith.constant 0 : index
    %0 = vector.load %arg1[%c0, %c0_0, %c0_1] : memref<1x8x128xf32, #tpu.memory_space<vmem>>, vector<1x8x128xf32>
    %1 = vector.shape_cast %0 : vector<1x8x128xf32> to vector<8x128xf32>
    %2 = tpu.iota {dimensions = array<i32: 0>} : vector<8x8xi32>
    %3 = tpu.iota {dimensions = array<i32: 1>} : vector<8x8xi32>
    %4 = arith.cmpi sle, %3, %2 : vector<8x8xi32>
    %cst = arith.constant 0.000000e+00 : f32
    %cst_2 = arith.constant -1.000000e+30 : f32
    %5 = vector.broadcast %cst : f32 to vector<8x8xf32>
    %6 = vector.broadcast %cst_2 : f32 to vector<8x8xf32>
    %7 = arith.select %4, %5, %6 : vector<8x8xi1>, vector<8x8xf32>
    %c0_3 = arith.constant 0 : index
    %c0_4 = arith.constant 0 : index
    %c0_5 = arith.constant 0 : index
    %8 = vector.load %arg2[%c0_3, %c0_4, %c0_5] : memref<2x1x128xf32, #tpu.memory_space<vmem>>, vector<1x1x128xf32>
    %9 = vector.shape_cast %8 : vector<1x1x128xf32> to vector<1x128xf32>
    %c0_6 = arith.constant 0 : index
    %c0_7 = arith.constant 0 : index
    %c0_8 = arith.constant 0 : index
    %10 = vector.load %arg3[%c0_6, %c0_7, %c0_8] : memref<2x1x128xf32, #tpu.memory_space<vmem>>, vector<1x1x128xf32>
    %11 = vector.shape_cast %10 : vector<1x1x128xf32> to vector<1x128xf32>
    %cst_9 = arith.constant dense<0.000000e+00> : vector<8xf32>
    %12 = vector.multi_reduction <add>, %1, %cst_9 [1] : vector<8x128xf32> to vector<8xf32>
    %13 = vector.shape_cast %12 : vector<8xf32> to vector<8x1xf32>
    %cst_10 = arith.constant 1.280000e+02 : f32
    %14 = vector.broadcast %cst_10 : f32 to vector<8x1xf32>
    %15 = arith.divf %13, %14 : vector<8x1xf32>
    %16 = vector.broadcast %15 : vector<8x1xf32> to vector<8x128xf32>
    %17 = arith.subf %1, %16 : vector<8x128xf32>
    %18 = arith.mulf %17, %17 : vector<8x128xf32>
    %cst_11 = arith.constant dense<0.000000e+00> : vector<8xf32>
    %19 = vector.multi_reduction <add>, %18, %cst_11 [1] : vector<8x128xf32> to vector<8xf32>
    %20 = vector.shape_cast %19 : vector<8xf32> to vector<8x1xf32>
    %cst_12 = arith.constant 1.280000e+02 : f32
    %21 = vector.broadcast %cst_12 : f32 to vector<8x1xf32>
    %22 = arith.divf %20, %21 : vector<8x1xf32>
    %23 = vector.broadcast %15 : vector<8x1xf32> to vector<8x128xf32>
    %24 = arith.subf %1, %23 : vector<8x128xf32>
    %cst_13 = arith.constant 9.99999974E-6 : f32
    %25 = vector.broadcast %cst_13 : f32 to vector<8x1xf32>
    %26 = arith.addf %22, %25 : vector<8x1xf32>
    %27 = math.rsqrt %26 : vector<8x1xf32>
    %28 = vector.broadcast %27 : vector<8x1xf32> to vector<8x128xf32>
    %29 = arith.mulf %24, %28 : vector<8x128xf32>
    %30 = vector.broadcast %9 : vector<1x128xf32> to vector<8x128xf32>
    %31 = arith.mulf %29, %30 : vector<8x128xf32>
    %32 = vector.broadcast %11 : vector<1x128xf32> to vector<8x128xf32>
    %33 = arith.addf %31, %32 : vector<8x128xf32>
    %34 = arith.truncf %33 : vector<8x128xf32> to vector<8x128xbf16>
    %c0_14 = arith.constant 0 : index
    %c0_15 = arith.constant 0 : index
    %c0_16 = arith.constant 0 : index
    %35 = vector.load %arg4[%c0_14, %c0_15, %c0_16] : memref<2x128x384xbf16, #tpu.memory_space<vmem>>, vector<1x128x384xbf16>
    %36 = vector.shape_cast %35 : vector<1x128x384xbf16> to vector<128x384xbf16>
    %cst_17 = arith.constant dense<0.000000e+00> : vector<8x384xf32>
    %37 = tpu.matmul %34, %36, %cst_17 {dimension_numbers = #tpu.dot_dimension_numbers<[1], [0], [0], [1], [0, 0, 1, 1], [], []>} : vector<8x128xbf16>, vector<128x384xbf16>, vector<8x384xf32> -> vector<8x384xf32>
    %38 = vector.extract_strided_slice %37 {offsets = [0, 0], sizes = [8, 128], strides = [1, 1]} : vector<8x384xf32> to vector<8x128xf32>
    %39 = vector.extract_strided_slice %37 {offsets = [0, 128], sizes = [8, 128], strides = [1, 1]} : vector<8x384xf32> to vector<8x128xf32>
    %40 = vector.extract_strided_slice %37 {offsets = [0, 256], sizes = [8, 128], strides = [1, 1]} : vector<8x384xf32> to vector<8x128xf32>
    %41 = vector.extract_strided_slice %38 {offsets = [0, 0], sizes = [8, 32], strides = [1, 1]} : vector<8x128xf32> to vector<8x32xf32>
    %42 = arith.truncf %41 : vector<8x32xf32> to vector<8x32xbf16>
    %43 = vector.extract_strided_slice %39 {offsets = [0, 0], sizes = [8, 32], strides = [1, 1]} : vector<8x128xf32> to vector<8x32xf32>
    %44 = arith.truncf %43 : vector<8x32xf32> to vector<8x32xbf16>
    %45 = vector.extract_strided_slice %40 {offsets = [0, 0], sizes = [8, 32], strides = [1, 1]} : vector<8x128xf32> to vector<8x32xf32>
    %46 = arith.truncf %45 : vector<8x32xf32> to vector<8x32xbf16>
    %cst_18 = arith.constant dense<0.000000e+00> : vector<8x8xf32>
    %47 = tpu.matmul %42, %44, %cst_18 {dimension_numbers = #tpu.dot_dimension_numbers<[1], [1], [0], [0], [0, 0, 1, 0], [], []>} : vector<8x32xbf16>, vector<8x32xbf16>, vector<8x8xf32> -> vector<8x8xf32>
    %48 = arith.addf %47, %7 : vector<8x8xf32>
    %cst_19 = arith.constant dense<0xFF800000> : vector<8xf32>
    %49 = vector.multi_reduction <maximumf>, %48, %cst_19 [1] : vector<8x8xf32> to vector<8xf32>
    %50 = vector.shape_cast %49 : vector<8xf32> to vector<8x1xf32>
    %51 = vector.broadcast %50 : vector<8x1xf32> to vector<8x8xf32>
    %52 = arith.subf %48, %51 : vector<8x8xf32>
    %53 = math.exp %52 : vector<8x8xf32>
    %cst_20 = arith.constant dense<0.000000e+00> : vector<8xf32>
    %54 = vector.multi_reduction <add>, %53, %cst_20 [1] : vector<8x8xf32> to vector<8xf32>
    %55 = vector.shape_cast %54 : vector<8xf32> to vector<8x1xf32>
    %56 = tpu.reciprocal %55 {approx = true} : vector<8x1xf32> -> vector<8x1xf32>
    %57 = vector.broadcast %56 : vector<8x1xf32> to vector<8x8xf32>
    %58 = arith.mulf %53, %57 : vector<8x8xf32>
    %59 = arith.truncf %58 : vector<8x8xf32> to vector<8x8xbf16>
    %cst_21 = arith.constant dense<0.000000e+00> : vector<8x32xf32>
    %60 = tpu.matmul %59, %46, %cst_21 {dimension_numbers = #tpu.dot_dimension_numbers<[1], [0], [0], [1], [0, 0, 1, 1], [], []>} : vector<8x8xbf16>, vector<8x32xbf16>, vector<8x32xf32> -> vector<8x32xf32>
    %61 = arith.truncf %60 : vector<8x32xf32> to vector<8x32xbf16>
    %c0_22 = arith.constant 0 : index
    %c0_23 = arith.constant 0 : index
    %62 = vector.load %arg18[%c0_22, %c0_23] : memref<8x128xbf16, #tpu.memory_space<vmem>>, vector<8x32xbf16>
    tpu.vector_store %arg18[%c0_22, %c0_23], %61 {strides = array<i32>} : memref<8x128xbf16, #tpu.memory_space<vmem>>, vector<8x32xbf16>,
    %63 = vector.extract_strided_slice %38 {offsets = [0, 32], sizes = [8, 32], strides = [1, 1]} : vector<8x128xf32> to vector<8x32xf32>
    %64 = arith.truncf %63 : vector<8x32xf32> to vector<8x32xbf16>
    %65 = vector.extract_strided_slice %39 {offsets = [0, 32], sizes = [8, 32], strides = [1, 1]} : vector<8x128xf32> to vector<8x32xf32>
    %66 = arith.truncf %65 : vector<8x32xf32> to vector<8x32xbf16>
    %67 = vector.extract_strided_slice %40 {offsets = [0, 32], sizes = [8, 32], strides = [1, 1]} : vector<8x128xf32> to vector<8x32xf32>
    %68 = arith.truncf %67 : vector<8x32xf32> to vector<8x32xbf16>
    %cst_24 = arith.constant dense<0.000000e+00> : vector<8x8xf32>
    %69 = tpu.matmul %64, %66, %cst_24 {dimension_numbers = #tpu.dot_dimension_numbers<[1], [1], [0], [0], [0, 0, 1, 0], [], []>} : vector<8x32xbf16>, vector<8x32xbf16>, vector<8x8xf32> -> vector<8x8xf32>
    %70 = arith.addf %69, %7 : vector<8x8xf32>
    %cst_25 = arith.constant dense<0xFF800000> : vector<8xf32>
    %71 = vector.multi_reduction <maximumf>, %70, %cst_25 [1] : vector<8x8xf32> to vector<8xf32>
    %72 = vector.shape_cast %71 : vector<8xf32> to vector<8x1xf32>
    %73 = vector.broadcast %72 : vector<8x1xf32> to vector<8x8xf32>
    %74 = arith.subf %70, %73 : vector<8x8xf32>
    %75 = math.exp %74 : vector<8x8xf32>
    %cst_26 = arith.constant dense<0.000000e+00> : vector<8xf32>
    %76 = vector.multi_reduction <add>, %75, %cst_26 [1] : vector<8x8xf32> to vector<8xf32>
    %77 = vector.shape_cast %76 : vector<8xf32> to vector<8x1xf32>
    %78 = tpu.reciprocal %77 {approx = true} : vector<8x1xf32> -> vector<8x1xf32>
    %79 = vector.broadcast %78 : vector<8x1xf32> to vector<8x8xf32>
    %80 = arith.mulf %75, %79 : vector<8x8xf32>
    %81 = arith.truncf %80 : vector<8x8xf32> to vector<8x8xbf16>
    %cst_27 = arith.constant dense<0.000000e+00> : vector<8x32xf32>
    %82 = tpu.matmul %81, %68, %cst_27 {dimension_numbers = #tpu.dot_dimension_numbers<[1], [0], [0], [1], [0, 0, 1, 1], [], []>} : vector<8x8xbf16>, vector<8x32xbf16>, vector<8x32xf32> -> vector<8x32xf32>
    %83 = arith.truncf %82 : vector<8x32xf32> to vector<8x32xbf16>
    %c0_28 = arith.constant 0 : index
    %c32 = arith.constant 32 : index
    %84 = vector.load %arg18[%c0_28, %c32] : memref<8x128xbf16, #tpu.memory_space<vmem>>, vector<8x32xbf16>
    tpu.vector_store %arg18[%c0_28, %c32], %83 {strides = array<i32>} : memref<8x128xbf16, #tpu.memory_space<vmem>>, vector<8x32xbf16>,
    %85 = vector.extract_strided_slice %38 {offsets = [0, 64], sizes = [8, 32], strides = [1, 1]} : vector<8x128xf32> to vector<8x32xf32>
    %86 = arith.truncf %85 : vector<8x32xf32> to vector<8x32xbf16>
    %87 = vector.extract_strided_slice %39 {offsets = [0, 64], sizes = [8, 32], strides = [1, 1]} : vector<8x128xf32> to vector<8x32xf32>
    %88 = arith.truncf %87 : vector<8x32xf32> to vector<8x32xbf16>
    %89 = vector.extract_strided_slice %40 {offsets = [0, 64], sizes = [8, 32], strides = [1, 1]} : vector<8x128xf32> to vector<8x32xf32>
    %90 = arith.truncf %89 : vector<8x32xf32> to vector<8x32xbf16>
    %cst_29 = arith.constant dense<0.000000e+00> : vector<8x8xf32>
    %91 = tpu.matmul %86, %88, %cst_29 {dimension_numbers = #tpu.dot_dimension_numbers<[1], [1], [0], [0], [0, 0, 1, 0], [], []>} : vector<8x32xbf16>, vector<8x32xbf16>, vector<8x8xf32> -> vector<8x8xf32>
    %92 = arith.addf %91, %7 : vector<8x8xf32>
    %cst_30 = arith.constant dense<0xFF800000> : vector<8xf32>
    %93 = vector.multi_reduction <maximumf>, %92, %cst_30 [1] : vector<8x8xf32> to vector<8xf32>
    %94 = vector.shape_cast %93 : vector<8xf32> to vector<8x1xf32>
    %95 = vector.broadcast %94 : vector<8x1xf32> to vector<8x8xf32>
    %96 = arith.subf %92, %95 : vector<8x8xf32>
    %97 = math.exp %96 : vector<8x8xf32>
    %cst_31 = arith.constant dense<0.000000e+00> : vector<8xf32>
    %98 = vector.multi_reduction <add>, %97, %cst_31 [1] : vector<8x8xf32> to vector<8xf32>
    %99 = vector.shape_cast %98 : vector<8xf32> to vector<8x1xf32>
    %100 = tpu.reciprocal %99 {approx = true} : vector<8x1xf32> -> vector<8x1xf32>
    %101 = vector.broadcast %100 : vector<8x1xf32> to vector<8x8xf32>
    %102 = arith.mulf %97, %101 : vector<8x8xf32>
    %103 = arith.truncf %102 : vector<8x8xf32> to vector<8x8xbf16>
    %cst_32 = arith.constant dense<0.000000e+00> : vector<8x32xf32>
    %104 = tpu.matmul %103, %90, %cst_32 {dimension_numbers = #tpu.dot_dimension_numbers<[1], [0], [0], [1], [0, 0, 1, 1], [], []>} : vector<8x8xbf16>, vector<8x32xbf16>, vector<8x32xf32> -> vector<8x32xf32>
    %105 = arith.truncf %104 : vector<8x32xf32> to vector<8x32xbf16>
    %c0_33 = arith.constant 0 : index
    %c64 = arith.constant 64 : index
    %106 = vector.load %arg18[%c0_33, %c64] : memref<8x128xbf16, #tpu.memory_space<vmem>>, vector<8x32xbf16>
    tpu.vector_store %arg18[%c0_33, %c64], %105 {strides = array<i32>} : memref<8x128xbf16, #tpu.memory_space<vmem>>, vector<8x32xbf16>,
    %107 = vector.extract_strided_slice %38 {offsets = [0, 96], sizes = [8, 32], strides = [1, 1]} : vector<8x128xf32> to vector<8x32xf32>
    %108 = arith.truncf %107 : vector<8x32xf32> to vector<8x32xbf16>
    %109 = vector.extract_strided_slice %39 {offsets = [0, 96], sizes = [8, 32], strides = [1, 1]} : vector<8x128xf32> to vector<8x32xf32>
    %110 = arith.truncf %109 : vector<8x32xf32> to vector<8x32xbf16>
    %111 = vector.extract_strided_slice %40 {offsets = [0, 96], sizes = [8, 32], strides = [1, 1]} : vector<8x128xf32> to vector<8x32xf32>
    %112 = arith.truncf %111 : vector<8x32xf32> to vector<8x32xbf16>
    %cst_34 = arith.constant dense<0.000000e+00> : vector<8x8xf32>
    %113 = tpu.matmul %108, %110, %cst_34 {dimension_numbers = #tpu.dot_dimension_numbers<[1], [1], [0], [0], [0, 0, 1, 0], [], []>} : vector<8x32xbf16>, vector<8x32xbf16>, vector<8x8xf32> -> vector<8x8xf32>
    %114 = arith.addf %113, %7 : vector<8x8xf32>
    %cst_35 = arith.constant dense<0xFF800000> : vector<8xf32>
    %115 = vector.multi_reduction <maximumf>, %114, %cst_35 [1] : vector<8x8xf32> to vector<8xf32>
    %116 = vector.shape_cast %115 : vector<8xf32> to vector<8x1xf32>
    %117 = vector.broadcast %116 : vector<8x1xf32> to vector<8x8xf32>
    %118 = arith.subf %114, %117 : vector<8x8xf32>
    %119 = math.exp %118 : vector<8x8xf32>
    %cst_36 = arith.constant dense<0.000000e+00> : vector<8xf32>
    %120 = vector.multi_reduction <add>, %119, %cst_36 [1] : vector<8x8xf32> to vector<8xf32>
    %121 = vector.shape_cast %120 : vector<8xf32> to vector<8x1xf32>
    %122 = tpu.reciprocal %121 {approx = true} : vector<8x1xf32> -> vector<8x1xf32>
    %123 = vector.broadcast %122 : vector<8x1xf32> to vector<8x8xf32>
    %124 = arith.mulf %119, %123 : vector<8x8xf32>
    %125 = arith.truncf %124 : vector<8x8xf32> to vector<8x8xbf16>
    %cst_37 = arith.constant dense<0.000000e+00> : vector<8x32xf32>
    %126 = tpu.matmul %125, %112, %cst_37 {dimension_numbers = #tpu.dot_dimension_numbers<[1], [0], [0], [1], [0, 0, 1, 1], [], []>} : vector<8x8xbf16>, vector<8x32xbf16>, vector<8x32xf32> -> vector<8x32xf32>
    %127 = arith.truncf %126 : vector<8x32xf32> to vector<8x32xbf16>
    %c0_38 = arith.constant 0 : index
    %c96 = arith.constant 96 : index
    %128 = vector.load %arg18[%c0_38, %c96] : memref<8x128xbf16, #tpu.memory_space<vmem>>, vector<8x32xbf16>
    tpu.vector_store %arg18[%c0_38, %c96], %127 {strides = array<i32>} : memref<8x128xbf16, #tpu.memory_space<vmem>>, vector<8x32xbf16>,
    %c0_39 = arith.constant 0 : index
    %c0_40 = arith.constant 0 : index
    %129 = vector.load %arg18[%c0_39, %c0_40] : memref<8x128xbf16, #tpu.memory_space<vmem>>, vector<8x128xbf16>
    %c0_41 = arith.constant 0 : index
    %c0_42 = arith.constant 0 : index
    %c0_43 = arith.constant 0 : index
    %130 = vector.load %arg5[%c0_41, %c0_42, %c0_43] : memref<2x128x128xbf16, #tpu.memory_space<vmem>>, vector<1x128x128xbf16>
    %131 = vector.shape_cast %130 : vector<1x128x128xbf16> to vector<128x128xbf16>
    %cst_44 = arith.constant dense<0.000000e+00> : vector<8x128xf32>
    %132 = tpu.matmul %129, %131, %cst_44 {dimension_numbers = #tpu.dot_dimension_numbers<[1], [0], [0], [1], [0, 0, 1, 1], [], []>} : vector<8x128xbf16>, vector<128x128xbf16>, vector<8x128xf32> -> vector<8x128xf32>
    %133 = arith.addf %1, %132 : vector<8x128xf32>
    %c0_45 = arith.constant 0 : index
    %c0_46 = arith.constant 0 : index
    %c0_47 = arith.constant 0 : index
    %134 = vector.load %arg6[%c0_45, %c0_46, %c0_47] : memref<2x1x128xf32, #tpu.memory_space<vmem>>, vector<1x1x128xf32>
    %135 = vector.shape_cast %134 : vector<1x1x128xf32> to vector<1x128xf32>
    %136 = vector.broadcast %135 : vector<1x128xf32> to vector<8x128xf32>
    %137 = arith.addf %133, %136 : vector<8x128xf32>
    %c0_48 = arith.constant 0 : index
    %c0_49 = arith.constant 0 : index
    %c0_50 = arith.constant 0 : index
    %138 = vector.load %arg7[%c0_48, %c0_49, %c0_50] : memref<2x1x128xf32, #tpu.memory_space<vmem>>, vector<1x1x128xf32>
    %139 = vector.shape_cast %138 : vector<1x1x128xf32> to vector<1x128xf32>
    %c0_51 = arith.constant 0 : index
    %c0_52 = arith.constant 0 : index
    %c0_53 = arith.constant 0 : index
    %140 = vector.load %arg8[%c0_51, %c0_52, %c0_53] : memref<2x1x128xf32, #tpu.memory_space<vmem>>, vector<1x1x128xf32>
    %141 = vector.shape_cast %140 : vector<1x1x128xf32> to vector<1x128xf32>
    %cst_54 = arith.constant dense<0.000000e+00> : vector<8xf32>
    %142 = vector.multi_reduction <add>, %137, %cst_54 [1] : vector<8x128xf32> to vector<8xf32>
    %143 = vector.shape_cast %142 : vector<8xf32> to vector<8x1xf32>
    %cst_55 = arith.constant 1.280000e+02 : f32
    %144 = vector.broadcast %cst_55 : f32 to vector<8x1xf32>
    %145 = arith.divf %143, %144 : vector<8x1xf32>
    %146 = vector.broadcast %145 : vector<8x1xf32> to vector<8x128xf32>
    %147 = arith.subf %137, %146 : vector<8x128xf32>
    %148 = arith.mulf %147, %147 : vector<8x128xf32>
    %cst_56 = arith.constant dense<0.000000e+00> : vector<8xf32>
    %149 = vector.multi_reduction <add>, %148, %cst_56 [1] : vector<8x128xf32> to vector<8xf32>
    %150 = vector.shape_cast %149 : vector<8xf32> to vector<8x1xf32>
    %cst_57 = arith.constant 1.280000e+02 : f32
    %151 = vector.broadcast %cst_57 : f32 to vector<8x1xf32>
    %152 = arith.divf %150, %151 : vector<8x1xf32>
    %153 = vector.broadcast %145 : vector<8x1xf32> to vector<8x128xf32>
    %154 = arith.subf %137, %153 : vector<8x128xf32>
    %cst_58 = arith.constant 9.99999974E-6 : f32
    %155 = vector.broadcast %cst_58 : f32 to vector<8x1xf32>
    %156 = arith.addf %152, %155 : vector<8x1xf32>
    %157 = math.rsqrt %156 : vector<8x1xf32>
    %158 = vector.broadcast %157 : vector<8x1xf32> to vector<8x128xf32>
    %159 = arith.mulf %154, %158 : vector<8x128xf32>
    %160 = vector.broadcast %139 : vector<1x128xf32> to vector<8x128xf32>
    %161 = arith.mulf %159, %160 : vector<8x128xf32>
    %162 = vector.broadcast %141 : vector<1x128xf32> to vector<8x128xf32>
    %163 = arith.addf %161, %162 : vector<8x128xf32>
    %164 = arith.truncf %163 : vector<8x128xf32> to vector<8x128xbf16>
    %c0_59 = arith.constant 0 : index
    %c0_60 = arith.constant 0 : index
    %c0_61 = arith.constant 0 : index
    %165 = vector.load %arg9[%c0_59, %c0_60, %c0_61] : memref<2x128x512xbf16, #tpu.memory_space<vmem>>, vector<1x128x512xbf16>
    %166 = vector.shape_cast %165 : vector<1x128x512xbf16> to vector<128x512xbf16>
    %cst_62 = arith.constant dense<0.000000e+00> : vector<8x512xf32>
    %167 = tpu.matmul %164, %166, %cst_62 {dimension_numbers = #tpu.dot_dimension_numbers<[1], [0], [0], [1], [0, 0, 1, 1], [], []>} : vector<8x128xbf16>, vector<128x512xbf16>, vector<8x512xf32> -> vector<8x512xf32>
    %168 = arith.truncf %167 : vector<8x512xf32> to vector<8x512xbf16>
    %c0_63 = arith.constant 0 : index
    %c0_64 = arith.constant 0 : index
    %c0_65 = arith.constant 0 : index
    %169 = vector.load %arg10[%c0_63, %c0_64, %c0_65] : memref<2x1x512xbf16, #tpu.memory_space<vmem>>, vector<1x1x512xbf16>
    %170 = vector.shape_cast %169 : vector<1x1x512xbf16> to vector<1x512xbf16>
    %171 = vector.broadcast %170 : vector<1x512xbf16> to vector<8x512xbf16>
    %172 = arith.addf %168, %171 : vector<8x512xbf16>
    %cst_66 = arith.constant 0.000000e+00 : bf16
    %173 = vector.broadcast %cst_66 : bf16 to vector<8x512xbf16>
    %174 = arith.maximumf %172, %173 : vector<8x512xbf16>
    %c0_67 = arith.constant 0 : index
    %c0_68 = arith.constant 0 : index
    %c0_69 = arith.constant 0 : index
    %175 = vector.load %arg11[%c0_67, %c0_68, %c0_69] : memref<2x512x128xbf16, #tpu.memory_space<vmem>>, vector<1x512x128xbf16>
    %176 = vector.shape_cast %175 : vector<1x512x128xbf16> to vector<512x128xbf16>
    %cst_70 = arith.constant dense<0.000000e+00> : vector<8x128xf32>
    %177 = tpu.matmul %174, %176, %cst_70 {dimension_numbers = #tpu.dot_dimension_numbers<[1], [0], [0], [1], [0, 0, 1, 1], [], []>} : vector<8x512xbf16>, vector<512x128xbf16>, vector<8x128xf32> -> vector<8x128xf32>
    %c0_71 = arith.constant 0 : index
    %c0_72 = arith.constant 0 : index
    %c0_73 = arith.constant 0 : index
    %178 = vector.load %arg12[%c0_71, %c0_72, %c0_73] : memref<2x1x128xf32, #tpu.memory_space<vmem>>, vector<1x1x128xf32>
    %179 = vector.shape_cast %178 : vector<1x1x128xf32> to vector<1x128xf32>
    %180 = vector.broadcast %179 : vector<1x128xf32> to vector<8x128xf32>
    %181 = arith.addf %177, %180 : vector<8x128xf32>
    %182 = arith.addf %137, %181 : vector<8x128xf32>
    %c1 = arith.constant 1 : index
    %c0_74 = arith.constant 0 : index
    %c0_75 = arith.constant 0 : index
    %183 = vector.load %arg2[%c1, %c0_74, %c0_75] : memref<2x1x128xf32, #tpu.memory_space<vmem>>, vector<1x1x128xf32>
    %184 = vector.shape_cast %183 : vector<1x1x128xf32> to vector<1x128xf32>
    %c1_76 = arith.constant 1 : index
    %c0_77 = arith.constant 0 : index
    %c0_78 = arith.constant 0 : index
    %185 = vector.load %arg3[%c1_76, %c0_77, %c0_78] : memref<2x1x128xf32, #tpu.memory_space<vmem>>, vector<1x1x128xf32>
    %186 = vector.shape_cast %185 : vector<1x1x128xf32> to vector<1x128xf32>
    %cst_79 = arith.constant dense<0.000000e+00> : vector<8xf32>
    %187 = vector.multi_reduction <add>, %182, %cst_79 [1] : vector<8x128xf32> to vector<8xf32>
    %188 = vector.shape_cast %187 : vector<8xf32> to vector<8x1xf32>
    %cst_80 = arith.constant 1.280000e+02 : f32
    %189 = vector.broadcast %cst_80 : f32 to vector<8x1xf32>
    %190 = arith.divf %188, %189 : vector<8x1xf32>
    %191 = vector.broadcast %190 : vector<8x1xf32> to vector<8x128xf32>
    %192 = arith.subf %182, %191 : vector<8x128xf32>
    %193 = arith.mulf %192, %192 : vector<8x128xf32>
    %cst_81 = arith.constant dense<0.000000e+00> : vector<8xf32>
    %194 = vector.multi_reduction <add>, %193, %cst_81 [1] : vector<8x128xf32> to vector<8xf32>
    %195 = vector.shape_cast %194 : vector<8xf32> to vector<8x1xf32>
    %cst_82 = arith.constant 1.280000e+02 : f32
    %196 = vector.broadcast %cst_82 : f32 to vector<8x1xf32>
    %197 = arith.divf %195, %196 : vector<8x1xf32>
    %198 = vector.broadcast %190 : vector<8x1xf32> to vector<8x128xf32>
    %199 = arith.subf %182, %198 : vector<8x128xf32>
    %cst_83 = arith.constant 9.99999974E-6 : f32
    %200 = vector.broadcast %cst_83 : f32 to vector<8x1xf32>
    %201 = arith.addf %197, %200 : vector<8x1xf32>
    %202 = math.rsqrt %201 : vector<8x1xf32>
    %203 = vector.broadcast %202 : vector<8x1xf32> to vector<8x128xf32>
    %204 = arith.mulf %199, %203 : vector<8x128xf32>
    %205 = vector.broadcast %184 : vector<1x128xf32> to vector<8x128xf32>
    %206 = arith.mulf %204, %205 : vector<8x128xf32>
    %207 = vector.broadcast %186 : vector<1x128xf32> to vector<8x128xf32>
    %208 = arith.addf %206, %207 : vector<8x128xf32>
    %209 = arith.truncf %208 : vector<8x128xf32> to vector<8x128xbf16>
    %c1_84 = arith.constant 1 : index
    %c0_85 = arith.constant 0 : index
    %c0_86 = arith.constant 0 : index
    %210 = vector.load %arg4[%c1_84, %c0_85, %c0_86] : memref<2x128x384xbf16, #tpu.memory_space<vmem>>, vector<1x128x384xbf16>
    %211 = vector.shape_cast %210 : vector<1x128x384xbf16> to vector<128x384xbf16>
    %cst_87 = arith.constant dense<0.000000e+00> : vector<8x384xf32>
    %212 = tpu.matmul %209, %211, %cst_87 {dimension_numbers = #tpu.dot_dimension_numbers<[1], [0], [0], [1], [0, 0, 1, 1], [], []>} : vector<8x128xbf16>, vector<128x384xbf16>, vector<8x384xf32> -> vector<8x384xf32>
    %213 = vector.extract_strided_slice %212 {offsets = [0, 0], sizes = [8, 128], strides = [1, 1]} : vector<8x384xf32> to vector<8x128xf32>
    %214 = vector.extract_strided_slice %212 {offsets = [0, 128], sizes = [8, 128], strides = [1, 1]} : vector<8x384xf32> to vector<8x128xf32>
    %215 = vector.extract_strided_slice %212 {offsets = [0, 256], sizes = [8, 128], strides = [1, 1]} : vector<8x384xf32> to vector<8x128xf32>
    %216 = vector.extract_strided_slice %213 {offsets = [0, 0], sizes = [8, 32], strides = [1, 1]} : vector<8x128xf32> to vector<8x32xf32>
    %217 = arith.truncf %216 : vector<8x32xf32> to vector<8x32xbf16>
    %218 = vector.extract_strided_slice %214 {offsets = [0, 0], sizes = [8, 32], strides = [1, 1]} : vector<8x128xf32> to vector<8x32xf32>
    %219 = arith.truncf %218 : vector<8x32xf32> to vector<8x32xbf16>
    %220 = vector.extract_strided_slice %215 {offsets = [0, 0], sizes = [8, 32], strides = [1, 1]} : vector<8x128xf32> to vector<8x32xf32>
    %221 = arith.truncf %220 : vector<8x32xf32> to vector<8x32xbf16>
    %cst_88 = arith.constant dense<0.000000e+00> : vector<8x8xf32>
    %222 = tpu.matmul %217, %219, %cst_88 {dimension_numbers = #tpu.dot_dimension_numbers<[1], [1], [0], [0], [0, 0, 1, 0], [], []>} : vector<8x32xbf16>, vector<8x32xbf16>, vector<8x8xf32> -> vector<8x8xf32>
    %223 = arith.addf %222, %7 : vector<8x8xf32>
    %cst_89 = arith.constant dense<0xFF800000> : vector<8xf32>
    %224 = vector.multi_reduction <maximumf>, %223, %cst_89 [1] : vector<8x8xf32> to vector<8xf32>
    %225 = vector.shape_cast %224 : vector<8xf32> to vector<8x1xf32>
    %226 = vector.broadcast %225 : vector<8x1xf32> to vector<8x8xf32>
    %227 = arith.subf %223, %226 : vector<8x8xf32>
    %228 = math.exp %227 : vector<8x8xf32>
    %cst_90 = arith.constant dense<0.000000e+00> : vector<8xf32>
    %229 = vector.multi_reduction <add>, %228, %cst_90 [1] : vector<8x8xf32> to vector<8xf32>
    %230 = vector.shape_cast %229 : vector<8xf32> to vector<8x1xf32>
    %231 = tpu.reciprocal %230 {approx = true} : vector<8x1xf32> -> vector<8x1xf32>
    %232 = vector.broadcast %231 : vector<8x1xf32> to vector<8x8xf32>
    %233 = arith.mulf %228, %232 : vector<8x8xf32>
    %234 = arith.truncf %233 : vector<8x8xf32> to vector<8x8xbf16>
    %cst_91 = arith.constant dense<0.000000e+00> : vector<8x32xf32>
    %235 = tpu.matmul %234, %221, %cst_91 {dimension_numbers = #tpu.dot_dimension_numbers<[1], [0], [0], [1], [0, 0, 1, 1], [], []>} : vector<8x8xbf16>, vector<8x32xbf16>, vector<8x32xf32> -> vector<8x32xf32>
    %236 = arith.truncf %235 : vector<8x32xf32> to vector<8x32xbf16>
    %c0_92 = arith.constant 0 : index
    %c0_93 = arith.constant 0 : index
    %237 = vector.load %arg18[%c0_92, %c0_93] : memref<8x128xbf16, #tpu.memory_space<vmem>>, vector<8x32xbf16>
    tpu.vector_store %arg18[%c0_92, %c0_93], %236 {strides = array<i32>} : memref<8x128xbf16, #tpu.memory_space<vmem>>, vector<8x32xbf16>,
    %238 = vector.extract_strided_slice %213 {offsets = [0, 32], sizes = [8, 32], strides = [1, 1]} : vector<8x128xf32> to vector<8x32xf32>
    %239 = arith.truncf %238 : vector<8x32xf32> to vector<8x32xbf16>
    %240 = vector.extract_strided_slice %214 {offsets = [0, 32], sizes = [8, 32], strides = [1, 1]} : vector<8x128xf32> to vector<8x32xf32>
    %241 = arith.truncf %240 : vector<8x32xf32> to vector<8x32xbf16>
    %242 = vector.extract_strided_slice %215 {offsets = [0, 32], sizes = [8, 32], strides = [1, 1]} : vector<8x128xf32> to vector<8x32xf32>
    %243 = arith.truncf %242 : vector<8x32xf32> to vector<8x32xbf16>
    %cst_94 = arith.constant dense<0.000000e+00> : vector<8x8xf32>
    %244 = tpu.matmul %239, %241, %cst_94 {dimension_numbers = #tpu.dot_dimension_numbers<[1], [1], [0], [0], [0, 0, 1, 0], [], []>} : vector<8x32xbf16>, vector<8x32xbf16>, vector<8x8xf32> -> vector<8x8xf32>
    %245 = arith.addf %244, %7 : vector<8x8xf32>
    %cst_95 = arith.constant dense<0xFF800000> : vector<8xf32>
    %246 = vector.multi_reduction <maximumf>, %245, %cst_95 [1] : vector<8x8xf32> to vector<8xf32>
    %247 = vector.shape_cast %246 : vector<8xf32> to vector<8x1xf32>
    %248 = vector.broadcast %247 : vector<8x1xf32> to vector<8x8xf32>
    %249 = arith.subf %245, %248 : vector<8x8xf32>
    %250 = math.exp %249 : vector<8x8xf32>
    %cst_96 = arith.constant dense<0.000000e+00> : vector<8xf32>
    %251 = vector.multi_reduction <add>, %250, %cst_96 [1] : vector<8x8xf32> to vector<8xf32>
    %252 = vector.shape_cast %251 : vector<8xf32> to vector<8x1xf32>
    %253 = tpu.reciprocal %252 {approx = true} : vector<8x1xf32> -> vector<8x1xf32>
    %254 = vector.broadcast %253 : vector<8x1xf32> to vector<8x8xf32>
    %255 = arith.mulf %250, %254 : vector<8x8xf32>
    %256 = arith.truncf %255 : vector<8x8xf32> to vector<8x8xbf16>
    %cst_97 = arith.constant dense<0.000000e+00> : vector<8x32xf32>
    %257 = tpu.matmul %256, %243, %cst_97 {dimension_numbers = #tpu.dot_dimension_numbers<[1], [0], [0], [1], [0, 0, 1, 1], [], []>} : vector<8x8xbf16>, vector<8x32xbf16>, vector<8x32xf32> -> vector<8x32xf32>
    %258 = arith.truncf %257 : vector<8x32xf32> to vector<8x32xbf16>
    %c0_98 = arith.constant 0 : index
    %c32_99 = arith.constant 32 : index
    %259 = vector.load %arg18[%c0_98, %c32_99] : memref<8x128xbf16, #tpu.memory_space<vmem>>, vector<8x32xbf16>
    tpu.vector_store %arg18[%c0_98, %c32_99], %258 {strides = array<i32>} : memref<8x128xbf16, #tpu.memory_space<vmem>>, vector<8x32xbf16>,
    %260 = vector.extract_strided_slice %213 {offsets = [0, 64], sizes = [8, 32], strides = [1, 1]} : vector<8x128xf32> to vector<8x32xf32>
    %261 = arith.truncf %260 : vector<8x32xf32> to vector<8x32xbf16>
    %262 = vector.extract_strided_slice %214 {offsets = [0, 64], sizes = [8, 32], strides = [1, 1]} : vector<8x128xf32> to vector<8x32xf32>
    %263 = arith.truncf %262 : vector<8x32xf32> to vector<8x32xbf16>
    %264 = vector.extract_strided_slice %215 {offsets = [0, 64], sizes = [8, 32], strides = [1, 1]} : vector<8x128xf32> to vector<8x32xf32>
    %265 = arith.truncf %264 : vector<8x32xf32> to vector<8x32xbf16>
    %cst_100 = arith.constant dense<0.000000e+00> : vector<8x8xf32>
    %266 = tpu.matmul %261, %263, %cst_100 {dimension_numbers = #tpu.dot_dimension_numbers<[1], [1], [0], [0], [0, 0, 1, 0], [], []>} : vector<8x32xbf16>, vector<8x32xbf16>, vector<8x8xf32> -> vector<8x8xf32>
    %267 = arith.addf %266, %7 : vector<8x8xf32>
    %cst_101 = arith.constant dense<0xFF800000> : vector<8xf32>
    %268 = vector.multi_reduction <maximumf>, %267, %cst_101 [1] : vector<8x8xf32> to vector<8xf32>
    %269 = vector.shape_cast %268 : vector<8xf32> to vector<8x1xf32>
    %270 = vector.broadcast %269 : vector<8x1xf32> to vector<8x8xf32>
    %271 = arith.subf %267, %270 : vector<8x8xf32>
    %272 = math.exp %271 : vector<8x8xf32>
    %cst_102 = arith.constant dense<0.000000e+00> : vector<8xf32>
    %273 = vector.multi_reduction <add>, %272, %cst_102 [1] : vector<8x8xf32> to vector<8xf32>
    %274 = vector.shape_cast %273 : vector<8xf32> to vector<8x1xf32>
    %275 = tpu.reciprocal %274 {approx = true} : vector<8x1xf32> -> vector<8x1xf32>
    %276 = vector.broadcast %275 : vector<8x1xf32> to vector<8x8xf32>
    %277 = arith.mulf %272, %276 : vector<8x8xf32>
    %278 = arith.truncf %277 : vector<8x8xf32> to vector<8x8xbf16>
    %cst_103 = arith.constant dense<0.000000e+00> : vector<8x32xf32>
    %279 = tpu.matmul %278, %265, %cst_103 {dimension_numbers = #tpu.dot_dimension_numbers<[1], [0], [0], [1], [0, 0, 1, 1], [], []>} : vector<8x8xbf16>, vector<8x32xbf16>, vector<8x32xf32> -> vector<8x32xf32>
    %280 = arith.truncf %279 : vector<8x32xf32> to vector<8x32xbf16>
    %c0_104 = arith.constant 0 : index
    %c64_105 = arith.constant 64 : index
    %281 = vector.load %arg18[%c0_104, %c64_105] : memref<8x128xbf16, #tpu.memory_space<vmem>>, vector<8x32xbf16>
    tpu.vector_store %arg18[%c0_104, %c64_105], %280 {strides = array<i32>} : memref<8x128xbf16, #tpu.memory_space<vmem>>, vector<8x32xbf16>,
    %282 = vector.extract_strided_slice %213 {offsets = [0, 96], sizes = [8, 32], strides = [1, 1]} : vector<8x128xf32> to vector<8x32xf32>
    %283 = arith.truncf %282 : vector<8x32xf32> to vector<8x32xbf16>
    %284 = vector.extract_strided_slice %214 {offsets = [0, 96], sizes = [8, 32], strides = [1, 1]} : vector<8x128xf32> to vector<8x32xf32>
    %285 = arith.truncf %284 : vector<8x32xf32> to vector<8x32xbf16>
    %286 = vector.extract_strided_slice %215 {offsets = [0, 96], sizes = [8, 32], strides = [1, 1]} : vector<8x128xf32> to vector<8x32xf32>
    %287 = arith.truncf %286 : vector<8x32xf32> to vector<8x32xbf16>
    %cst_106 = arith.constant dense<0.000000e+00> : vector<8x8xf32>
    %288 = tpu.matmul %283, %285, %cst_106 {dimension_numbers = #tpu.dot_dimension_numbers<[1], [1], [0], [0], [0, 0, 1, 0], [], []>} : vector<8x32xbf16>, vector<8x32xbf16>, vector<8x8xf32> -> vector<8x8xf32>
    %289 = arith.addf %288, %7 : vector<8x8xf32>
    %cst_107 = arith.constant dense<0xFF800000> : vector<8xf32>
    %290 = vector.multi_reduction <maximumf>, %289, %cst_107 [1] : vector<8x8xf32> to vector<8xf32>
    %291 = vector.shape_cast %290 : vector<8xf32> to vector<8x1xf32>
    %292 = vector.broadcast %291 : vector<8x1xf32> to vector<8x8xf32>
    %293 = arith.subf %289, %292 : vector<8x8xf32>
    %294 = math.exp %293 : vector<8x8xf32>
    %cst_108 = arith.constant dense<0.000000e+00> : vector<8xf32>
    %295 = vector.multi_reduction <add>, %294, %cst_108 [1] : vector<8x8xf32> to vector<8xf32>
    %296 = vector.shape_cast %295 : vector<8xf32> to vector<8x1xf32>
    %297 = tpu.reciprocal %296 {approx = true} : vector<8x1xf32> -> vector<8x1xf32>
    %298 = vector.broadcast %297 : vector<8x1xf32> to vector<8x8xf32>
    %299 = arith.mulf %294, %298 : vector<8x8xf32>
    %300 = arith.truncf %299 : vector<8x8xf32> to vector<8x8xbf16>
    %cst_109 = arith.constant dense<0.000000e+00> : vector<8x32xf32>
    %301 = tpu.matmul %300, %287, %cst_109 {dimension_numbers = #tpu.dot_dimension_numbers<[1], [0], [0], [1], [0, 0, 1, 1], [], []>} : vector<8x8xbf16>, vector<8x32xbf16>, vector<8x32xf32> -> vector<8x32xf32>
    %302 = arith.truncf %301 : vector<8x32xf32> to vector<8x32xbf16>
    %c0_110 = arith.constant 0 : index
    %c96_111 = arith.constant 96 : index
    %303 = vector.load %arg18[%c0_110, %c96_111] : memref<8x128xbf16, #tpu.memory_space<vmem>>, vector<8x32xbf16>
    tpu.vector_store %arg18[%c0_110, %c96_111], %302 {strides = array<i32>} : memref<8x128xbf16, #tpu.memory_space<vmem>>, vector<8x32xbf16>,
    %c0_112 = arith.constant 0 : index
    %c0_113 = arith.constant 0 : index
    %304 = vector.load %arg18[%c0_112, %c0_113] : memref<8x128xbf16, #tpu.memory_space<vmem>>, vector<8x128xbf16>
    %c1_114 = arith.constant 1 : index
    %c0_115 = arith.constant 0 : index
    %c0_116 = arith.constant 0 : index
    %305 = vector.load %arg5[%c1_114, %c0_115, %c0_116] : memref<2x128x128xbf16, #tpu.memory_space<vmem>>, vector<1x128x128xbf16>
    %306 = vector.shape_cast %305 : vector<1x128x128xbf16> to vector<128x128xbf16>
    %cst_117 = arith.constant dense<0.000000e+00> : vector<8x128xf32>
    %307 = tpu.matmul %304, %306, %cst_117 {dimension_numbers = #tpu.dot_dimension_numbers<[1], [0], [0], [1], [0, 0, 1, 1], [], []>} : vector<8x128xbf16>, vector<128x128xbf16>, vector<8x128xf32> -> vector<8x128xf32>
    %308 = arith.addf %182, %307 : vector<8x128xf32>
    %c1_118 = arith.constant 1 : index
    %c0_119 = arith.constant 0 : index
    %c0_120 = arith.constant 0 : index
    %309 = vector.load %arg6[%c1_118, %c0_119, %c0_120] : memref<2x1x128xf32, #tpu.memory_space<vmem>>, vector<1x1x128xf32>
    %310 = vector.shape_cast %309 : vector<1x1x128xf32> to vector<1x128xf32>
    %311 = vector.broadcast %310 : vector<1x128xf32> to vector<8x128xf32>
    %312 = arith.addf %308, %311 : vector<8x128xf32>
    %c1_121 = arith.constant 1 : index
    %c0_122 = arith.constant 0 : index
    %c0_123 = arith.constant 0 : index
    %313 = vector.load %arg7[%c1_121, %c0_122, %c0_123] : memref<2x1x128xf32, #tpu.memory_space<vmem>>, vector<1x1x128xf32>
    %314 = vector.shape_cast %313 : vector<1x1x128xf32> to vector<1x128xf32>
    %c1_124 = arith.constant 1 : index
    %c0_125 = arith.constant 0 : index
    %c0_126 = arith.constant 0 : index
    %315 = vector.load %arg8[%c1_124, %c0_125, %c0_126] : memref<2x1x128xf32, #tpu.memory_space<vmem>>, vector<1x1x128xf32>
    %316 = vector.shape_cast %315 : vector<1x1x128xf32> to vector<1x128xf32>
    %cst_127 = arith.constant dense<0.000000e+00> : vector<8xf32>
    %317 = vector.multi_reduction <add>, %312, %cst_127 [1] : vector<8x128xf32> to vector<8xf32>
    %318 = vector.shape_cast %317 : vector<8xf32> to vector<8x1xf32>
    %cst_128 = arith.constant 1.280000e+02 : f32
    %319 = vector.broadcast %cst_128 : f32 to vector<8x1xf32>
    %320 = arith.divf %318, %319 : vector<8x1xf32>
    %321 = vector.broadcast %320 : vector<8x1xf32> to vector<8x128xf32>
    %322 = arith.subf %312, %321 : vector<8x128xf32>
    %323 = arith.mulf %322, %322 : vector<8x128xf32>
    %cst_129 = arith.constant dense<0.000000e+00> : vector<8xf32>
    %324 = vector.multi_reduction <add>, %323, %cst_129 [1] : vector<8x128xf32> to vector<8xf32>
    %325 = vector.shape_cast %324 : vector<8xf32> to vector<8x1xf32>
    %cst_130 = arith.constant 1.280000e+02 : f32
    %326 = vector.broadcast %cst_130 : f32 to vector<8x1xf32>
    %327 = arith.divf %325, %326 : vector<8x1xf32>
    %328 = vector.broadcast %320 : vector<8x1xf32> to vector<8x128xf32>
    %329 = arith.subf %312, %328 : vector<8x128xf32>
    %cst_131 = arith.constant 9.99999974E-6 : f32
    %330 = vector.broadcast %cst_131 : f32 to vector<8x1xf32>
    %331 = arith.addf %327, %330 : vector<8x1xf32>
    %332 = math.rsqrt %331 : vector<8x1xf32>
    %333 = vector.broadcast %332 : vector<8x1xf32> to vector<8x128xf32>
    %334 = arith.mulf %329, %333 : vector<8x128xf32>
    %335 = vector.broadcast %314 : vector<1x128xf32> to vector<8x128xf32>
    %336 = arith.mulf %334, %335 : vector<8x128xf32>
    %337 = vector.broadcast %316 : vector<1x128xf32> to vector<8x128xf32>
    %338 = arith.addf %336, %337 : vector<8x128xf32>
    %339 = arith.truncf %338 : vector<8x128xf32> to vector<8x128xbf16>
    %c1_132 = arith.constant 1 : index
    %c0_133 = arith.constant 0 : index
    %c0_134 = arith.constant 0 : index
    %340 = vector.load %arg9[%c1_132, %c0_133, %c0_134] : memref<2x128x512xbf16, #tpu.memory_space<vmem>>, vector<1x128x512xbf16>
    %341 = vector.shape_cast %340 : vector<1x128x512xbf16> to vector<128x512xbf16>
    %cst_135 = arith.constant dense<0.000000e+00> : vector<8x512xf32>
    %342 = tpu.matmul %339, %341, %cst_135 {dimension_numbers = #tpu.dot_dimension_numbers<[1], [0], [0], [1], [0, 0, 1, 1], [], []>} : vector<8x128xbf16>, vector<128x512xbf16>, vector<8x512xf32> -> vector<8x512xf32>
    %343 = arith.truncf %342 : vector<8x512xf32> to vector<8x512xbf16>
    %c1_136 = arith.constant 1 : index
    %c0_137 = arith.constant 0 : index
    %c0_138 = arith.constant 0 : index
    %344 = vector.load %arg10[%c1_136, %c0_137, %c0_138] : memref<2x1x512xbf16, #tpu.memory_space<vmem>>, vector<1x1x512xbf16>
    %345 = vector.shape_cast %344 : vector<1x1x512xbf16> to vector<1x512xbf16>
    %346 = vector.broadcast %345 : vector<1x512xbf16> to vector<8x512xbf16>
    %347 = arith.addf %343, %346 : vector<8x512xbf16>
    %cst_139 = arith.constant 0.000000e+00 : bf16
    %348 = vector.broadcast %cst_139 : bf16 to vector<8x512xbf16>
    %349 = arith.maximumf %347, %348 : vector<8x512xbf16>
    %c1_140 = arith.constant 1 : index
    %c0_141 = arith.constant 0 : index
    %c0_142 = arith.constant 0 : index
    %350 = vector.load %arg11[%c1_140, %c0_141, %c0_142] : memref<2x512x128xbf16, #tpu.memory_space<vmem>>, vector<1x512x128xbf16>
    %351 = vector.shape_cast %350 : vector<1x512x128xbf16> to vector<512x128xbf16>
    %cst_143 = arith.constant dense<0.000000e+00> : vector<8x128xf32>
    %352 = tpu.matmul %349, %351, %cst_143 {dimension_numbers = #tpu.dot_dimension_numbers<[1], [0], [0], [1], [0, 0, 1, 1], [], []>} : vector<8x512xbf16>, vector<512x128xbf16>, vector<8x128xf32> -> vector<8x128xf32>
    %c1_144 = arith.constant 1 : index
    %c0_145 = arith.constant 0 : index
    %c0_146 = arith.constant 0 : index
    %353 = vector.load %arg12[%c1_144, %c0_145, %c0_146] : memref<2x1x128xf32, #tpu.memory_space<vmem>>, vector<1x1x128xf32>
    %354 = vector.shape_cast %353 : vector<1x1x128xf32> to vector<1x128xf32>
    %355 = vector.broadcast %354 : vector<1x128xf32> to vector<8x128xf32>
    %356 = arith.addf %352, %355 : vector<8x128xf32>
    %357 = arith.addf %312, %356 : vector<8x128xf32>
    %c0_147 = arith.constant 0 : index
    %c0_148 = arith.constant 0 : index
    %358 = vector.load %arg13[%c0_147, %c0_148] : memref<1x128xf32, #tpu.memory_space<vmem>>, vector<1x128xf32>
    %c0_149 = arith.constant 0 : index
    %c0_150 = arith.constant 0 : index
    %359 = vector.load %arg14[%c0_149, %c0_150] : memref<1x128xf32, #tpu.memory_space<vmem>>, vector<1x128xf32>
    %cst_151 = arith.constant dense<0.000000e+00> : vector<8xf32>
    %360 = vector.multi_reduction <add>, %357, %cst_151 [1] : vector<8x128xf32> to vector<8xf32>
    %361 = vector.shape_cast %360 : vector<8xf32> to vector<8x1xf32>
    %cst_152 = arith.constant 1.280000e+02 : f32
    %362 = vector.broadcast %cst_152 : f32 to vector<8x1xf32>
    %363 = arith.divf %361, %362 : vector<8x1xf32>
    %364 = vector.broadcast %363 : vector<8x1xf32> to vector<8x128xf32>
    %365 = arith.subf %357, %364 : vector<8x128xf32>
    %366 = arith.mulf %365, %365 : vector<8x128xf32>
    %cst_153 = arith.constant dense<0.000000e+00> : vector<8xf32>
    %367 = vector.multi_reduction <add>, %366, %cst_153 [1] : vector<8x128xf32> to vector<8xf32>
    %368 = vector.shape_cast %367 : vector<8xf32> to vector<8x1xf32>
    %cst_154 = arith.constant 1.280000e+02 : f32
    %369 = vector.broadcast %cst_154 : f32 to vector<8x1xf32>
    %370 = arith.divf %368, %369 : vector<8x1xf32>
    %371 = vector.broadcast %363 : vector<8x1xf32> to vector<8x128xf32>
    %372 = arith.subf %357, %371 : vector<8x128xf32>
    %cst_155 = arith.constant 9.99999974E-6 : f32
    %373 = vector.broadcast %cst_155 : f32 to vector<8x1xf32>
    %374 = arith.addf %370, %373 : vector<8x1xf32>
    %375 = math.rsqrt %374 : vector<8x1xf32>
    %376 = vector.broadcast %375 : vector<8x1xf32> to vector<8x128xf32>
    %377 = arith.mulf %372, %376 : vector<8x128xf32>
    %378 = vector.broadcast %358 : vector<1x128xf32> to vector<8x128xf32>
    %379 = arith.mulf %377, %378 : vector<8x128xf32>
    %380 = vector.broadcast %359 : vector<1x128xf32> to vector<8x128xf32>
    %381 = arith.addf %379, %380 : vector<8x128xf32>
    %382 = arith.truncf %381 : vector<8x128xf32> to vector<8x128xbf16>
    %c0_156 = arith.constant 0 : index
    %c0_157 = arith.constant 0 : index
    %383 = vector.load %arg15[%c0_156, %c0_157] : memref<128x128xbf16, #tpu.memory_space<vmem>>, vector<128x128xbf16>
    %cst_158 = arith.constant dense<0.000000e+00> : vector<8x128xf32>
    %384 = tpu.matmul %382, %383, %cst_158 {dimension_numbers = #tpu.dot_dimension_numbers<[1], [0], [0], [1], [0, 0, 1, 1], [], []>} : vector<8x128xbf16>, vector<128x128xbf16>, vector<8x128xf32> -> vector<8x128xf32>
    %c0_159 = arith.constant 0 : index
    %c0_160 = arith.constant 0 : index
    %385 = vector.load %arg16[%c0_159, %c0_160] : memref<1x128xf32, #tpu.memory_space<vmem>>, vector<1x128xf32>
    %386 = vector.broadcast %385 : vector<1x128xf32> to vector<8x128xf32>
    %387 = arith.addf %384, %386 : vector<8x128xf32>
    %c0_161 = arith.constant 0 : index
    %c0_162 = arith.constant 0 : index
    %c0_163 = arith.constant 0 : index
    %388 = vector.load %arg17[%c0_161, %c0_162, %c0_163] : memref<1x8x128xf32, #tpu.memory_space<vmem>>, vector<1x8x128xf32>
    %389 = vector.shape_cast %388 : vector<1x8x128xf32> to vector<8x128xf32>
    %390 = vector.shape_cast %387 : vector<8x128xf32> to vector<1x8x128xf32>
    tpu.vector_store %arg17[%c0_161, %c0_162, %c0_163], %390 {strides = array<i32>} : memref<1x8x128xf32, #tpu.memory_space<vmem>>, vector<1x8x128xf32>,
    return
  }
  func.func @transform_0(%arg0: i32) -> (i32, i32, i32) {
    %c0_i32 = arith.constant 0 : i32
    %c0_i32_0 = arith.constant 0 : i32
    %c0_i32_1 = arith.constant 0 : i32
    return %arg0, %c0_i32, %c0_i32_0 : i32, i32, i32
  }
  func.func @transform_1(%arg0: i32) -> (i32, i32, i32) {
    %c0_i32 = arith.constant 0 : i32
    %c0_i32_0 = arith.constant 0 : i32
    %c0_i32_1 = arith.constant 0 : i32
    %c0_i32_2 = arith.constant 0 : i32
    return %c0_i32, %c0_i32_0, %c0_i32_1 : i32, i32, i32
  }
  func.func @transform_2(%arg0: i32) -> (i32, i32, i32) {
    %c0_i32 = arith.constant 0 : i32
    %c0_i32_0 = arith.constant 0 : i32
    %c0_i32_1 = arith.constant 0 : i32
    %c0_i32_2 = arith.constant 0 : i32
    return %c0_i32, %c0_i32_0, %c0_i32_1 : i32, i32, i32
  }
  func.func @transform_3(%arg0: i32) -> (i32, i32, i32) {
    %c0_i32 = arith.constant 0 : i32
    %c0_i32_0 = arith.constant 0 : i32
    %c0_i32_1 = arith.constant 0 : i32
    %c0_i32_2 = arith.constant 0 : i32
    return %c0_i32, %c0_i32_0, %c0_i32_1 : i32, i32, i32
  }
  func.func @transform_4(%arg0: i32) -> (i32, i32, i32) {
    %c0_i32 = arith.constant 0 : i32
    %c0_i32_0 = arith.constant 0 : i32
    %c0_i32_1 = arith.constant 0 : i32
    %c0_i32_2 = arith.constant 0 : i32
    return %c0_i32, %c0_i32_0, %c0_i32_1 : i32, i32, i32
  }
  func.func @transform_5(%arg0: i32) -> (i32, i32, i32) {
    %c0_i32 = arith.constant 0 : i32
    %c0_i32_0 = arith.constant 0 : i32
    %c0_i32_1 = arith.constant 0 : i32
    %c0_i32_2 = arith.constant 0 : i32
    return %c0_i32, %c0_i32_0, %c0_i32_1 : i32, i32, i32
  }
  func.func @transform_6(%arg0: i32) -> (i32, i32, i32) {
    %c0_i32 = arith.constant 0 : i32
    %c0_i32_0 = arith.constant 0 : i32
    %c0_i32_1 = arith.constant 0 : i32
    %c0_i32_2 = arith.constant 0 : i32
    return %c0_i32, %c0_i32_0, %c0_i32_1 : i32, i32, i32
  }
  func.func @transform_7(%arg0: i32) -> (i32, i32, i32) {
    %c0_i32 = arith.constant 0 : i32
    %c0_i32_0 = arith.constant 0 : i32
    %c0_i32_1 = arith.constant 0 : i32
    %c0_i32_2 = arith.constant 0 : i32
    return %c0_i32, %c0_i32_0, %c0_i32_1 : i32, i32, i32
  }
  func.func @transform_8(%arg0: i32) -> (i32, i32, i32) {
    %c0_i32 = arith.constant 0 : i32
    %c0_i32_0 = arith.constant 0 : i32
    %c0_i32_1 = arith.constant 0 : i32
    %c0_i32_2 = arith.constant 0 : i32
    return %c0_i32, %c0_i32_0, %c0_i32_1 : i32, i32, i32
  }
  func.func @transform_9(%arg0: i32) -> (i32, i32, i32) {
    %c0_i32 = arith.constant 0 : i32
    %c0_i32_0 = arith.constant 0 : i32
    %c0_i32_1 = arith.constant 0 : i32
    %c0_i32_2 = arith.constant 0 : i32
    return %c0_i32, %c0_i32_0, %c0_i32_1 : i32, i32, i32
  }
  func.func @transform_10(%arg0: i32) -> (i32, i32, i32) {
    %c0_i32 = arith.constant 0 : i32
    %c0_i32_0 = arith.constant 0 : i32
    %c0_i32_1 = arith.constant 0 : i32
    %c0_i32_2 = arith.constant 0 : i32
    return %c0_i32, %c0_i32_0, %c0_i32_1 : i32, i32, i32
  }
  func.func @transform_11(%arg0: i32) -> (i32, i32, i32) {
    %c0_i32 = arith.constant 0 : i32
    %c0_i32_0 = arith.constant 0 : i32
    %c0_i32_1 = arith.constant 0 : i32
    %c0_i32_2 = arith.constant 0 : i32
    return %c0_i32, %c0_i32_0, %c0_i32_1 : i32, i32, i32
  }
  func.func @transform_12(%arg0: i32) -> (i32, i32) {
    %c0_i32 = arith.constant 0 : i32
    %c0_i32_0 = arith.constant 0 : i32
    %c0_i32_1 = arith.constant 0 : i32
    return %c0_i32, %c0_i32_0 : i32, i32
  }
  func.func @transform_13(%arg0: i32) -> (i32, i32) {
    %c0_i32 = arith.constant 0 : i32
    %c0_i32_0 = arith.constant 0 : i32
    %c0_i32_1 = arith.constant 0 : i32
    return %c0_i32, %c0_i32_0 : i32, i32
  }
  func.func @transform_14(%arg0: i32) -> (i32, i32) {
    %c0_i32 = arith.constant 0 : i32
    %c0_i32_0 = arith.constant 0 : i32
    %c0_i32_1 = arith.constant 0 : i32
    return %c0_i32, %c0_i32_0 : i32, i32
  }
  func.func @transform_15(%arg0: i32) -> (i32, i32) {
    %c0_i32 = arith.constant 0 : i32
    %c0_i32_0 = arith.constant 0 : i32
    %c0_i32_1 = arith.constant 0 : i32
    return %c0_i32, %c0_i32_0 : i32, i32
  }
  func.func @transform_16(%arg0: i32) -> (i32, i32, i32) {
    %c0_i32 = arith.constant 0 : i32
    %c0_i32_0 = arith.constant 0 : i32
    %c0_i32_1 = arith.constant 0 : i32
    return %arg0, %c0_i32, %c0_i32_0 : i32, i32, i32
  }
}

</mosaic_0001>

<llo_original>
// kernel: tpu_custom_call.1
$region0: #{tpu_custom_call.1}
  #allocation0 [shape = 'u32[]', space=smem, size = 0x4, offset = 0x4, fixed_abs, tag = 'smem constant byte address 0x4 - core index']
  #allocation1 [shape = 'u32[144,128]{1,0:T(1,128)}', space=vmem, size = 0x12000, scoped, tag = 'internal scratch']
  #allocation2 [shape = 'bf16[8,128]{1,0:T(8,128)(2,1)}', space=vmem, size = 0x800, scoped, tag = 'scratch operand']
  %s0 = inlined_call_operand.hbm [shape: f32[2,8,128], index: 0, kind: input, shape index: {}]
  %s1 = inlined_call_operand.vmem [shape: f32[2,1,128], index: 1, kind: input, shape index: {}]
  %s2 = inlined_call_operand.vmem [shape: f32[2,1,128], index: 2, kind: input, shape index: {}]
  %s3 = inlined_call_operand.hbm [shape: bf16[2,128,384], index: 3, kind: input, shape index: {}]
  %s4 = inlined_call_operand.hbm [shape: bf16[2,128,128], index: 4, kind: input, shape index: {}]
  %s5 = inlined_call_operand.vmem [shape: f32[2,1,128], index: 5, kind: input, shape index: {}]
  %s6 = inlined_call_operand.vmem [shape: f32[2,1,128], index: 6, kind: input, shape index: {}]
  %s7 = inlined_call_operand.vmem [shape: f32[2,1,128], index: 7, kind: input, shape index: {}]
  %s8 = inlined_call_operand.hbm [shape: bf16[2,128,512], index: 8, kind: input, shape index: {}]
  %s9 = inlined_call_operand.vmem [shape: bf16[2,1,512], index: 9, kind: input, shape index: {}]
  %s10 = inlined_call_operand.hbm [shape: bf16[2,512,128], index: 10, kind: input, shape index: {}]
  %s11 = inlined_call_operand.vmem [shape: f32[2,1,128], index: 11, kind: input, shape index: {}]
  %s12 = inlined_call_operand.vmem [shape: f32[1,128], index: 12, kind: input, shape index: {}]
  %s13 = inlined_call_operand.vmem [shape: f32[1,128], index: 13, kind: input, shape index: {}]
  %s14 = inlined_call_operand.hbm [shape: bf16[128,128], index: 14, kind: input, shape index: {}]
  %s15 = inlined_call_operand.vmem [shape: f32[1,128], index: 15, kind: input, shape index: {}]
  %s16 = inlined_call_operand.hbm [shape: f32[2,8,128], index: 16, kind: output, shape index: {}]
  %s17 = sld [smem:[#allocation0]]
  $region121: #{tpu_custom_call.1} parent=0
    _
  %s19 = ssub.s32 1, %s17
  %s20 = scalar_select 0, %s19, %s17
  $region1: #{tpu_custom_call.1} parent=0
    #allocation3 [shape = 'u8[8192]{0}', space=vmem, size = 0x2000, scoped, tag = 'input window, operand 0']
    #allocation4 [shape = 's32[2]{0}', space=sflag, size = 0x8, scoped, tag = 'scoped memory for tpu_custom_call.1']
    #allocation5 [shape = 's32[2]{0}', space=sflag, size = 0x8, scoped, tag = 'scoped memory for tpu_custom_call.1']
    #allocation6 [shape = 'u8[196608]{0}', space=vmem, size = 0x30000, scoped, tag = 'input window, operand 3, single buffered']
    #allocation7 [shape = 's32[1]{0}', space=sflag, size = 0x4, scoped, tag = 'scoped memory for tpu_custom_call.1']
    #allocation8 [shape = 'u8[65536]{0}', space=vmem, size = 0x10000, scoped, tag = 'input window, operand 4, single buffered']
    #allocation9 [shape = 'u8[262144]{0}', space=vmem, size = 0x40000, scoped, tag = 'input window, operand 8, single buffered']
    #allocation10 [shape = 's32[1]{0}', space=sflag, size = 0x4, scoped, tag = 'scoped memory for tpu_custom_call.1']
    #allocation11 [shape = 'u8[262144]{0}', space=vmem, size = 0x40000, scoped, tag = 'input window, operand 10, single buffered']
    #allocation12 [shape = 'u8[32768]{0}', space=vmem, size = 0x8000, scoped, tag = 'input window, operand 14, single buffered']
    #allocation13 [shape = 's32[1]{0}', space=sflag, size = 0x4, scoped, tag = 'scoped memory for tpu_custom_call.1']
    #allocation14 [shape = 'u8[8192]{0}', space=vmem, size = 0x2000, scoped, tag = 'output window, operand 0']
    %21 = vsyncpa [#allocation4], 0
    %s22 = scalar_lea.sflag [#allocation4], 1
    %23 = vsyncpa %s22, 0
    %24 = vsyncpa [#allocation7], 0
    %25 = vsyncpa [#allocation10], 0
    %26 = vsyncpa [#allocation13], 0
    %27 = vsyncpa [#allocation5], 0
    %s28 = scalar_lea.sflag [#allocation5], 1
    %29 = vsyncpa %s28, 0
    loop: start=0, step=1, limit=4
    $region2: #{tpu_custom_call.1} parent=1 // loop_pre_header
      _
    $region3: #{tpu_custom_call.1} parent=1 // loop_header
      %s31 = sphi 0, %s35
      %p32 = scmp.ge.s32.totalorder %s31, 4
      %s41 = sphi 0, %s43
      %s44 = sphi 0, %s41
      %s45 = sphi 0, %s44
      %s61 = sphi 0, %s45
      %s65 = sphi 0, %s65
      %s67 = sphi 0, %s65
      %s68 = sphi 0, %s67
      %s82 = sphi 0, %s68
      %s86 = sphi 0, %s86
      %s88 = sphi 0, %s86
      %s89 = sphi 0, %s88
      %s103 = sphi 0, %s89
      %s107 = sphi 0, %s107
      %s109 = sphi 0, %s107
      %s110 = sphi 0, %s109
      %s124 = sphi 0, %s110
      %s128 = sphi 0, %s128
      %s130 = sphi 0, %s128
      %s131 = sphi 0, %s130
      %s145 = sphi 0, %s131
      %s149 = sphi 0, %s149
      %s151 = sphi 0, %s149
      %s152 = sphi 0, %s151
      %s166 = sphi 0, %s152
      %s170 = sphi 0, %s170
      %s172 = sphi 0, %s170
      %s173 = sphi 0, %s172
      %s187 = sphi 0, %s173
      %s191 = sphi 0, %s191
      %s193 = sphi 0, %s191
      %s194 = sphi 0, %s193
      %s208 = sphi 0, %s194
      %s212 = sphi 0, %s212
      %s214 = sphi 0, %s212
      %s215 = sphi 0, %s214
      %s229 = sphi 0, %s215
      %s233 = sphi 0, %s233
      %s235 = sphi 0, %s233
      %s236 = sphi 0, %s235
      %s250 = sphi 0, %s236
      %s254 = sphi 0, %s254
      %s256 = sphi 0, %s254
      %s257 = sphi 0, %s256
      %s271 = sphi 0, %s257
      %s275 = sphi 0, %s275
      %s277 = sphi 0, %s275
      %s278 = sphi 0, %s277
      %s292 = sphi 0, %s278
      %s296 = sphi 0, %s296
      %s298 = sphi 0, %s296
      %s299 = sphi 0, %s298
      %s313 = sphi 0, %s299
      %s317 = sphi 0, %s317
      %s319 = sphi 0, %s317
      %s320 = sphi 0, %s319
      %s334 = sphi 0, %s320
      %s338 = sphi 0, %s338
      %s340 = sphi 0, %s338
      %s341 = sphi 0, %s340
      %s355 = sphi 0, %s341
      %s359 = sphi 0, %s359
      %s361 = sphi 0, %s359
      %s362 = sphi 0, %s361
      %s376 = sphi 0, %s362
      %s382 = sphi 0, %s384
      %s385 = sphi 0, %s382
      %s386 = sphi 0, %s385
      %s402 = sphi 0, %s386
    $region4: #{tpu_custom_call.1} parent=1 // loop_header_branch
      %34 = sbr.rel (%p32) target = $region8
    $region5: #{tpu_custom_call.1} parent=1 // loop_body
      %s36 = ssub.s32 %s31, 1
      %s37 = ssub.s32 %s31, 2
      %s38 = sadd.s32 %s31, 1
      %s39 = ssub.s32 %s31, %s38
      %p40 = scmp.eq.s32.totalorder %s39, 0
      %s42 = sadd.s32 %s41, 1
      %s43 = scalar_select %p40, %s41, %s42
      %p46 = pneg %p40
      %p47 = scmp.eq.s32.totalorder %s31, 1
      %p48 = por %p46, %p47
      %p49 = scmp.ne.s32.totalorder %s41, %s44
      %p50 = scmp.eq.s32.totalorder %s31, 0
      %p51 = por %p49, %p50
      %p52 = scmp.ne.s32.totalorder %s41, %s44
      %p53 = scmp.eq.s32.totalorder %s36, 1
      %p54 = por %p52, %p53
      %p55 = scmp.ne.s32.totalorder %s44, %s45
      %p56 = scmp.eq.s32.totalorder %s36, 0
      %p57 = por %p55, %p56
      %p58 = scmp.ne.s32.totalorder %s44, %s45
      %p59 = scmp.eq.s32.totalorder %s37, 1
      %p60 = por %p58, %p59
      %p62 = scmp.ne.s32.totalorder %s45, %s61
      %p63 = scmp.eq.s32.totalorder %s37, 0
      %p64 = por %p62, %p63
      %s66 = sadd.s32 %s65, 1
      %p69 = scmp.eq.s32.totalorder %s31, 1
      %p70 = scmp.ne.s32.totalorder %s65, %s67
      %p71 = scmp.eq.s32.totalorder %s31, 0
      %p72 = por %p70, %p71
      %p73 = scmp.ne.s32.totalorder %s65, %s67
      %p74 = scmp.eq.s32.totalorder %s36, 1
      %p75 = por %p73, %p74
      %p76 = scmp.ne.s32.totalorder %s67, %s68
      %p77 = scmp.eq.s32.totalorder %s36, 0
      %p78 = por %p76, %p77
      %p79 = scmp.ne.s32.totalorder %s67, %s68
      %p80 = scmp.eq.s32.totalorder %s37, 1
      %p81 = por %p79, %p80
      %p83 = scmp.ne.s32.totalorder %s68, %s82
      %p84 = scmp.eq.s32.totalorder %s37, 0
      %p85 = por %p83, %p84
      %s87 = sadd.s32 %s86, 1
      %p90 = scmp.eq.s32.totalorder %s31, 1
      %p91 = scmp.ne.s32.totalorder %s86, %s88
      %p92 = scmp.eq.s32.totalorder %s31, 0
      %p93 = por %p91, %p92
      %p94 = scmp.ne.s32.totalorder %s86, %s88
      %p95 = scmp.eq.s32.totalorder %s36, 1
      %p96 = por %p94, %p95
      %p97 = scmp.ne.s32.totalorder %s88, %s89
      %p98 = scmp.eq.s32.totalorder %s36, 0
      %p99 = por %p97, %p98
      %p100 = scmp.ne.s32.totalorder %s88, %s89
      %p101 = scmp.eq.s32.totalorder %s37, 1
      %p102 = por %p100, %p101
      %p104 = scmp.ne.s32.totalorder %s89, %s103
      %p105 = scmp.eq.s32.totalorder %s37, 0
      %p106 = por %p104, %p105
      %s108 = sadd.s32 %s107, 1
      %p111 = scmp.eq.s32.totalorder %s31, 1
      %p112 = scmp.ne.s32.totalorder %s107, %s109
      %p113 = scmp.eq.s32.totalorder %s31, 0
      %p114 = por %p112, %p113
      %p115 = scmp.ne.s32.totalorder %s107, %s109
      %p116 = scmp.eq.s32.totalorder %s36, 1
      %p117 = por %p115, %p116
      %p118 = scmp.ne.s32.totalorder %s109, %s110
      %p119 = scmp.eq.s32.totalorder %s36, 0
      %p120 = por %p118, %p119
      %p121 = scmp.ne.s32.totalorder %s109, %s110
      %p122 = scmp.eq.s32.totalorder %s37, 1
      %p123 = por %p121, %p122
      %p125 = scmp.ne.s32.totalorder %s110, %s124
      %p126 = scmp.eq.s32.totalorder %s37, 0
      %p127 = por %p125, %p126
      %s129 = sadd.s32 %s128, 1
      %p132 = scmp.eq.s32.totalorder %s31, 1
      %p133 = scmp.ne.s32.totalorder %s128, %s130
      %p134 = scmp.eq.s32.totalorder %s31, 0
      %p135 = por %p133, %p134
      %p136 = scmp.ne.s32.totalorder %s128, %s130
      %p137 = scmp.eq.s32.totalorder %s36, 1
      %p138 = por %p136, %p137
      %p139 = scmp.ne.s32.totalorder %s130, %s131
      %p140 = scmp.eq.s32.totalorder %s36, 0
      %p141 = por %p139, %p140
      %p142 = scmp.ne.s32.totalorder %s130, %s131
      %p143 = scmp.eq.s32.totalorder %s37, 1
      %p144 = por %p142, %p143
      %p146 = scmp.ne.s32.totalorder %s131, %s145
      %p147 = scmp.eq.s32.totalorder %s37, 0
      %p148 = por %p146, %p147
      %s150 = sadd.s32 %s149, 1
      %p153 = scmp.eq.s32.totalorder %s31, 1
      %p154 = scmp.ne.s32.totalorder %s149, %s151
      %p155 = scmp.eq.s32.totalorder %s31, 0
      %p156 = por %p154, %p155
      %p157 = scmp.ne.s32.totalorder %s149, %s151
      %p158 = scmp.eq.s32.totalorder %s36, 1
      %p159 = por %p157, %p158
      %p160 = scmp.ne.s32.totalorder %s151, %s152
      %p161 = scmp.eq.s32.totalorder %s36, 0
      %p162 = por %p160, %p161
      %p163 = scmp.ne.s32.totalorder %s151, %s152
      %p164 = scmp.eq.s32.totalorder %s37, 1
      %p165 = por %p163, %p164
      %p167 = scmp.ne.s32.totalorder %s152, %s166
      %p168 = scmp.eq.s32.totalorder %s37, 0
      %p169 = por %p167, %p168
      %s171 = sadd.s32 %s170, 1
      %p174 = scmp.eq.s32.totalorder %s31, 1
      %p175 = scmp.ne.s32.totalorder %s170, %s172
      %p176 = scmp.eq.s32.totalorder %s31, 0
      %p177 = por %p175, %p176
      %p178 = scmp.ne.s32.totalorder %s170, %s172
      %p179 = scmp.eq.s32.totalorder %s36, 1
      %p180 = por %p178, %p179
      %p181 = scmp.ne.s32.totalorder %s172, %s173
      %p182 = scmp.eq.s32.totalorder %s36, 0
      %p183 = por %p181, %p182
      %p184 = scmp.ne.s32.totalorder %s172, %s173
      %p185 = scmp.eq.s32.totalorder %s37, 1
      %p186 = por %p184, %p185
      %p188 = scmp.ne.s32.totalorder %s173, %s187
      %p189 = scmp.eq.s32.totalorder %s37, 0
      %p190 = por %p188, %p189
      %s192 = sadd.s32 %s191, 1
      %p195 = scmp.eq.s32.totalorder %s31, 1
      %p196 = scmp.ne.s32.totalorder %s191, %s193
      %p197 = scmp.eq.s32.totalorder %s31, 0
      %p198 = por %p196, %p197
      %p199 = scmp.ne.s32.totalorder %s191, %s193
      %p200 = scmp.eq.s32.totalorder %s36, 1
      %p201 = por %p199, %p200
      %p202 = scmp.ne.s32.totalorder %s193, %s194
      %p203 = scmp.eq.s32.totalorder %s36, 0
      %p204 = por %p202, %p203
      %p205 = scmp.ne.s32.totalorder %s193, %s194
      %p206 = scmp.eq.s32.totalorder %s37, 1
      %p207 = por %p205, %p206
      %p209 = scmp.ne.s32.totalorder %s194, %s208
      %p210 = scmp.eq.s32.totalorder %s37, 0
      %p211 = por %p209, %p210
      %s213 = sadd.s32 %s212, 1
      %p216 = scmp.eq.s32.totalorder %s31, 1
      %p217 = scmp.ne.s32.totalorder %s212, %s214
      %p218 = scmp.eq.s32.totalorder %s31, 0
      %p219 = por %p217, %p218
      %p220 = scmp.ne.s32.totalorder %s212, %s214
      %p221 = scmp.eq.s32.totalorder %s36, 1
      %p222 = por %p220, %p221
      %p223 = scmp.ne.s32.totalorder %s214, %s215
      %p224 = scmp.eq.s32.totalorder %s36, 0
      %p225 = por %p223, %p224
      %p226 = scmp.ne.s32.totalorder %s214, %s215
      %p227 = scmp.eq.s32.totalorder %s37, 1
      %p228 = por %p226, %p227
      %p230 = scmp.ne.s32.totalorder %s215, %s229
      %p231 = scmp.eq.s32.totalorder %s37, 0
      %p232 = por %p230, %p231
      %s234 = sadd.s32 %s233, 1
      %p237 = scmp.eq.s32.totalorder %s31, 1
      %p238 = scmp.ne.s32.totalorder %s233, %s235
      %p239 = scmp.eq.s32.totalorder %s31, 0
      %p240 = por %p238, %p239
      %p241 = scmp.ne.s32.totalorder %s233, %s235
      %p242 = scmp.eq.s32.totalorder %s36, 1
      %p243 = por %p241, %p242
      %p244 = scmp.ne.s32.totalorder %s235, %s236
      %p245 = scmp.eq.s32.totalorder %s36, 0
      %p246 = por %p244, %p245
      %p247 = scmp.ne.s32.totalorder %s235, %s236
      %p248 = scmp.eq.s32.totalorder %s37, 1
      %p249 = por %p247, %p248
      %p251 = scmp.ne.s32.totalorder %s236, %s250
      %p252 = scmp.eq.s32.totalorder %s37, 0
      %p253 = por %p251, %p252
      %s255 = sadd.s32 %s254, 1
      %p258 = scmp.eq.s32.totalorder %s31, 1
      %p259 = scmp.ne.s32.totalorder %s254, %s256
      %p260 = scmp.eq.s32.totalorder %s31, 0
      %p261 = por %p259, %p260
      %p262 = scmp.ne.s32.totalorder %s254, %s256
      %p263 = scmp.eq.s32.totalorder %s36, 1
      %p264 = por %p262, %p263
      %p265 = scmp.ne.s32.totalorder %s256, %s257
      %p266 = scmp.eq.s32.totalorder %s36, 0
      %p267 = por %p265, %p266
      %p268 = scmp.ne.s32.totalorder %s256, %s257
      %p269 = scmp.eq.s32.totalorder %s37, 1
      %p270 = por %p268, %p269
      %p272 = scmp.ne.s32.totalorder %s257, %s271
      %p273 = scmp.eq.s32.totalorder %s37, 0
      %p274 = por %p272, %p273
      %s276 = sadd.s32 %s275, 1
      %p279 = scmp.eq.s32.totalorder %s31, 1
      %p280 = scmp.ne.s32.totalorder %s275, %s277
      %p281 = scmp.eq.s32.totalorder %s31, 0
      %p282 = por %p280, %p281
      %p283 = scmp.ne.s32.totalorder %s275, %s277
      %p284 = scmp.eq.s32.totalorder %s36, 1
      %p285 = por %p283, %p284
      %p286 = scmp.ne.s32.totalorder %s277, %s278
      %p287 = scmp.eq.s32.totalorder %s36, 0
      %p288 = por %p286, %p287
      %p289 = scmp.ne.s32.totalorder %s277, %s278
      %p290 = scmp.eq.s32.totalorder %s37, 1
      %p291 = por %p289, %p290
      %p293 = scmp.ne.s32.totalorder %s278, %s292
      %p294 = scmp.eq.s32.totalorder %s37, 0
      %p295 = por %p293, %p294
      %s297 = sadd.s32 %s296, 1
      %p300 = scmp.eq.s32.totalorder %s31, 1
      %p301 = scmp.ne.s32.totalorder %s296, %s298
      %p302 = scmp.eq.s32.totalorder %s31, 0
      %p303 = por %p301, %p302
      %p304 = scmp.ne.s32.totalorder %s296, %s298
      %p305 = scmp.eq.s32.totalorder %s36, 1
      %p306 = por %p304, %p305
      %p307 = scmp.ne.s32.totalorder %s298, %s299
      %p308 = scmp.eq.s32.totalorder %s36, 0
      %p309 = por %p307, %p308
      %p310 = scmp.ne.s32.totalorder %s298, %s299
      %p311 = scmp.eq.s32.totalorder %s37, 1
      %p312 = por %p310, %p311
      %p314 = scmp.ne.s32.totalorder %s299, %s313
      %p315 = scmp.eq.s32.totalorder %s37, 0
      %p316 = por %p314, %p315
      %s318 = sadd.s32 %s317, 1
      %p321 = scmp.eq.s32.totalorder %s31, 1
      %p322 = scmp.ne.s32.totalorder %s317, %s319
      %p323 = scmp.eq.s32.totalorder %s31, 0
      %p324 = por %p322, %p323
      %p325 = scmp.ne.s32.totalorder %s317, %s319
      %p326 = scmp.eq.s32.totalorder %s36, 1
      %p327 = por %p325, %p326
      %p328 = scmp.ne.s32.totalorder %s319, %s320
      %p329 = scmp.eq.s32.totalorder %s36, 0
      %p330 = por %p328, %p329
      %p331 = scmp.ne.s32.totalorder %s319, %s320
      %p332 = scmp.eq.s32.totalorder %s37, 1
      %p333 = por %p331, %p332
      %p335 = scmp.ne.s32.totalorder %s320, %s334
      %p336 = scmp.eq.s32.totalorder %s37, 0
      %p337 = por %p335, %p336
      %s339 = sadd.s32 %s338, 1
      %p342 = scmp.eq.s32.totalorder %s31, 1
      %p343 = scmp.ne.s32.totalorder %s338, %s340
      %p344 = scmp.eq.s32.totalorder %s31, 0
      %p345 = por %p343, %p344
      %p346 = scmp.ne.s32.totalorder %s338, %s340
      %p347 = scmp.eq.s32.totalorder %s36, 1
      %p348 = por %p346, %p347
      %p349 = scmp.ne.s32.totalorder %s340, %s341
      %p350 = scmp.eq.s32.totalorder %s36, 0
      %p351 = por %p349, %p350
      %p352 = scmp.ne.s32.totalorder %s340, %s341
      %p353 = scmp.eq.s32.totalorder %s37, 1
      %p354 = por %p352, %p353
      %p356 = scmp.ne.s32.totalorder %s341, %s355
      %p357 = scmp.eq.s32.totalorder %s37, 0
      %p358 = por %p356, %p357
      %s360 = sadd.s32 %s359, 1
      %p363 = scmp.eq.s32.totalorder %s31, 1
      %p364 = scmp.ne.s32.totalorder %s359, %s361
      %p365 = scmp.eq.s32.totalorder %s31, 0
      %p366 = por %p364, %p365
      %p367 = scmp.ne.s32.totalorder %s359, %s361
      %p368 = scmp.eq.s32.totalorder %s36, 1
      %p369 = por %p367, %p368
      %p370 = scmp.ne.s32.totalorder %s361, %s362
      %p371 = scmp.eq.s32.totalorder %s36, 0
      %p372 = por %p370, %p371
      %p373 = scmp.ne.s32.totalorder %s361, %s362
      %p374 = scmp.eq.s32.totalorder %s37, 1
      %p375 = por %p373, %p374
      %p377 = scmp.ne.s32.totalorder %s362, %s376
      %p378 = scmp.eq.s32.totalorder %s37, 0
      %p379 = por %p377, %p378
      %s380 = ssub.s32 %s31, %s38
      %p381 = scmp.eq.s32.totalorder %s380, 0
      %s383 = sadd.s32 %s382, 1
      %s384 = scalar_select %p381, %s382, %s383
      %p387 = pneg %p381
      %p388 = scmp.eq.s32.totalorder %s31, 1
      %p389 = por %p387, %p388
      %p390 = scmp.ne.s32.totalorder %s382, %s385
      %p391 = scmp.eq.s32.totalorder %s31, 0
      %p392 = por %p390, %p391
      %p393 = scmp.ne.s32.totalorder %s382, %s385
      %p394 = scmp.eq.s32.totalorder %s36, 1
      %p395 = por %p393, %p394
      %p396 = scmp.ne.s32.totalorder %s385, %s386
      %p397 = scmp.eq.s32.totalorder %s36, 0
      %p398 = por %p396, %p397
      %p399 = scmp.ne.s32.totalorder %s385, %s386
      %p400 = scmp.eq.s32.totalorder %s37, 1
      %p401 = por %p399, %p400
      %p403 = scmp.ne.s32.totalorder %s386, %s402
      %p404 = scmp.eq.s32.totalorder %s37, 0
      %p405 = por %p403, %p404
      %p406 = scmp.le.s32.totalorder 1, %s31
      %p407 = scmp.lt.s32.totalorder %s31, 3
      %p408 = pnand %p406, %p407
      %p409 = pneg %p408
      // Predicated region
      $region9: #{tpu_custom_call.1} parent=5 // pred_check
        _
      $region10: #{tpu_custom_call.1} parent=5 // pred_check_branch
        %411 = sbr.rel (%p408) target = $region12
      $region11: #{tpu_custom_call.1} parent=5 // pred_region
        %s412 = ssub.s32 %s31, 1
        // Predicated region
        $region13: #{tpu_custom_call.1} parent=11 // pred_check
          %p413 = pneg %p78
        $region14: #{tpu_custom_call.1} parent=11 // pred_check_branch
          %415 = sbr.rel (%p413) target = $region16
        $region15: #{tpu_custom_call.1} parent=11 // pred_region
          _
        $region16: #{tpu_custom_call.1} parent=11 // pred_fallthru
          _
        // Predicated region
        $region17: #{tpu_custom_call.1} parent=11 // pred_check
          %p416 = pneg %p99
        $region18: #{tpu_custom_call.1} parent=11 // pred_check_branch
          %418 = sbr.rel (%p416) target = $region20
        $region19: #{tpu_custom_call.1} parent=11 // pred_region
          _
        $region20: #{tpu_custom_call.1} parent=11 // pred_fallthru
          _
        // Predicated region
        $region21: #{tpu_custom_call.1} parent=11 // pred_check
          %p419 = pneg %p120
        $region22: #{tpu_custom_call.1} parent=11 // pred_check_branch
          %421 = sbr.rel (%p419) target = $region24
        $region23: #{tpu_custom_call.1} parent=11 // pred_region
          %s423 = ssub.s32 6144, 6144
          %424 = vsyncadd [#allocation7], %s423
          %s425 = sshll.u32 [#allocation6], 4
          %s426 = int_to_ptr.vmem [resolvable:$true] %s425
          %431 = dma.hbm_to_vmem [thread:$0]  %s3, 6144, %s426, [#allocation7], 192, 192, 12
        $region24: #{tpu_custom_call.1} parent=11 // pred_fallthru
          _
        // Predicated region
        $region25: #{tpu_custom_call.1} parent=11 // pred_check
          %p432 = pneg %p141
        $region26: #{tpu_custom_call.1} parent=11 // pred_check_branch
          %434 = sbr.rel (%p432) target = $region28
        $region27: #{tpu_custom_call.1} parent=11 // pred_region
          %s436 = ssub.s32 2048, 2048
          %437 = vsyncadd [#allocation7], %s436
          %s438 = sshll.u32 [#allocation8], 4
          %s439 = int_to_ptr.vmem [resolvable:$true] %s438
          %444 = dma.hbm_to_vmem [thread:$0]  %s4, 2048, %s439, [#allocation7], 64, 64, 4
        $region28: #{tpu_custom_call.1} parent=11 // pred_fallthru
          _
        // Predicated region
        $region29: #{tpu_custom_call.1} parent=11 // pred_check
          %p445 = pneg %p162
        $region30: #{tpu_custom_call.1} parent=11 // pred_check_branch
          %447 = sbr.rel (%p445) target = $region32
        $region31: #{tpu_custom_call.1} parent=11 // pred_region
          _
        $region32: #{tpu_custom_call.1} parent=11 // pred_fallthru
          _
        // Predicated region
        $region33: #{tpu_custom_call.1} parent=11 // pred_check
          %p448 = pneg %p183
        $region34: #{tpu_custom_call.1} parent=11 // pred_check_branch
          %450 = sbr.rel (%p448) target = $region36
        $region35: #{tpu_custom_call.1} parent=11 // pred_region
          _
        $region36: #{tpu_custom_call.1} parent=11 // pred_fallthru
          _
        // Predicated region
        $region37: #{tpu_custom_call.1} parent=11 // pred_check
          %p451 = pneg %p204
        $region38: #{tpu_custom_call.1} parent=11 // pred_check_branch
          %453 = sbr.rel (%p451) target = $region40
        $region39: #{tpu_custom_call.1} parent=11 // pred_region
          _
        $region40: #{tpu_custom_call.1} parent=11 // pred_fallthru
          _
        // Predicated region
        $region41: #{tpu_custom_call.1} parent=11 // pred_check
          %p454 = pneg %p225
        $region42: #{tpu_custom_call.1} parent=11 // pred_check_branch
          %456 = sbr.rel (%p454) target = $region44
        $region43: #{tpu_custom_call.1} parent=11 // pred_region
          %s458 = ssub.s32 8192, 8192
          %459 = vsyncadd [#allocation10], %s458
          %s460 = sshll.u32 [#allocation9], 4
          %s461 = int_to_ptr.vmem [resolvable:$true] %s460
          %466 = dma.hbm_to_vmem [thread:$0]  %s8, 8192, %s461, [#allocation10], 256, 256, 16
        $region44: #{tpu_custom_call.1} parent=11 // pred_fallthru
          _
        // Predicated region
        $region45: #{tpu_custom_call.1} parent=11 // pred_check
          %p467 = pneg %p246
        $region46: #{tpu_custom_call.1} parent=11 // pred_check_branch
          %469 = sbr.rel (%p467) target = $region48
        $region47: #{tpu_custom_call.1} parent=11 // pred_region
          _
        $region48: #{tpu_custom_call.1} parent=11 // pred_fallthru
          _
        // Predicated region
        $region49: #{tpu_custom_call.1} parent=11 // pred_check
          %p470 = pneg %p267
        $region50: #{tpu_custom_call.1} parent=11 // pred_check_branch
          %472 = sbr.rel (%p470) target = $region52
        $region51: #{tpu_custom_call.1} parent=11 // pred_region
          %s474 = ssub.s32 8192, 8192
          %475 = vsyncadd [#allocation10], %s474
          %s476 = sshll.u32 [#allocation11], 4
          %s477 = int_to_ptr.vmem [resolvable:$true] %s476
          %482 = dma.hbm_to_vmem [thread:$0]  %s10, 8192, %s477, [#allocation10], 64, 64, 4
        $region52: #{tpu_custom_call.1} parent=11 // pred_fallthru
          _
        // Predicated region
        $region53: #{tpu_custom_call.1} parent=11 // pred_check
          %p483 = pneg %p288
        $region54: #{tpu_custom_call.1} parent=11 // pred_check_branch
          %485 = sbr.rel (%p483) target = $region56
        $region55: #{tpu_custom_call.1} parent=11 // pred_region
          _
        $region56: #{tpu_custom_call.1} parent=11 // pred_fallthru
          _
        // Predicated region
        $region57: #{tpu_custom_call.1} parent=11 // pred_check
          %p486 = pneg %p309
        $region58: #{tpu_custom_call.1} parent=11 // pred_check_branch
          %488 = sbr.rel (%p486) target = $region60
        $region59: #{tpu_custom_call.1} parent=11 // pred_region
          _
        $region60: #{tpu_custom_call.1} parent=11 // pred_fallthru
          _
        // Predicated region
        $region61: #{tpu_custom_call.1} parent=11 // pred_check
          %p489 = pneg %p330
        $region62: #{tpu_custom_call.1} parent=11 // pred_check_branch
          %491 = sbr.rel (%p489) target = $region64
        $region63: #{tpu_custom_call.1} parent=11 // pred_region
          _
        $region64: #{tpu_custom_call.1} parent=11 // pred_fallthru
          _
        // Predicated region
        $region65: #{tpu_custom_call.1} parent=11 // pred_check
          %p492 = pneg %p351
        $region66: #{tpu_custom_call.1} parent=11 // pred_check_branch
          %494 = sbr.rel (%p492) target = $region68
        $region67: #{tpu_custom_call.1} parent=11 // pred_region
          %s496 = ssub.s32 1024, 1024
          %497 = vsyncadd [#allocation13], %s496
          %s498 = sshll.u32 [#allocation12], 4
          %s499 = int_to_ptr.vmem [resolvable:$true] %s498
          %504 = dma.hbm_to_vmem [thread:$0]  %s14, 1024, %s499, [#allocation13], 64, 64, 4
        $region68: #{tpu_custom_call.1} parent=11 // pred_fallthru
          _
        // Predicated region
        $region69: #{tpu_custom_call.1} parent=11 // pred_check
          %p505 = pneg %p372
        $region70: #{tpu_custom_call.1} parent=11 // pred_check_branch
          %507 = sbr.rel (%p505) target = $region72
        $region71: #{tpu_custom_call.1} parent=11 // pred_region
          _
        $region72: #{tpu_custom_call.1} parent=11 // pred_fallthru
          _
      $region12: #{tpu_custom_call.1} parent=5 // pred_fallthru
        _
      %p508 = scmp.lt.s32.totalorder %s31, 2
      // Predicated region
      $region73: #{tpu_custom_call.1} parent=5 // pred_check
        %p509 = pneg %p508
      $region74: #{tpu_custom_call.1} parent=5 // pred_check_branch
        %511 = sbr.rel (%p509) target = $region76
      $region75: #{tpu_custom_call.1} parent=5 // pred_region
        // Predicated region
        $region77: #{tpu_custom_call.1} parent=75 // pred_check
          %p512 = pneg %p51
        $region78: #{tpu_custom_call.1} parent=75 // pred_check_branch
          %514 = sbr.rel (%p512) target = $region80
        $region79: #{tpu_custom_call.1} parent=75 // pred_region
          %s515 = sand.u32 %s41, 1
          %s516 = scalar_lea.sflag [#allocation4], %s515
          %s517 = sand.u32 %s41, 1
          %s518 = smul.addr %s517, 8
          %s519 = scalar_lea.vmem [#allocation3], %s518
          %s521 = ssub.s32 128, 128
          %522 = vsyncadd %s516, %s521
          %s523 = smul.addr %s31, 128
          %s524 = scalar_lea.hbm %s0, %s523
          %s526 = sshll.u32 %s519, 4
          %s527 = int_to_ptr.vmem [resolvable:$true] %s526
          %529 = dma.hbm_to_vmem [thread:$0]  %s524, 128, %s527, %s516
        $region80: #{tpu_custom_call.1} parent=75 // pred_fallthru
          _
      $region76: #{tpu_custom_call.1} parent=5 // pred_fallthru
        _
      %p530 = scmp.le.s32.totalorder 1, %s31
      %p531 = scmp.lt.s32.totalorder %s31, 3
      %p532 = pnand %p530, %p531
      %p533 = pneg %p532
      // Predicated region
      $region81: #{tpu_custom_call.1} parent=5 // pred_check
        _
      $region82: #{tpu_custom_call.1} parent=5 // pred_check_branch
        %535 = sbr.rel (%p532) target = $region84
      $region83: #{tpu_custom_call.1} parent=5 // pred_region
        %s536 = ssub.s32 %s31, 1
        %s537 = sand.u32 %s44, 1
        %s538 = scalar_lea.sflag [#allocation4], %s537
        %s539 = sand.u32 %s44, 1
        %s540 = smul.addr %s539, 8
        %s541 = scalar_lea.vmem [#allocation3], %s540
        // Predicated region
        $region85: #{tpu_custom_call.1} parent=83 // pred_check
          %p542 = pneg %p57
        $region86: #{tpu_custom_call.1} parent=83 // pred_check_branch
          %544 = sbr.rel (%p542) target = $region88
        $region87: #{tpu_custom_call.1} parent=83 // pred_region
          %545 = dma.done %s538, 128
        $region88: #{tpu_custom_call.1} parent=83 // pred_fallthru
          _
        // Predicated region
        $region89: #{tpu_custom_call.1} parent=83 // pred_check
          %p546 = pneg %p120
        $region90: #{tpu_custom_call.1} parent=83 // pred_check_branch
          %548 = sbr.rel (%p546) target = $region92
        $region91: #{tpu_custom_call.1} parent=83 // pred_region
          %549 = dma.done [#allocation7], 6144
        $region92: #{tpu_custom_call.1} parent=83 // pred_fallthru
          _
        // Predicated region
        $region93: #{tpu_custom_call.1} parent=83 // pred_check
          %p550 = pneg %p141
        $region94: #{tpu_custom_call.1} parent=83 // pred_check_branch
          %552 = sbr.rel (%p550) target = $region96
        $region95: #{tpu_custom_call.1} parent=83 // pred_region
          %553 = dma.done [#allocation7], 2048
        $region96: #{tpu_custom_call.1} parent=83 // pred_fallthru
          _
        // Predicated region
        $region97: #{tpu_custom_call.1} parent=83 // pred_check
          %p554 = pneg %p225
        $region98: #{tpu_custom_call.1} parent=83 // pred_check_branch
          %556 = sbr.rel (%p554) target = $region100
        $region99: #{tpu_custom_call.1} parent=83 // pred_region
          %557 = dma.done [#allocation10], 8192
        $region100: #{tpu_custom_call.1} parent=83 // pred_fallthru
          _
        // Predicated region
        $region101: #{tpu_custom_call.1} parent=83 // pred_check
          %p558 = pneg %p267
        $region102: #{tpu_custom_call.1} parent=83 // pred_check_branch
          %560 = sbr.rel (%p558) target = $region104
        $region103: #{tpu_custom_call.1} parent=83 // pred_region
          %561 = dma.done [#allocation10], 8192
        $region104: #{tpu_custom_call.1} parent=83 // pred_fallthru
          _
        // Predicated region
        $region105: #{tpu_custom_call.1} parent=83 // pred_check
          %p562 = pneg %p351
        $region106: #{tpu_custom_call.1} parent=83 // pred_check_branch
          %564 = sbr.rel (%p562) target = $region108
        $region107: #{tpu_custom_call.1} parent=83 // pred_region
          %565 = dma.done [#allocation13], 1024
        $region108: #{tpu_custom_call.1} parent=83 // pred_fallthru
          _
        %s566 = sand.u32 %s44, 1
        %s567 = scalar_lea.sflag [#allocation4], %s566
        %s568 = sand.u32 %s44, 1
        %s569 = smul.addr %s568, 8
        %s570 = scalar_lea.vmem [#allocation3], %s569
        %p571 = pneg %p57
        %p572 = pneg %p54
        %p573 = pneg %p78
        %p574 = pneg %p75
        %p575 = pneg %p99
        %p576 = pneg %p96
        %p577 = pneg %p120
        %p578 = pneg %p117
        %p579 = pneg %p141
        %p580 = pneg %p138
        %p581 = pneg %p162
        %p582 = pneg %p159
        %p583 = pneg %p183
        %p584 = pneg %p180
        %p585 = pneg %p204
        %p586 = pneg %p201
        %p587 = pneg %p225
        %p588 = pneg %p222
        %p589 = pneg %p246
        %p590 = pneg %p243
        %p591 = pneg %p267
        %p592 = pneg %p264
        %p593 = pneg %p288
        %p594 = pneg %p285
        %p595 = pneg %p309
        %p596 = pneg %p306
        %p597 = pneg %p330
        %p598 = pneg %p327
        %p599 = pneg %p351
        %p600 = pneg %p348
        %p601 = pneg %p372
        %p602 = pneg %p369
        %p603 = pneg %p398
        %p604 = pneg %p395
        %s605 = sand.u32 %s385, 1
        %s606 = scalar_lea.sflag [#allocation5], %s605
        %s607 = sand.u32 %s385, 1
        %s608 = smul.addr %s607, 8
        %s609 = scalar_lea.vmem [#allocation14], %s608
        %v611 = vld [vmem:[%s541] sm:$0xff]
        %v612 = vlaneseq
        %v613 = vshrl.u32 %v612, 7
        %v614 = vlaneseq
        %v615 = vand.u32 %v614, 127
        %vm616 = vcmp.le.s32.totalorder %v615, %v613
        %v617 = vsel %vm616, 0.0, -1e+30
        %v618 = vld [vmem:[%s1] sm:$0x1]
        %v619 = vld [vmem:[%s2] sm:$0x1]
        %620 = vadd.xlane.f32.xlu0 %v611
        %v621 = vpop.xlane.xlu0 %620
        %v622 = vrcp.pop 128.0
        %v623 = vmul.f32 %v621, %v622
        %v624 = vsub.f32 %v611, %v623
        %v625 = vmul.f32 %v624, %v624
        %626 = vadd.xlane.f32.xlu0 %v625
        %v627 = vpop.xlane.xlu0 %626
        %v628 = vmul.f32 %v627, %v622
        %v629 = vadd.f32 %v628, 1e-05
        %v630 = vrsqrt.pop %v629
        %v631 = vmul.f32 %v624, %v630
        %v633 = vlaneseq
        %v634 = vshrl.u32 %v633, 7
        %v635 = vsub.s32 0, %v634
        %v636 = vrot.slane %v618, %v635
        %v638 = vmul.f32 %v631, %v636
        %v640 = vlaneseq
        %v641 = vshrl.u32 %v640, 7
        %v642 = vsub.s32 0, %v641
        %v643 = vrot.slane %v619, %v642
        %v645 = vadd.f32 %v638, %v643
        %v646 = vpack.c.bf16 %v645, %v645
        %v647 = vld [vmem:[#allocation6] sm:$0xff]
        %v648 = vld [vmem:[#allocation6 + $0x8] sm:$0xf]
        %v649 = vld [vmem:[#allocation6 + $0xc] sm:$0xff]
        %v650 = vld [vmem:[#allocation6 + $0x14] sm:$0xf]
        %v651 = vld [vmem:[#allocation6 + $0x18] sm:$0xff]
        %v652 = vld [vmem:[#allocation6 + $0x20] sm:$0xf]
        %v653 = vld [vmem:[#allocation6 + $0x24] sm:$0xff]
        %v654 = vld [vmem:[#allocation6 + $0x2c] sm:$0xf]
        %v655 = vld [vmem:[#allocation6 + $0x30] sm:$0xff]
        %v656 = vld [vmem:[#allocation6 + $0x38] sm:$0xf]
        %v657 = vld [vmem:[#allocation6 + $0x3c] sm:$0xff]
        %v658 = vld [vmem:[#allocation6 + $0x44] sm:$0xf]
        %v659 = vld [vmem:[#allocation6 + $0x48] sm:$0xff]
        %v660 = vld [vmem:[#allocation6 + $0x50] sm:$0xf]
        %v661 = vld [vmem:[#allocation6 + $0x54] sm:$0xff]
        %v662 = vld [vmem:[#allocation6 + $0x5c] sm:$0xf]
        %v663 = vld [vmem:[#allocation6 + $0x60] sm:$0xff]
        %v664 = vld [vmem:[#allocation6 + $0x68] sm:$0xf]
        %v665 = vld [vmem:[#allocation6 + $0x6c] sm:$0xff]
        %v666 = vld [vmem:[#allocation6 + $0x74] sm:$0xf]
        %v667 = vld [vmem:[#allocation6 + $0x78] sm:$0xff]
        %v668 = vld [vmem:[#allocation6 + $0x80] sm:$0xf]
        %v669 = vld [vmem:[#allocation6 + $0x84] sm:$0xff]
        %v670 = vld [vmem:[#allocation6 + $0x8c] sm:$0xf]
        %v671 = vld [vmem:[#allocation6 + $0x90] sm:$0xff]
        %v672 = vld [vmem:[#allocation6 + $0x98] sm:$0xf]
        %v673 = vld [vmem:[#allocation6 + $0x9c] sm:$0xff]
        %v674 = vld [vmem:[#allocation6 + $0xa4] sm:$0xf]
        %v675 = vld [vmem:[#allocation6 + $0xa8] sm:$0xff]
        %v676 = vld [vmem:[#allocation6 + $0xb0] sm:$0xf]
        %v677 = vld [vmem:[#allocation6 + $0xb4] sm:$0xff]
        %v678 = vld [vmem:[#allocation6 + $0xbc] sm:$0xf]
        %v711 = vunpack.c.l.b16 %v647
        %v712 = vunpack.c.h.b16 %v647
        %v713 = vunpack.c.l.b16 %v648
        %v714 = vunpack.c.l.b16 %v649
        %v715 = vunpack.c.h.b16 %v649
        %v716 = vunpack.c.l.b16 %v650
        %v717 = vunpack.c.l.b16 %v651
        %v718 = vunpack.c.h.b16 %v651
        %v719 = vunpack.c.l.b16 %v652
        %v720 = vunpack.c.l.b16 %v653
        %v721 = vunpack.c.h.b16 %v653
        %v722 = vunpack.c.l.b16 %v654
        %v723 = vunpack.c.l.b16 %v655
        %v724 = vunpack.c.h.b16 %v655
        %v725 = vunpack.c.l.b16 %v656
        %v726 = vunpack.c.l.b16 %v657
        %v727 = vunpack.c.h.b16 %v657
        %v728 = vunpack.c.l.b16 %v658
        %v729 = vunpack.c.l.b16 %v659
        %v730 = vunpack.c.h.b16 %v659
        %v731 = vunpack.c.l.b16 %v660
        %v732 = vunpack.c.l.b16 %v661
        %v733 = vunpack.c.h.b16 %v661
        %v734 = vunpack.c.l.b16 %v662
        %v735 = vunpack.c.l.b16 %v663
        %v736 = vunpack.c.h.b16 %v663
        %v737 = vunpack.c.l.b16 %v664
        %v738 = vunpack.c.l.b16 %v665
        %v739 = vunpack.c.h.b16 %v665
        %v740 = vunpack.c.l.b16 %v666
        %v741 = vunpack.c.l.b16 %v667
        %v742 = vunpack.c.h.b16 %v667
        %v743 = vunpack.c.l.b16 %v668
        %v744 = vunpack.c.l.b16 %v669
        %v745 = vunpack.c.h.b16 %v669
        %v746 = vunpack.c.l.b16 %v670
        %v747 = vunpack.c.l.b16 %v671
        %v748 = vunpack.c.h.b16 %v671
        %v749 = vunpack.c.l.b16 %v672
        %v750 = vunpack.c.l.b16 %v673
        %v751 = vunpack.c.h.b16 %v673
        %v752 = vunpack.c.l.b16 %v674
        %v753 = vunpack.c.l.b16 %v675
        %v754 = vunpack.c.h.b16 %v675
        %v755 = vunpack.c.l.b16 %v676
        %v756 = vunpack.c.l.b16 %v677
        %v757 = vunpack.c.h.b16 %v677
        %v758 = vunpack.c.l.b16 %v678
        %v759 = vpack.c.b16 %v714, %v711
        %v760 = vpack.c.b16 %v715, %v712
        %v761 = vpack.c.b16 %v716, %v713
        %v762 = vpack.c.b16 %v720, %v717
        %v763 = vpack.c.b16 %v721, %v718
        %v764 = vpack.c.b16 %v722, %v719
        %v765 = vpack.c.b16 %v726, %v723
        %v766 = vpack.c.b16 %v727, %v724
        %v767 = vpack.c.b16 %v728, %v725
        %v768 = vpack.c.b16 %v732, %v729
        %v769 = vpack.c.b16 %v733, %v730
        %v770 = vpack.c.b16 %v734, %v731
        %v771 = vpack.c.b16 %v738, %v735
        %v772 = vpack.c.b16 %v739, %v736
        %v773 = vpack.c.b16 %v740, %v737
        %v774 = vpack.c.b16 %v744, %v741
        %v775 = vpack.c.b16 %v745, %v742
        %v776 = vpack.c.b16 %v746, %v743
        %v777 = vpack.c.b16 %v750, %v747
        %v778 = vpack.c.b16 %v751, %v748
        %v779 = vpack.c.b16 %v752, %v749
        %v780 = vpack.c.b16 %v756, %v753
        %v781 = vpack.c.b16 %v757, %v754
        %v782 = vpack.c.b16 %v758, %v755
        %807 = vmatprep.subr.bf16.mxu0 %v781
        %808 = vmatpush1.bf16.msra.mxu0 %v780
        %809 = vmatprep.subr.bf16.mxu0 %v778
        %810 = vmatpush1.bf16.msra.mxu0 %v777
        %811 = vmatprep.subr.bf16.mxu0 %v775
        %812 = vmatpush1.bf16.msra.mxu0 %v774
        %813 = vmatprep.subr.bf16.mxu0 %v772
        %814 = vmatpush1.bf16.msra.mxu0 %v771
        %815 = vmatprep.subr.bf16.mxu0 %v769
        %816 = vmatpush1.bf16.msra.mxu0 %v768
        %817 = vmatprep.subr.bf16.mxu0 %v766
        %818 = vmatpush1.bf16.msra.mxu0 %v765
        %819 = vmatprep.subr.bf16.mxu0 %v763
        %820 = vmatpush1.bf16.msra.mxu0 %v762
        %821 = vmatprep.subr.bf16.mxu0 %v760
        %822 = vmatpush1.bf16.msra.mxu0 %v759
        %823 = vmatprep.subr.bf16.mxu0 0
        %824 = vmatpush2.bf16.msra.mxu0 0
        %825 = vmatprep.subr.bf16.mxu0 0
        %826 = vmatpush2.bf16.msra.mxu0 0
        %827 = vmatprep.subr.bf16.mxu0 0
        %828 = vmatpush2.bf16.msra.mxu0 0
        %829 = vmatprep.subr.bf16.mxu0 0
        %830 = vmatpush2.bf16.msra.mxu0 0
        %831 = vmatprep.subr.bf16.mxu0 0
        %832 = vmatpush2.bf16.msra.mxu0 0
        %833 = vmatprep.subr.bf16.mxu0 0
        %834 = vmatpush2.bf16.msra.mxu0 0
        %835 = vmatprep.subr.bf16.mxu0 0
        %836 = vmatpush2.bf16.msra.mxu0 0
        %837 = vmatprep.subr.bf16.mxu0 0
        %838 = vmatpush2.bf16.msra.mxu0 0
        %839 = vmatprep.mubr.bf16.mxu0 0
        %840 = vmatmul.mubr.bf16.gmra.mxu0 %v646
        %v841 = vpop.f32.mrf.mxu0
        %v842 = vadd.f32 0.0, %v841
        %v843 = vpop.f32.mrf.mxu0
        %v844 = vadd.f32 0.0, %v843
        %v845 = vpop.f32.mrf.mxu0
        %v846 = vpop.f32.mrf.mxu0
        %847 = vdwg.mxu0
        %848 = vmatprep.subr.bf16.mxu0 0
        %849 = vmatpush1.bf16.msra.mxu0 %v782
        %850 = vmatprep.subr.bf16.mxu0 0
        %851 = vmatpush1.bf16.msra.mxu0 %v779
        %852 = vmatprep.subr.bf16.mxu0 0
        %853 = vmatpush1.bf16.msra.mxu0 %v776
        %854 = vmatprep.subr.bf16.mxu0 0
        %855 = vmatpush1.bf16.msra.mxu0 %v773
        %856 = vmatprep.subr.bf16.mxu0 0
        %857 = vmatpush1.bf16.msra.mxu0 %v770
        %858 = vmatprep.subr.bf16.mxu0 0
        %859 = vmatpush1.bf16.msra.mxu0 %v767
        %860 = vmatprep.subr.bf16.mxu0 0
        %861 = vmatpush1.bf16.msra.mxu0 %v764
        %862 = vmatprep.subr.bf16.mxu0 0
        %863 = vmatpush1.bf16.msra.mxu0 %v761
        %864 = vmatprep.subr.bf16.mxu0 0
        %865 = vmatpush2.bf16.msra.mxu0 0
        %866 = vmatprep.subr.bf16.mxu0 0
        %867 = vmatpush2.bf16.msra.mxu0 0
        %868 = vmatprep.subr.bf16.mxu0 0
        %869 = vmatpush2.bf16.msra.mxu0 0
        %870 = vmatprep.subr.bf16.mxu0 0
        %871 = vmatpush2.bf16.msra.mxu0 0
        %872 = vmatprep.subr.bf16.mxu0 0
        %873 = vmatpush2.bf16.msra.mxu0 0
        %874 = vmatprep.subr.bf16.mxu0 0
        %875 = vmatpush2.bf16.msra.mxu0 0
        %876 = vmatprep.subr.bf16.mxu0 0
        %877 = vmatpush2.bf16.msra.mxu0 0
        %878 = vmatprep.subr.bf16.mxu0 0
        %879 = vmatpush2.bf16.msra.mxu0 0
        %880 = vmatprep.mubr.bf16.mxu0 0
        %881 = vmatmul.mubr.bf16.gmra.mxu0 %v646
        %v882 = vpop.f32.mrf.mxu0
        %v883 = vadd.f32 0.0, %v882
        %v884 = vpop.f32.mrf.mxu0
        %v885 = vpop.f32.mrf.mxu0
        %v886 = vpop.f32.mrf.mxu0
        %887 = vdwg.mxu0
        %v888 = vpack.c.bf16 %v842, %v842
        %v889 = vpack.c.bf16 %v844, %v844
        %v890 = vpack.c.bf16 %v883, %v883
        %vm891 = vcmask 261120
        %v893 = vsel %vm891, %v888, 0
        %v896 = vsel %vm891, %v889, 0
        %898 = vmatprep.subr.bf16.mxu0 0
        %899 = vmatpush1.bf16.xpose.msra.mxu0 0
        %900 = vmatprep.subr.bf16.mxu0 0
        %901 = vmatpush1.bf16.xpose.msra.mxu0 0
        %902 = vmatprep.subr.bf16.mxu0 0
        %903 = vmatpush1.bf16.xpose.msra.mxu0 0
        %904 = vmatprep.subr.bf16.mxu0 0
        %905 = vmatpush1.bf16.xpose.msra.mxu0 0
        %906 = vmatprep.subr.bf16.mxu0 0
        %907 = vmatpush1.bf16.xpose.msra.mxu0 0
        %908 = vmatprep.subr.bf16.mxu0 0
        %909 = vmatpush1.bf16.xpose.msra.mxu0 0
        %910 = vmatprep.subr.bf16.mxu0 0
        %911 = vmatpush1.bf16.xpose.msra.mxu0 0
        %912 = vmatprep.subr.bf16.mxu0 0
        %913 = vmatpush1.bf16.xpose.msra.mxu0 %v896
        %914 = vmatprep.subr.bf16.mxu0 0
        %915 = vmatpush2.bf16.xpose.msra.mxu0 0
        %916 = vmatprep.subr.bf16.mxu0 0
        %917 = vmatpush2.bf16.xpose.msra.mxu0 0
        %918 = vmatprep.subr.bf16.mxu0 0
        %919 = vmatpush2.bf16.xpose.msra.mxu0 0
        %920 = vmatprep.subr.bf16.mxu0 0
        %921 = vmatpush2.bf16.xpose.msra.mxu0 0
        %922 = vmatprep.subr.bf16.mxu0 0
        %923 = vmatpush2.bf16.xpose.msra.mxu0 0
        %924 = vmatprep.subr.bf16.mxu0 0
        %925 = vmatpush2.bf16.xpose.msra.mxu0 0
        %926 = vmatprep.subr.bf16.mxu0 0
        %927 = vmatpush2.bf16.xpose.msra.mxu0 0
        %928 = vmatprep.subr.bf16.mxu0 0
        %929 = vmatpush2.bf16.xpose.msra.mxu0 0
        %930 = vmatprep.mubr.bf16.mxu0 0
        %931 = vmatmul.mubr.bf16.gmra.mxu0 %v893
        %v932 = vpop.f32.mrf.mxu0
        %v933 = vadd.f32 %v617, %v932
        %v934 = vpop.f32.mrf.mxu0
        %v935 = vpop.f32.mrf.mxu0
        %v936 = vpop.f32.mrf.mxu0
        %937 = vdwg.mxu0
        %vm938 = vcmask 64512
        %v939 = vsel %vm938, %v933, -inf
        %940 = vmax.xlane.f32.xlu0 %v939
        %v941 = vpop.xlane.xlu0 %940
        %v942 = vsub.f32 %v933, %v941
        %v943 = vmul.f32 %v942, 1.442695
        %v944 = vpow.pop %v943
        %v945 = vsel %vm938, %v944, 0.0
        %946 = vadd.xlane.f32.xlu0 %v945
        %v947 = vpop.xlane.xlu0 %946
        %v948 = vrcp.pop %v947
        %v949 = vmul.f32 %v944, %v948
        %v950 = vpack.c.bf16 %v949, %v949
        %v952 = vsel %vm938, %v950, 0
        %vm954 = vcmask 1043456
        %v956 = vsel %vm954, %v890, 0
        %958 = vmatprep.subr.bf16.mxu0 0
        %959 = vmatpush1.bf16.msra.mxu0 0
        %960 = vmatprep.subr.bf16.mxu0 0
        %961 = vmatpush1.bf16.msra.mxu0 0
        %962 = vmatprep.subr.bf16.mxu0 0
        %963 = vmatpush1.bf16.msra.mxu0 0
        %964 = vmatprep.subr.bf16.mxu0 0
        %965 = vmatpush1.bf16.msra.mxu0 0
        %966 = vmatprep.subr.bf16.mxu0 0
        %967 = vmatpush1.bf16.msra.mxu0 0
        %968 = vmatprep.subr.bf16.mxu0 0
        %969 = vmatpush1.bf16.msra.mxu0 0
        %970 = vmatprep.subr.bf16.mxu0 0
        %971 = vmatpush1.bf16.msra.mxu0 0
        %972 = vmatprep.subr.bf16.mxu0 0
        %973 = vmatpush1.bf16.msra.mxu0 %v956
        %974 = vmatprep.subr.bf16.mxu0 0
        %975 = vmatpush2.bf16.msra.mxu0 0
        %976 = vmatprep.subr.bf16.mxu0 0
        %977 = vmatpush2.bf16.msra.mxu0 0
        %978 = vmatprep.subr.bf16.mxu0 0
        %979 = vmatpush2.bf16.msra.mxu0 0
        %980 = vmatprep.subr.bf16.mxu0 0
        %981 = vmatpush2.bf16.msra.mxu0 0
        %982 = vmatprep.subr.bf16.mxu0 0
        %983 = vmatpush2.bf16.msra.mxu0 0
        %984 = vmatprep.subr.bf16.mxu0 0
        %985 = vmatpush2.bf16.msra.mxu0 0
        %986 = vmatprep.subr.bf16.mxu0 0
        %987 = vmatpush2.bf16.msra.mxu0 0
        %988 = vmatprep.subr.bf16.mxu0 0
        %989 = vmatpush2.bf16.msra.mxu0 0
        %990 = vmatprep.mubr.bf16.mxu0 0
        %991 = vmatmul.mubr.bf16.gmra.mxu0 %v952
        %v992 = vpop.f32.mrf.mxu0
        %v993 = vadd.f32 0.0, %v992
        %v994 = vpop.f32.mrf.mxu0
        %v995 = vpop.f32.mrf.mxu0
        %v996 = vpop.f32.mrf.mxu0
        %997 = vdwg.mxu0
        %v998 = vpack.c.bf16 %v993, %v993
        %vm999 = vcmask 257024
        %1000 = vst.msk [vmem:[#allocation2] sm:$0xf] %vm999, %v998
        %1002 = vrot.lane.b32.xlu0 %v888, 96
        %v1003 = vpop.permute.xlu0 %1002
        %1005 = vrot.lane.b32.xlu0 %v889, 96
        %v1006 = vpop.permute.xlu0 %1005
        %v1008 = vsel %vm891, %v1003, 0
        %v1011 = vsel %vm891, %v1006, 0
        %1013 = vmatprep.subr.bf16.mxu0 0
        %1014 = vmatpush1.bf16.xpose.msra.mxu0 0
        %1015 = vmatprep.subr.bf16.mxu0 0
        %1016 = vmatpush1.bf16.xpose.msra.mxu0 0
        %1017 = vmatprep.subr.bf16.mxu0 0
        %1018 = vmatpush1.bf16.xpose.msra.mxu0 0
        %1019 = vmatprep.subr.bf16.mxu0 0
        %1020 = vmatpush1.bf16.xpose.msra.mxu0 0
        %1021 = vmatprep.subr.bf16.mxu0 0
        %1022 = vmatpush1.bf16.xpose.msra.mxu0 0
        %1023 = vmatprep.subr.bf16.mxu0 0
        %1024 = vmatpush1.bf16.xpose.msra.mxu0 0
        %1025 = vmatprep.subr.bf16.mxu0 0
        %1026 = vmatpush1.bf16.xpose.msra.mxu0 0
        %1027 = vmatprep.subr.bf16.mxu0 0
        %1028 = vmatpush1.bf16.xpose.msra.mxu0 %v1011
        %1029 = vmatprep.subr.bf16.mxu0 0
        %1030 = vmatpush2.bf16.xpose.msra.mxu0 0
        %1031 = vmatprep.subr.bf16.mxu0 0
        %1032 = vmatpush2.bf16.xpose.msra.mxu0 0
        %1033 = vmatprep.subr.bf16.mxu0 0
        %1034 = vmatpush2.bf16.xpose.msra.mxu0 0
        %1035 = vmatprep.subr.bf16.mxu0 0
        %1036 = vmatpush2.bf16.xpose.msra.mxu0 0
        %1037 = vmatprep.subr.bf16.mxu0 0
        %1038 = vmatpush2.bf16.xpose.msra.mxu0 0
        %1039 = vmatprep.subr.bf16.mxu0 0
        %1040 = vmatpush2.bf16.xpose.msra.mxu0 0
        %1041 = vmatprep.subr.bf16.mxu0 0
        %1042 = vmatpush2.bf16.xpose.msra.mxu0 0
        %1043 = vmatprep.subr.bf16.mxu0 0
        %1044 = vmatpush2.bf16.xpose.msra.mxu0 0
        %1045 = vmatprep.mubr.bf16.mxu0 0
        %1046 = vmatmul.mubr.bf16.gmra.mxu0 %v1008
        %v1047 = vpop.f32.mrf.mxu0
        %v1048 = vadd.f32 %v617, %v1047
        %v1049 = vpop.f32.mrf.mxu0
        %v1050 = vpop.f32.mrf.mxu0
        %v1051 = vpop.f32.mrf.mxu0
        %1052 = vdwg.mxu0
        %v1053 = vsel %vm938, %v1048, -inf
        %1054 = vmax.xlane.f32.xlu0 %v1053
        %v1055 = vpop.xlane.xlu0 %1054
        %v1056 = vsub.f32 %v1048, %v1055
        %v1057 = vmul.f32 %v1056, 1.442695
        %v1058 = vpow.pop %v1057
        %v1059 = vsel %vm938, %v1058, 0.0
        %1060 = vadd.xlane.f32.xlu0 %v1059
        %v1061 = vpop.xlane.xlu0 %1060
        %v1062 = vrcp.pop %v1061
        %v1063 = vmul.f32 %v1058, %v1062
        %v1064 = vpack.c.bf16 %v1063, %v1063
        %1066 = vrot.lane.b32.xlu0 %v890, 96
        %v1067 = vpop.permute.xlu0 %1066
        %v1069 = vsel %vm938, %v1064, 0
        %v1072 = vsel %vm954, %v1067, 0
        %1074 = vmatprep.subr.bf16.mxu0 0
        %1075 = vmatpush1.bf16.msra.mxu0 0
        %1076 = vmatprep.subr.bf16.mxu0 0
        %1077 = vmatpush1.bf16.msra.mxu0 0
        %1078 = vmatprep.subr.bf16.mxu0 0
        %1079 = vmatpush1.bf16.msra.mxu0 0
        %1080 = vmatprep.subr.bf16.mxu0 0
        %1081 = vmatpush1.bf16.msra.mxu0 0
        %1082 = vmatprep.subr.bf16.mxu0 0
        %1083 = vmatpush1.bf16.msra.mxu0 0
        %1084 = vmatprep.subr.bf16.mxu0 0
        %1085 = vmatpush1.bf16.msra.mxu0 0
        %1086 = vmatprep.subr.bf16.mxu0 0
        %1087 = vmatpush1.bf16.msra.mxu0 0
        %1088 = vmatprep.subr.bf16.mxu0 0
        %1089 = vmatpush1.bf16.msra.mxu0 %v1072
        %1090 = vmatprep.subr.bf16.mxu0 0
        %1091 = vmatpush2.bf16.msra.mxu0 0
        %1092 = vmatprep.subr.bf16.mxu0 0
        %1093 = vmatpush2.bf16.msra.mxu0 0
        %1094 = vmatprep.subr.bf16.mxu0 0
        %1095 = vmatpush2.bf16.msra.mxu0 0
        %1096 = vmatprep.subr.bf16.mxu0 0
        %1097 = vmatpush2.bf16.msra.mxu0 0
        %1098 = vmatprep.subr.bf16.mxu0 0
        %1099 = vmatpush2.bf16.msra.mxu0 0
        %1100 = vmatprep.subr.bf16.mxu0 0
        %1101 = vmatpush2.bf16.msra.mxu0 0
        %1102 = vmatprep.subr.bf16.mxu0 0
        %1103 = vmatpush2.bf16.msra.mxu0 0
        %1104 = vmatprep.subr.bf16.mxu0 0
        %1105 = vmatpush2.bf16.msra.mxu0 0
        %1106 = vmatprep.mubr.bf16.mxu0 0
        %1107 = vmatmul.mubr.bf16.gmra.mxu0 %v1069
        %v1108 = vpop.f32.mrf.mxu0
        %v1109 = vadd.f32 0.0, %v1108
        %v1110 = vpop.f32.mrf.mxu0
        %v1111 = vpop.f32.mrf.mxu0
        %v1112 = vpop.f32.mrf.mxu0
        %1113 = vdwg.mxu0
        %v1114 = vpack.c.bf16 %v1109, %v1109
        %v1116 = vunpack.c.l.b16 %v1114
        %v1117 = vpack.c.b16 %v1116, %v1116
        %1118 = vrot.lane.b32.xlu0 %v1117, 32
        %v1119 = vpop.permute.xlu0 %1118
        %vm1121 = vcmask 519424
        %1122 = vst.msk [vmem:[#allocation2] sm:$0xf] %vm1121, %v1119
        %1123 = vrot.lane.b32.xlu0 %v888, 64
        %v1124 = vpop.permute.xlu0 %1123
        %1125 = vrot.lane.b32.xlu0 %v889, 64
        %v1126 = vpop.permute.xlu0 %1125
        %v1128 = vsel %vm891, %v1124, 0
        %v1131 = vsel %vm891, %v1126, 0
        %1133 = vmatprep.subr.bf16.mxu0 0
        %1134 = vmatpush1.bf16.xpose.msra.mxu0 0
        %1135 = vmatprep.subr.bf16.mxu0 0
        %1136 = vmatpush1.bf16.xpose.msra.mxu0 0
        %1137 = vmatprep.subr.bf16.mxu0 0
        %1138 = vmatpush1.bf16.xpose.msra.mxu0 0
        %1139 = vmatprep.subr.bf16.mxu0 0
        %1140 = vmatpush1.bf16.xpose.msra.mxu0 0
        %1141 = vmatprep.subr.bf16.mxu0 0
        %1142 = vmatpush1.bf16.xpose.msra.mxu0 0
        %1143 = vmatprep.subr.bf16.mxu0 0
        %1144 = vmatpush1.bf16.xpose.msra.mxu0 0
        %1145 = vmatprep.subr.bf16.mxu0 0
        %1146 = vmatpush1.bf16.xpose.msra.mxu0 0
        %1147 = vmatprep.subr.bf16.mxu0 0
        %1148 = vmatpush1.bf16.xpose.msra.mxu0 %v1131
        %1149 = vmatprep.subr.bf16.mxu0 0
        %1150 = vmatpush2.bf16.xpose.msra.mxu0 0
        %1151 = vmatprep.subr.bf16.mxu0 0
        %1152 = vmatpush2.bf16.xpose.msra.mxu0 0
        %1153 = vmatprep.subr.bf16.mxu0 0
        %1154 = vmatpush2.bf16.xpose.msra.mxu0 0
        %1155 = vmatprep.subr.bf16.mxu0 0
        %1156 = vmatpush2.bf16.xpose.msra.mxu0 0
        %1157 = vmatprep.subr.bf16.mxu0 0
        %1158 = vmatpush2.bf16.xpose.msra.mxu0 0
        %1159 = vmatprep.subr.bf16.mxu0 0
        %1160 = vmatpush2.bf16.xpose.msra.mxu0 0
        %1161 = vmatprep.subr.bf16.mxu0 0
        %1162 = vmatpush2.bf16.xpose.msra.mxu0 0
        %1163 = vmatprep.subr.bf16.mxu0 0
        %1164 = vmatpush2.bf16.xpose.msra.mxu0 0
        %1165 = vmatprep.mubr.bf16.mxu0 0
        %1166 = vmatmul.mubr.bf16.gmra.mxu0 %v1128
        %v1167 = vpop.f32.mrf.mxu0
        %v1168 = vadd.f32 %v617, %v1167
        %v1169 = vpop.f32.mrf.mxu0
        %v1170 = vpop.f32.mrf.mxu0
        %v1171 = vpop.f32.mrf.mxu0
        %1172 = vdwg.mxu0
        %v1173 = vsel %vm938, %v1168, -inf
        %1174 = vmax.xlane.f32.xlu0 %v1173
        %v1175 = vpop.xlane.xlu0 %1174
        %v1176 = vsub.f32 %v1168, %v1175
        %v1177 = vmul.f32 %v1176, 1.442695
        %v1178 = vpow.pop %v1177
        %v1179 = vsel %vm938, %v1178, 0.0
        %1180 = vadd.xlane.f32.xlu0 %v1179
        %v1181 = vpop.xlane.xlu0 %1180
        %v1182 = vrcp.pop %v1181
        %v1183 = vmul.f32 %v1178, %v1182
        %v1184 = vpack.c.bf16 %v1183, %v1183
        %1185 = vrot.lane.b32.xlu0 %v890, 64
        %v1186 = vpop.permute.xlu0 %1185
        %v1188 = vsel %vm938, %v1184, 0
        %v1191 = vsel %vm954, %v1186, 0
        %1193 = vmatprep.subr.bf16.mxu0 0
        %1194 = vmatpush1.bf16.msra.mxu0 0
        %1195 = vmatprep.subr.bf16.mxu0 0
        %1196 = vmatpush1.bf16.msra.mxu0 0
        %1197 = vmatprep.subr.bf16.mxu0 0
        %1198 = vmatpush1.bf16.msra.mxu0 0
        %1199 = vmatprep.subr.bf16.mxu0 0
        %1200 = vmatpush1.bf16.msra.mxu0 0
        %1201 = vmatprep.subr.bf16.mxu0 0
        %1202 = vmatpush1.bf16.msra.mxu0 0
        %1203 = vmatprep.subr.bf16.mxu0 0
        %1204 = vmatpush1.bf16.msra.mxu0 0
        %1205 = vmatprep.subr.bf16.mxu0 0
        %1206 = vmatpush1.bf16.msra.mxu0 0
        %1207 = vmatprep.subr.bf16.mxu0 0
        %1208 = vmatpush1.bf16.msra.mxu0 %v1191
        %1209 = vmatprep.subr.bf16.mxu0 0
        %1210 = vmatpush2.bf16.msra.mxu0 0
        %1211 = vmatprep.subr.bf16.mxu0 0
        %1212 = vmatpush2.bf16.msra.mxu0 0
        %1213 = vmatprep.subr.bf16.mxu0 0
        %1214 = vmatpush2.bf16.msra.mxu0 0
        %1215 = vmatprep.subr.bf16.mxu0 0
        %1216 = vmatpush2.bf16.msra.mxu0 0
        %1217 = vmatprep.subr.bf16.mxu0 0
        %1218 = vmatpush2.bf16.msra.mxu0 0
        %1219 = vmatprep.subr.bf16.mxu0 0
        %1220 = vmatpush2.bf16.msra.mxu0 0
        %1221 = vmatprep.subr.bf16.mxu0 0
        %1222 = vmatpush2.bf16.msra.mxu0 0
        %1223 = vmatprep.subr.bf16.mxu0 0
        %1224 = vmatpush2.bf16.msra.mxu0 0
        %1225 = vmatprep.mubr.bf16.mxu0 0
        %1226 = vmatmul.mubr.bf16.gmra.mxu0 %v1188
        %v1227 = vpop.f32.mrf.mxu0
        %v1228 = vadd.f32 0.0, %v1227
        %v1229 = vpop.f32.mrf.mxu0
        %v1230 = vpop.f32.mrf.mxu0
        %v1231 = vpop.f32.mrf.mxu0
        %1232 = vdwg.mxu0
        %v1233 = vpack.c.bf16 %v1228, %v1228
        %v1235 = vunpack.c.l.b16 %v1233
        %v1236 = vpack.c.b16 %v1235, %v1235
        %1237 = vrot.lane.b32.xlu0 %v1236, 64
        %v1238 = vpop.permute.xlu0 %1237
        %vm1240 = vcmask 781824
        %1241 = vst.msk [vmem:[#allocation2] sm:$0xf] %vm1240, %v1238
        %1242 = vrot.lane.b32.xlu0 %v888, 32
        %v1243 = vpop.permute.xlu0 %1242
        %1244 = vrot.lane.b32.xlu0 %v889, 32
        %v1245 = vpop.permute.xlu0 %1244
        %v1247 = vsel %vm891, %v1243, 0
        %v1250 = vsel %vm891, %v1245, 0
        %1252 = vmatprep.subr.bf16.mxu0 0
        %1253 = vmatpush1.bf16.xpose.msra.mxu0 0
        %1254 = vmatprep.subr.bf16.mxu0 0
        %1255 = vmatpush1.bf16.xpose.msra.mxu0 0
        %1256 = vmatprep.subr.bf16.mxu0 0
        %1257 = vmatpush1.bf16.xpose.msra.mxu0 0
        %1258 = vmatprep.subr.bf16.mxu0 0
        %1259 = vmatpush1.bf16.xpose.msra.mxu0 0
        %1260 = vmatprep.subr.bf16.mxu0 0
        %1261 = vmatpush1.bf16.xpose.msra.mxu0 0
        %1262 = vmatprep.subr.bf16.mxu0 0
        %1263 = vmatpush1.bf16.xpose.msra.mxu0 0
        %1264 = vmatprep.subr.bf16.mxu0 0
        %1265 = vmatpush1.bf16.xpose.msra.mxu0 0
        %1266 = vmatprep.subr.bf16.mxu0 0
        %1267 = vmatpush1.bf16.xpose.msra.mxu0 %v1250
        %1268 = vmatprep.subr.bf16.mxu0 0
        %1269 = vmatpush2.bf16.xpose.msra.mxu0 0
        %1270 = vmatprep.subr.bf16.mxu0 0
        %1271 = vmatpush2.bf16.xpose.msra.mxu0 0
        %1272 = vmatprep.subr.bf16.mxu0 0
        %1273 = vmatpush2.bf16.xpose.msra.mxu0 0
        %1274 = vmatprep.subr.bf16.mxu0 0
        %1275 = vmatpush2.bf16.xpose.msra.mxu0 0
        %1276 = vmatprep.subr.bf16.mxu0 0
        %1277 = vmatpush2.bf16.xpose.msra.mxu0 0
        %1278 = vmatprep.subr.bf16.mxu0 0
        %1279 = vmatpush2.bf16.xpose.msra.mxu0 0
        %1280 = vmatprep.subr.bf16.mxu0 0
        %1281 = vmatpush2.bf16.xpose.msra.mxu0 0
        %1282 = vmatprep.subr.bf16.mxu0 0
        %1283 = vmatpush2.bf16.xpose.msra.mxu0 0
        %1284 = vmatprep.mubr.bf16.mxu0 0
        %1285 = vmatmul.mubr.bf16.gmra.mxu0 %v1247
        %v1286 = vpop.f32.mrf.mxu0
        %v1287 = vadd.f32 %v617, %v1286
        %v1288 = vpop.f32.mrf.mxu0
        %v1289 = vpop.f32.mrf.mxu0
        %v1290 = vpop.f32.mrf.mxu0
        %1291 = vdwg.mxu0
        %v1292 = vsel %vm938, %v1287, -inf
        %1293 = vmax.xlane.f32.xlu0 %v1292
        %v1294 = vpop.xlane.xlu0 %1293
        %v1295 = vsub.f32 %v1287, %v1294
        %v1296 = vmul.f32 %v1295, 1.442695
        %v1297 = vpow.pop %v1296
        %v1298 = vsel %vm938, %v1297, 0.0
        %1299 = vadd.xlane.f32.xlu0 %v1298
        %v1300 = vpop.xlane.xlu0 %1299
        %v1301 = vrcp.pop %v1300
        %v1302 = vmul.f32 %v1297, %v1301
        %v1303 = vpack.c.bf16 %v1302, %v1302
        %1304 = vrot.lane.b32.xlu0 %v890, 32
        %v1305 = vpop.permute.xlu0 %1304
        %v1307 = vsel %vm938, %v1303, 0
        %v1310 = vsel %vm954, %v1305, 0
        %1312 = vmatprep.subr.bf16.mxu0 0
        %1313 = vmatpush1.bf16.msra.mxu0 0
        %1314 = vmatprep.subr.bf16.mxu0 0
        %1315 = vmatpush1.bf16.msra.mxu0 0
        %1316 = vmatprep.subr.bf16.mxu0 0
        %1317 = vmatpush1.bf16.msra.mxu0 0
        %1318 = vmatprep.subr.bf16.mxu0 0
        %1319 = vmatpush1.bf16.msra.mxu0 0
        %1320 = vmatprep.subr.bf16.mxu0 0
        %1321 = vmatpush1.bf16.msra.mxu0 0
        %1322 = vmatprep.subr.bf16.mxu0 0
        %1323 = vmatpush1.bf16.msra.mxu0 0
        %1324 = vmatprep.subr.bf16.mxu0 0
        %1325 = vmatpush1.bf16.msra.mxu0 0
        %1326 = vmatprep.subr.bf16.mxu0 0
        %1327 = vmatpush1.bf16.msra.mxu0 %v1310
        %1328 = vmatprep.subr.bf16.mxu0 0
        %1329 = vmatpush2.bf16.msra.mxu0 0
        %1330 = vmatprep.subr.bf16.mxu0 0
        %1331 = vmatpush2.bf16.msra.mxu0 0
        %1332 = vmatprep.subr.bf16.mxu0 0
        %1333 = vmatpush2.bf16.msra.mxu0 0
        %1334 = vmatprep.subr.bf16.mxu0 0
        %1335 = vmatpush2.bf16.msra.mxu0 0
        %1336 = vmatprep.subr.bf16.mxu0 0
        %1337 = vmatpush2.bf16.msra.mxu0 0
        %1338 = vmatprep.subr.bf16.mxu0 0
        %1339 = vmatpush2.bf16.msra.mxu0 0
        %1340 = vmatprep.subr.bf16.mxu0 0
        %1341 = vmatpush2.bf16.msra.mxu0 0
        %1342 = vmatprep.subr.bf16.mxu0 0
        %1343 = vmatpush2.bf16.msra.mxu0 0
        %1344 = vmatprep.mubr.bf16.mxu0 0
        %1345 = vmatmul.mubr.bf16.gmra.mxu0 %v1307
        %v1346 = vpop.f32.mrf.mxu0
        %v1347 = vadd.f32 0.0, %v1346
        %v1348 = vpop.f32.mrf.mxu0
        %v1349 = vpop.f32.mrf.mxu0
        %v1350 = vpop.f32.mrf.mxu0
        %1351 = vdwg.mxu0
        %v1352 = vpack.c.bf16 %v1347, %v1347
        %v1354 = vunpack.c.l.b16 %v1352
        %v1355 = vpack.c.b16 %v1354, %v1354
        %1356 = vrot.lane.b32.xlu0 %v1355, 96
        %v1357 = vpop.permute.xlu0 %1356
        %vm1359 = vcmask 1044224
        %1360 = vst.msk [vmem:[#allocation2] sm:$0xf] %vm1359, %v1357
        %v1361 = vld [vmem:[#allocation2] sm:$0xf]
        %v1362 = vld [vmem:[#allocation8] sm:$0xf]
        %v1363 = vld [vmem:[#allocation8 + $0x4] sm:$0xf]
        %v1364 = vld [vmem:[#allocation8 + $0x8] sm:$0xf]
        %v1365 = vld [vmem:[#allocation8 + $0xc] sm:$0xf]
        %v1366 = vld [vmem:[#allocation8 + $0x10] sm:$0xf]
        %v1367 = vld [vmem:[#allocation8 + $0x14] sm:$0xf]
        %v1368 = vld [vmem:[#allocation8 + $0x18] sm:$0xf]
        %v1369 = vld [vmem:[#allocation8 + $0x1c] sm:$0xf]
        %v1370 = vld [vmem:[#allocation8 + $0x20] sm:$0xf]
        %v1371 = vld [vmem:[#allocation8 + $0x24] sm:$0xf]
        %v1372 = vld [vmem:[#allocation8 + $0x28] sm:$0xf]
        %v1373 = vld [vmem:[#allocation8 + $0x2c] sm:$0xf]
        %v1374 = vld [vmem:[#allocation8 + $0x30] sm:$0xf]
        %v1375 = vld [vmem:[#allocation8 + $0x34] sm:$0xf]
        %v1376 = vld [vmem:[#allocation8 + $0x38] sm:$0xf]
        %v1377 = vld [vmem:[#allocation8 + $0x3c] sm:$0xf]
        %v1394 = vunpack.c.l.b16 %v1362
        %v1395 = vunpack.c.l.b16 %v1363
        %v1396 = vunpack.c.l.b16 %v1364
        %v1397 = vunpack.c.l.b16 %v1365
        %v1398 = vunpack.c.l.b16 %v1366
        %v1399 = vunpack.c.l.b16 %v1367
        %v1400 = vunpack.c.l.b16 %v1368
        %v1401 = vunpack.c.l.b16 %v1369
        %v1402 = vunpack.c.l.b16 %v1370
        %v1403 = vunpack.c.l.b16 %v1371
        %v1404 = vunpack.c.l.b16 %v1372
        %v1405 = vunpack.c.l.b16 %v1373
        %v1406 = vunpack.c.l.b16 %v1374
        %v1407 = vunpack.c.l.b16 %v1375
        %v1408 = vunpack.c.l.b16 %v1376
        %v1409 = vunpack.c.l.b16 %v1377
        %v1410 = vpack.c.b16 %v1395, %v1394
        %v1411 = vpack.c.b16 %v1397, %v1396
        %v1412 = vpack.c.b16 %v1399, %v1398
        %v1413 = vpack.c.b16 %v1401, %v1400
        %v1414 = vpack.c.b16 %v1403, %v1402
        %v1415 = vpack.c.b16 %v1405, %v1404
        %v1416 = vpack.c.b16 %v1407, %v1406
        %v1417 = vpack.c.b16 %v1409, %v1408
        %1426 = vmatprep.subr.bf16.mxu0 0
        %1427 = vmatpush1.bf16.msra.mxu0 %v1417
        %1428 = vmatprep.subr.bf16.mxu0 0
        %1429 = vmatpush1.bf16.msra.mxu0 %v1416
        %1430 = vmatprep.subr.bf16.mxu0 0
        %1431 = vmatpush1.bf16.msra.mxu0 %v1415
        %1432 = vmatprep.subr.bf16.mxu0 0
        %1433 = vmatpush1.bf16.msra.mxu0 %v1414
        %1434 = vmatprep.subr.bf16.mxu0 0
        %1435 = vmatpush1.bf16.msra.mxu0 %v1413
        %1436 = vmatprep.subr.bf16.mxu0 0
        %1437 = vmatpush1.bf16.msra.mxu0 %v1412
        %1438 = vmatprep.subr.bf16.mxu0 0
        %1439 = vmatpush1.bf16.msra.mxu0 %v1411
        %1440 = vmatprep.subr.bf16.mxu0 0
        %1441 = vmatpush1.bf16.msra.mxu0 %v1410
        %1442 = vmatprep.subr.bf16.mxu0 0
        %1443 = vmatpush2.bf16.msra.mxu0 0
        %1444 = vmatprep.subr.bf16.mxu0 0
        %1445 = vmatpush2.bf16.msra.mxu0 0
        %1446 = vmatprep.subr.bf16.mxu0 0
        %1447 = vmatpush2.bf16.msra.mxu0 0
        %1448 = vmatprep.subr.bf16.mxu0 0
        %1449 = vmatpush2.bf16.msra.mxu0 0
        %1450 = vmatprep.subr.bf16.mxu0 0
        %1451 = vmatpush2.bf16.msra.mxu0 0
        %1452 = vmatprep.subr.bf16.mxu0 0
        %1453 = vmatpush2.bf16.msra.mxu0 0
        %1454 = vmatprep.subr.bf16.mxu0 0
        %1455 = vmatpush2.bf16.msra.mxu0 0
        %1456 = vmatprep.subr.bf16.mxu0 0
        %1457 = vmatpush2.bf16.msra.mxu0 0
        %1458 = vmatprep.mubr.bf16.mxu0 0
        %1459 = vmatmul.mubr.bf16.gmra.mxu0 %v1361
        %v1460 = vpop.f32.mrf.mxu0
        %v1461 = vadd.f32 0.0, %v1460
        %v1462 = vpop.f32.mrf.mxu0
        %v1463 = vpop.f32.mrf.mxu0
        %v1464 = vpop.f32.mrf.mxu0
        %1465 = vdwg.mxu0
        %v1466 = vadd.f32 %v611, %v1461
        %v1467 = vld [vmem:[%s5] sm:$0x1]
        %v1469 = vlaneseq
        %v1470 = vshrl.u32 %v1469, 7
        %v1471 = vsub.s32 0, %v1470
        %v1472 = vrot.slane %v1467, %v1471
        %v1474 = vadd.f32 %v1466, %v1472
        %v1475 = vld [vmem:[%s6] sm:$0x1]
        %v1476 = vld [vmem:[%s7] sm:$0x1]
        %1477 = vadd.xlane.f32.xlu0 %v1474
        %v1478 = vpop.xlane.xlu0 %1477
        %v1479 = vmul.f32 %v1478, %v622
        %v1480 = vsub.f32 %v1474, %v1479
        %v1481 = vmul.f32 %v1480, %v1480
        %1482 = vadd.xlane.f32.xlu0 %v1481
        %v1483 = vpop.xlane.xlu0 %1482
        %v1484 = vmul.f32 %v1483, %v622
        %v1485 = vadd.f32 %v1484, 1e-05
        %v1486 = vrsqrt.pop %v1485
        %v1487 = vmul.f32 %v1480, %v1486
        %v1489 = vlaneseq
        %v1490 = vshrl.u32 %v1489, 7
        %v1491 = vsub.s32 0, %v1490
        %v1492 = vrot.slane %v1475, %v1491
        %v1494 = vmul.f32 %v1487, %v1492
        %v1496 = vlaneseq
        %v1497 = vshrl.u32 %v1496, 7
        %v1498 = vsub.s32 0, %v1497
        %v1499 = vrot.slane %v1476, %v1498
        %v1501 = vadd.f32 %v1494, %v1499
        %v1502 = vpack.c.bf16 %v1501, %v1501
        %v1503 = vld [vmem:[#allocation9] sm:$0xff]
        %v1504 = vld [vmem:[#allocation9 + $0x8] sm:$0xff]
        %v1505 = vld [vmem:[#allocation9 + $0x10] sm:$0xff]
        %v1506 = vld [vmem:[#allocation9 + $0x18] sm:$0xff]
        %v1507 = vld [vmem:[#allocation9 + $0x20] sm:$0xff]
        %v1508 = vld [vmem:[#allocation9 + $0x28] sm:$0xff]
        %v1509 = vld [vmem:[#allocation9 + $0x30] sm:$0xff]
        %v1510 = vld [vmem:[#allocation9 + $0x38] sm:$0xff]
        %v1511 = vld [vmem:[#allocation9 + $0x40] sm:$0xff]
        %v1512 = vld [vmem:[#allocation9 + $0x48] sm:$0xff]
        %v1513 = vld [vmem:[#allocation9 + $0x50] sm:$0xff]
        %v1514 = vld [vmem:[#allocation9 + $0x58] sm:$0xff]
        %v1515 = vld [vmem:[#allocation9 + $0x60] sm:$0xff]
        %v1516 = vld [vmem:[#allocation9 + $0x68] sm:$0xff]
        %v1517 = vld [vmem:[#allocation9 + $0x70] sm:$0xff]
        %v1518 = vld [vmem:[#allocation9 + $0x78] sm:$0xff]
        %v1519 = vld [vmem:[#allocation9 + $0x80] sm:$0xff]
        %v1520 = vld [vmem:[#allocation9 + $0x88] sm:$0xff]
        %v1521 = vld [vmem:[#allocation9 + $0x90] sm:$0xff]
        %v1522 = vld [vmem:[#allocation9 + $0x98] sm:$0xff]
        %v1523 = vld [vmem:[#allocation9 + $0xa0] sm:$0xff]
        %v1524 = vld [vmem:[#allocation9 + $0xa8] sm:$0xff]
        %v1525 = vld [vmem:[#allocation9 + $0xb0] sm:$0xff]
        %v1526 = vld [vmem:[#allocation9 + $0xb8] sm:$0xff]
        %v1527 = vld [vmem:[#allocation9 + $0xc0] sm:$0xff]
        %v1528 = vld [vmem:[#allocation9 + $0xc8] sm:$0xff]
        %v1529 = vld [vmem:[#allocation9 + $0xd0] sm:$0xff]
        %v1530 = vld [vmem:[#allocation9 + $0xd8] sm:$0xff]
        %v1531 = vld [vmem:[#allocation9 + $0xe0] sm:$0xff]
        %v1532 = vld [vmem:[#allocation9 + $0xe8] sm:$0xff]
        %v1533 = vld [vmem:[#allocation9 + $0xf0] sm:$0xff]
        %v1534 = vld [vmem:[#allocation9 + $0xf8] sm:$0xff]
        %v1567 = vunpack.c.l.b16 %v1503
        %v1568 = vunpack.c.h.b16 %v1503
        %v1569 = vunpack.c.l.b16 %v1504
        %v1570 = vunpack.c.h.b16 %v1504
        %v1571 = vunpack.c.l.b16 %v1505
        %v1572 = vunpack.c.h.b16 %v1505
        %v1573 = vunpack.c.l.b16 %v1506
        %v1574 = vunpack.c.h.b16 %v1506
        %v1575 = vunpack.c.l.b16 %v1507
        %v1576 = vunpack.c.h.b16 %v1507
        %v1577 = vunpack.c.l.b16 %v1508
        %v1578 = vunpack.c.h.b16 %v1508
        %v1579 = vunpack.c.l.b16 %v1509
        %v1580 = vunpack.c.h.b16 %v1509
        %v1581 = vunpack.c.l.b16 %v1510
        %v1582 = vunpack.c.h.b16 %v1510
        %v1583 = vunpack.c.l.b16 %v1511
        %v1584 = vunpack.c.h.b16 %v1511
        %v1585 = vunpack.c.l.b16 %v1512
        %v1586 = vunpack.c.h.b16 %v1512
        %v1587 = vunpack.c.l.b16 %v1513
        %v1588 = vunpack.c.h.b16 %v1513
        %v1589 = vunpack.c.l.b16 %v1514
        %v1590 = vunpack.c.h.b16 %v1514
        %v1591 = vunpack.c.l.b16 %v1515
        %v1592 = vunpack.c.h.b16 %v1515
        %v1593 = vunpack.c.l.b16 %v1516
        %v1594 = vunpack.c.h.b16 %v1516
        %v1595 = vunpack.c.l.b16 %v1517
        %v1596 = vunpack.c.h.b16 %v1517
        %v1597 = vunpack.c.l.b16 %v1518
        %v1598 = vunpack.c.h.b16 %v1518
        %v1599 = vunpack.c.l.b16 %v1519
        %v1600 = vunpack.c.h.b16 %v1519
        %v1601 = vunpack.c.l.b16 %v1520
        %v1602 = vunpack.c.h.b16 %v1520
        %v1603 = vunpack.c.l.b16 %v1521
        %v1604 = vunpack.c.h.b16 %v1521
        %v1605 = vunpack.c.l.b16 %v1522
        %v1606 = vunpack.c.h.b16 %v1522
        %v1607 = vunpack.c.l.b16 %v1523
        %v1608 = vunpack.c.h.b16 %v1523
        %v1609 = vunpack.c.l.b16 %v1524
        %v1610 = vunpack.c.h.b16 %v1524
        %v1611 = vunpack.c.l.b16 %v1525
        %v1612 = vunpack.c.h.b16 %v1525
        %v1613 = vunpack.c.l.b16 %v1526
        %v1614 = vunpack.c.h.b16 %v1526
        %v1615 = vunpack.c.l.b16 %v1527
        %v1616 = vunpack.c.h.b16 %v1527
        %v1617 = vunpack.c.l.b16 %v1528
        %v1618 = vunpack.c.h.b16 %v1528
        %v1619 = vunpack.c.l.b16 %v1529
        %v1620 = vunpack.c.h.b16 %v1529
        %v1621 = vunpack.c.l.b16 %v1530
        %v1622 = vunpack.c.h.b16 %v1530
        %v1623 = vunpack.c.l.b16 %v1531
        %v1624 = vunpack.c.h.b16 %v1531
        %v1625 = vunpack.c.l.b16 %v1532
        %v1626 = vunpack.c.h.b16 %v1532
        %v1627 = vunpack.c.l.b16 %v1533
        %v1628 = vunpack.c.h.b16 %v1533
        %v1629 = vunpack.c.l.b16 %v1534
        %v1630 = vunpack.c.h.b16 %v1534
        %v1631 = vpack.c.b16 %v1571, %v1567
        %v1632 = vpack.c.b16 %v1572, %v1568
        %v1633 = vpack.c.b16 %v1573, %v1569
        %v1634 = vpack.c.b16 %v1574, %v1570
        %v1635 = vpack.c.b16 %v1579, %v1575
        %v1636 = vpack.c.b16 %v1580, %v1576
        %v1637 = vpack.c.b16 %v1581, %v1577
        %v1638 = vpack.c.b16 %v1582, %v1578
        %v1639 = vpack.c.b16 %v1587, %v1583
        %v1640 = vpack.c.b16 %v1588, %v1584
        %v1641 = vpack.c.b16 %v1589, %v1585
        %v1642 = vpack.c.b16 %v1590, %v1586
        %v1643 = vpack.c.b16 %v1595, %v1591
        %v1644 = vpack.c.b16 %v1596, %v1592
        %v1645 = vpack.c.b16 %v1597, %v1593
        %v1646 = vpack.c.b16 %v1598, %v1594
        %v1647 = vpack.c.b16 %v1603, %v1599
        %v1648 = vpack.c.b16 %v1604, %v1600
        %v1649 = vpack.c.b16 %v1605, %v1601
        %v1650 = vpack.c.b16 %v1606, %v1602
        %v1651 = vpack.c.b16 %v1611, %v1607
        %v1652 = vpack.c.b16 %v1612, %v1608
        %v1653 = vpack.c.b16 %v1613, %v1609
        %v1654 = vpack.c.b16 %v1614, %v1610
        %v1655 = vpack.c.b16 %v1619, %v1615
        %v1656 = vpack.c.b16 %v1620, %v1616
        %v1657 = vpack.c.b16 %v1621, %v1617
        %v1658 = vpack.c.b16 %v1622, %v1618
        %v1659 = vpack.c.b16 %v1627, %v1623
        %v1660 = vpack.c.b16 %v1628, %v1624
        %v1661 = vpack.c.b16 %v1629, %v1625
        %v1662 = vpack.c.b16 %v1630, %v1626
        %1695 = vmatprep.subr.bf16.mxu0 %v1660
        %1696 = vmatpush1.bf16.msra.mxu0 %v1659
        %1697 = vmatprep.subr.bf16.mxu0 %v1656
        %1698 = vmatpush1.bf16.msra.mxu0 %v1655
        %1699 = vmatprep.subr.bf16.mxu0 %v1652
        %1700 = vmatpush1.bf16.msra.mxu0 %v1651
        %1701 = vmatprep.subr.bf16.mxu0 %v1648
        %1702 = vmatpush1.bf16.msra.mxu0 %v1647
        %1703 = vmatprep.subr.bf16.mxu0 %v1644
        %1704 = vmatpush1.bf16.msra.mxu0 %v1643
        %1705 = vmatprep.subr.bf16.mxu0 %v1640
        %1706 = vmatpush1.bf16.msra.mxu0 %v1639
        %1707 = vmatprep.subr.bf16.mxu0 %v1636
        %1708 = vmatpush1.bf16.msra.mxu0 %v1635
        %1709 = vmatprep.subr.bf16.mxu0 %v1632
        %1710 = vmatpush1.bf16.msra.mxu0 %v1631
        %1711 = vmatprep.subr.bf16.mxu0 0
        %1712 = vmatpush2.bf16.msra.mxu0 0
        %1713 = vmatprep.subr.bf16.mxu0 0
        %1714 = vmatpush2.bf16.msra.mxu0 0
        %1715 = vmatprep.subr.bf16.mxu0 0
        %1716 = vmatpush2.bf16.msra.mxu0 0
        %1717 = vmatprep.subr.bf16.mxu0 0
        %1718 = vmatpush2.bf16.msra.mxu0 0
        %1719 = vmatprep.subr.bf16.mxu0 0
        %1720 = vmatpush2.bf16.msra.mxu0 0
        %1721 = vmatprep.subr.bf16.mxu0 0
        %1722 = vmatpush2.bf16.msra.mxu0 0
        %1723 = vmatprep.subr.bf16.mxu0 0
        %1724 = vmatpush2.bf16.msra.mxu0 0
        %1725 = vmatprep.subr.bf16.mxu0 0
        %1726 = vmatpush2.bf16.msra.mxu0 0
        %1727 = vmatprep.mubr.bf16.mxu0 0
        %1728 = vmatmul.mubr.bf16.gmra.mxu0 %v1502
        %v1729 = vpop.f32.mrf.mxu0
        %v1730 = vadd.f32 0.0, %v1729
        %v1731 = vpop.f32.mrf.mxu0
        %v1732 = vadd.f32 0.0, %v1731
        %v1733 = vpop.f32.mrf.mxu0
        %v1734 = vpop.f32.mrf.mxu0
        %1735 = vdwg.mxu0
        %1736 = vmatprep.subr.bf16.mxu0 %v1662
        %1737 = vmatpush1.bf16.msra.mxu0 %v1661
        %1738 = vmatprep.subr.bf16.mxu0 %v1658
        %1739 = vmatpush1.bf16.msra.mxu0 %v1657
        %1740 = vmatprep.subr.bf16.mxu0 %v1654
        %1741 = vmatpush1.bf16.msra.mxu0 %v1653
        %1742 = vmatprep.subr.bf16.mxu0 %v1650
        %1743 = vmatpush1.bf16.msra.mxu0 %v1649
        %1744 = vmatprep.subr.bf16.mxu0 %v1646
        %1745 = vmatpush1.bf16.msra.mxu0 %v1645
        %1746 = vmatprep.subr.bf16.mxu0 %v1642
        %1747 = vmatpush1.bf16.msra.mxu0 %v1641
        %1748 = vmatprep.subr.bf16.mxu0 %v1638
        %1749 = vmatpush1.bf16.msra.mxu0 %v1637
        %1750 = vmatprep.subr.bf16.mxu0 %v1634
        %1751 = vmatpush1.bf16.msra.mxu0 %v1633
        %1752 = vmatprep.subr.bf16.mxu0 0
        %1753 = vmatpush2.bf16.msra.mxu0 0
        %1754 = vmatprep.subr.bf16.mxu0 0
        %1755 = vmatpush2.bf16.msra.mxu0 0
        %1756 = vmatprep.subr.bf16.mxu0 0
        %1757 = vmatpush2.bf16.msra.mxu0 0
        %1758 = vmatprep.subr.bf16.mxu0 0
        %1759 = vmatpush2.bf16.msra.mxu0 0
        %1760 = vmatprep.subr.bf16.mxu0 0
        %1761 = vmatpush2.bf16.msra.mxu0 0
        %1762 = vmatprep.subr.bf16.mxu0 0
        %1763 = vmatpush2.bf16.msra.mxu0 0
        %1764 = vmatprep.subr.bf16.mxu0 0
        %1765 = vmatpush2.bf16.msra.mxu0 0
        %1766 = vmatprep.subr.bf16.mxu0 0
        %1767 = vmatpush2.bf16.msra.mxu0 0
        %1768 = vmatprep.mubr.bf16.mxu0 0
        %1769 = vmatmul.mubr.bf16.gmra.mxu0 %v1502
        %v1770 = vpop.f32.mrf.mxu0
        %v1771 = vadd.f32 0.0, %v1770
        %v1772 = vpop.f32.mrf.mxu0
        %v1773 = vadd.f32 0.0, %v1772
        %v1774 = vpop.f32.mrf.mxu0
        %v1775 = vpop.f32.mrf.mxu0
        %1776 = vdwg.mxu0
        %v1777 = vpack.c.bf16 %v1730, %v1730
        %v1778 = vpack.c.bf16 %v1732, %v1732
        %v1779 = vpack.c.bf16 %v1771, %v1771
        %v1780 = vpack.c.bf16 %v1773, %v1773
        %v1781 = vld [vmem:[%s9] sm:$0xf]
        %v1784 = vunpack.c.l.s4 1966171168
        %v1785 = vunpack.c.0.s8 %v1784
        %v1786 = vlaneseq
        %v1787 = vshrl.u32 %v1786, 7
        %v1788 = vsub.s32 %v1785, %v1787
        %v1789 = vrot.slane %v1781, %v1788
        %v1790 = vcombine.high %v1789, %v1789
        %v1792 = vunpack.c.l.s4 1966171168
        %v1793 = vunpack.c.0.s8 %v1792
        %v1794 = vlaneseq
        %v1795 = vshrl.u32 %v1794, 7
        %v1796 = vsub.s32 %v1793, %v1795
        %v1797 = vrot.slane %v1789, %v1796
        %v1799 = vunpack.c.l.s4 1966171168
        %v1800 = vunpack.c.0.s8 %v1799
        %v1801 = vlaneseq
        %v1802 = vshrl.u32 %v1801, 7
        %v1803 = vsub.s32 %v1800, %v1802
        %v1804 = vrot.slane %v1790, %v1803
        %v1805 = vcombine.high %v1797, %v1797
        %v1806 = vcombine.high %v1804, %v1804
        %v1808 = vpack.i.b16 %v1797, %v1797
        %v1810 = vlaneseq
        %v1811 = vshrl.u32 %v1810, 7
        %v1812 = vsub.s32 0, %v1811
        %v1813 = vrot.slane %v1808, %v1812
        %v1815 = vpack.i.b16 %v1804, %v1804
        %v1817 = vlaneseq
        %v1818 = vshrl.u32 %v1817, 7
        %v1819 = vsub.s32 0, %v1818
        %v1820 = vrot.slane %v1815, %v1819
        %v1822 = vpack.i.b16 %v1805, %v1805
        %v1824 = vlaneseq
        %v1825 = vshrl.u32 %v1824, 7
        %v1826 = vsub.s32 0, %v1825
        %v1827 = vrot.slane %v1822, %v1826
        %v1829 = vpack.i.b16 %v1806, %v1806
        %v1831 = vlaneseq
        %v1832 = vshrl.u32 %v1831, 7
        %v1833 = vsub.s32 0, %v1832
        %v1834 = vrot.slane %v1829, %v1833
        %v1835 = vadd.bf16 %v1777, %v1813
        %v1836 = vadd.bf16 %v1778, %v1820
        %v1837 = vadd.bf16 %v1779, %v1827
        %v1838 = vadd.bf16 %v1780, %v1834
        %v1839 = vmax.bf16 %v1835, 0
        %v1840 = vmax.bf16 %v1836, 0
        %v1841 = vmax.bf16 %v1837, 0
        %v1842 = vmax.bf16 %v1838, 0
        %v1843 = vld [vmem:[#allocation11] sm:$0xf]
        %v1844 = vld [vmem:[#allocation11 + $0x4] sm:$0xf]
        %v1845 = vld [vmem:[#allocation11 + $0x8] sm:$0xf]
        %v1846 = vld [vmem:[#allocation11 + $0xc] sm:$0xf]
        %v1847 = vld [vmem:[#allocation11 + $0x10] sm:$0xf]
        %v1848 = vld [vmem:[#allocation11 + $0x14] sm:$0xf]
        %v1849 = vld [vmem:[#allocation11 + $0x18] sm:$0xf]
        %v1850 = vld [vmem:[#allocation11 + $0x1c] sm:$0xf]
        %v1851 = vld [vmem:[#allocation11 + $0x20] sm:$0xf]
        %v1852 = vld [vmem:[#allocation11 + $0x24] sm:$0xf]
        %v1853 = vld [vmem:[#allocation11 + $0x28] sm:$0xf]
        %v1854 = vld [vmem:[#allocation11 + $0x2c] sm:$0xf]
        %v1855 = vld [vmem:[#allocation11 + $0x30] sm:$0xf]
        %v1856 = vld [vmem:[#allocation11 + $0x34] sm:$0xf]
        %v1857 = vld [vmem:[#allocation11 + $0x38] sm:$0xf]
        %v1858 = vld [vmem:[#allocation11 + $0x3c] sm:$0xf]
        %v1859 = vld [vmem:[#allocation11 + $0x40] sm:$0xf]
        %v1860 = vld [vmem:[#allocation11 + $0x44] sm:$0xf]
        %v1861 = vld [vmem:[#allocation11 + $0x48] sm:$0xf]
        %v1862 = vld [vmem:[#allocation11 + $0x4c] sm:$0xf]
        %v1863 = vld [vmem:[#allocation11 + $0x50] sm:$0xf]
        %v1864 = vld [vmem:[#allocation11 + $0x54] sm:$0xf]
        %v1865 = vld [vmem:[#allocation11 + $0x58] sm:$0xf]
        %v1866 = vld [vmem:[#allocation11 + $0x5c] sm:$0xf]
        %v1867 = vld [vmem:[#allocation11 + $0x60] sm:$0xf]
        %v1868 = vld [vmem:[#allocation11 + $0x64] sm:$0xf]
        %v1869 = vld [vmem:[#allocation11 + $0x68] sm:$0xf]
        %v1870 = vld [vmem:[#allocation11 + $0x6c] sm:$0xf]
        %v1871 = vld [vmem:[#allocation11 + $0x70] sm:$0xf]
        %v1872 = vld [vmem:[#allocation11 + $0x74] sm:$0xf]
        %v1873 = vld [vmem:[#allocation11 + $0x78] sm:$0xf]
        %v1874 = vld [vmem:[#allocation11 + $0x7c] sm:$0xf]
        %v1875 = vld [vmem:[#allocation11 + $0x80] sm:$0xf]
        %v1876 = vld [vmem:[#allocation11 + $0x84] sm:$0xf]
        %v1877 = vld [vmem:[#allocation11 + $0x88] sm:$0xf]
        %v1878 = vld [vmem:[#allocation11 + $0x8c] sm:$0xf]
        %v1879 = vld [vmem:[#allocation11 + $0x90] sm:$0xf]
        %v1880 = vld [vmem:[#allocation11 + $0x94] sm:$0xf]
        %v1881 = vld [vmem:[#allocation11 + $0x98] sm:$0xf]
        %v1882 = vld [vmem:[#allocation11 + $0x9c] sm:$0xf]
        %v1883 = vld [vmem:[#allocation11 + $0xa0] sm:$0xf]
        %v1884 = vld [vmem:[#allocation11 + $0xa4] sm:$0xf]
        %v1885 = vld [vmem:[#allocation11 + $0xa8] sm:$0xf]
        %v1886 = vld [vmem:[#allocation11 + $0xac] sm:$0xf]
        %v1887 = vld [vmem:[#allocation11 + $0xb0] sm:$0xf]
        %v1888 = vld [vmem:[#allocation11 + $0xb4] sm:$0xf]
        %v1889 = vld [vmem:[#allocation11 + $0xb8] sm:$0xf]
        %v1890 = vld [vmem:[#allocation11 + $0xbc] sm:$0xf]
        %v1891 = vld [vmem:[#allocation11 + $0xc0] sm:$0xf]
        %v1892 = vld [vmem:[#allocation11 + $0xc4] sm:$0xf]
        %v1893 = vld [vmem:[#allocation11 + $0xc8] sm:$0xf]
        %v1894 = vld [vmem:[#allocation11 + $0xcc] sm:$0xf]
        %v1895 = vld [vmem:[#allocation11 + $0xd0] sm:$0xf]
        %v1896 = vld [vmem:[#allocation11 + $0xd4] sm:$0xf]
        %v1897 = vld [vmem:[#allocation11 + $0xd8] sm:$0xf]
        %v1898 = vld [vmem:[#allocation11 + $0xdc] sm:$0xf]
        %v1899 = vld [vmem:[#allocation11 + $0xe0] sm:$0xf]
        %v1900 = vld [vmem:[#allocation11 + $0xe4] sm:$0xf]
        %v1901 = vld [vmem:[#allocation11 + $0xe8] sm:$0xf]
        %v1902 = vld [vmem:[#allocation11 + $0xec] sm:$0xf]
        %v1903 = vld [vmem:[#allocation11 + $0xf0] sm:$0xf]
        %v1904 = vld [vmem:[#allocation11 + $0xf4] sm:$0xf]
        %v1905 = vld [vmem:[#allocation11 + $0xf8] sm:$0xf]
        %v1906 = vld [vmem:[#allocation11 + $0xfc] sm:$0xf]
        %v1907 = vld [vmem:[%s11] sm:$0x1]
        %v1909 = vlaneseq
        %v1910 = vshrl.u32 %v1909, 7
        %v1911 = vsub.s32 0, %v1910
        %v1912 = vrot.slane %v1907, %v1911
        %v1978 = vunpack.c.l.b16 %v1843
        %v1979 = vunpack.c.l.b16 %v1844
        %v1980 = vunpack.c.l.b16 %v1845
        %v1981 = vunpack.c.l.b16 %v1846
        %v1982 = vunpack.c.l.b16 %v1847
        %v1983 = vunpack.c.l.b16 %v1848
        %v1984 = vunpack.c.l.b16 %v1849
        %v1985 = vunpack.c.l.b16 %v1850
        %v1986 = vunpack.c.l.b16 %v1851
        %v1987 = vunpack.c.l.b16 %v1852
        %v1988 = vunpack.c.l.b16 %v1853
        %v1989 = vunpack.c.l.b16 %v1854
        %v1990 = vunpack.c.l.b16 %v1855
        %v1991 = vunpack.c.l.b16 %v1856
        %v1992 = vunpack.c.l.b16 %v1857
        %v1993 = vunpack.c.l.b16 %v1858
        %v1994 = vunpack.c.l.b16 %v1859
        %v1995 = vunpack.c.l.b16 %v1860
        %v1996 = vunpack.c.l.b16 %v1861
        %v1997 = vunpack.c.l.b16 %v1862
        %v1998 = vunpack.c.l.b16 %v1863
        %v1999 = vunpack.c.l.b16 %v1864
        %v2000 = vunpack.c.l.b16 %v1865
        %v2001 = vunpack.c.l.b16 %v1866
        %v2002 = vunpack.c.l.b16 %v1867
        %v2003 = vunpack.c.l.b16 %v1868
        %v2004 = vunpack.c.l.b16 %v1869
        %v2005 = vunpack.c.l.b16 %v1870
        %v2006 = vunpack.c.l.b16 %v1871
        %v2007 = vunpack.c.l.b16 %v1872
        %v2008 = vunpack.c.l.b16 %v1873
        %v2009 = vunpack.c.l.b16 %v1874
        %v2010 = vunpack.c.l.b16 %v1875
        %v2011 = vunpack.c.l.b16 %v1876
        %v2012 = vunpack.c.l.b16 %v1877
        %v2013 = vunpack.c.l.b16 %v1878
        %v2014 = vunpack.c.l.b16 %v1879
        %v2015 = vunpack.c.l.b16 %v1880
        %v2016 = vunpack.c.l.b16 %v1881
        %v2017 = vunpack.c.l.b16 %v1882
        %v2018 = vunpack.c.l.b16 %v1883
        %v2019 = vunpack.c.l.b16 %v1884
        %v2020 = vunpack.c.l.b16 %v1885
        %v2021 = vunpack.c.l.b16 %v1886
        %v2022 = vunpack.c.l.b16 %v1887
        %v2023 = vunpack.c.l.b16 %v1888
        %v2024 = vunpack.c.l.b16 %v1889
        %v2025 = vunpack.c.l.b16 %v1890
        %v2026 = vunpack.c.l.b16 %v1891
        %v2027 = vunpack.c.l.b16 %v1892
        %v2028 = vunpack.c.l.b16 %v1893
        %v2029 = vunpack.c.l.b16 %v1894
        %v2030 = vunpack.c.l.b16 %v1895
        %v2031 = vunpack.c.l.b16 %v1896
        %v2032 = vunpack.c.l.b16 %v1897
        %v2033 = vunpack.c.l.b16 %v1898
        %v2034 = vunpack.c.l.b16 %v1899
        %v2035 = vunpack.c.l.b16 %v1900
        %v2036 = vunpack.c.l.b16 %v1901
        %v2037 = vunpack.c.l.b16 %v1902
        %v2038 = vunpack.c.l.b16 %v1903
        %v2039 = vunpack.c.l.b16 %v1904
        %v2040 = vunpack.c.l.b16 %v1905
        %v2041 = vunpack.c.l.b16 %v1906
        %v2042 = vpack.c.b16 %v1979, %v1978
        %v2043 = vpack.c.b16 %v1981, %v1980
        %v2044 = vpack.c.b16 %v1983, %v1982
        %v2045 = vpack.c.b16 %v1985, %v1984
        %v2046 = vpack.c.b16 %v1987, %v1986
        %v2047 = vpack.c.b16 %v1989, %v1988
        %v2048 = vpack.c.b16 %v1991, %v1990
        %v2049 = vpack.c.b16 %v1993, %v1992
        %v2050 = vpack.c.b16 %v1995, %v1994
        %v2051 = vpack.c.b16 %v1997, %v1996
        %v2052 = vpack.c.b16 %v1999, %v1998
        %v2053 = vpack.c.b16 %v2001, %v2000
        %v2054 = vpack.c.b16 %v2003, %v2002
        %v2055 = vpack.c.b16 %v2005, %v2004
        %v2056 = vpack.c.b16 %v2007, %v2006
        %v2057 = vpack.c.b16 %v2009, %v2008
        %v2058 = vpack.c.b16 %v2011, %v2010
        %v2059 = vpack.c.b16 %v2013, %v2012
        %v2060 = vpack.c.b16 %v2015, %v2014
        %v2061 = vpack.c.b16 %v2017, %v2016
        %v2062 = vpack.c.b16 %v2019, %v2018
        %v2063 = vpack.c.b16 %v2021, %v2020
        %v2064 = vpack.c.b16 %v2023, %v2022
        %v2065 = vpack.c.b16 %v2025, %v2024
        %v2066 = vpack.c.b16 %v2027, %v2026
        %v2067 = vpack.c.b16 %v2029, %v2028
        %v2068 = vpack.c.b16 %v2031, %v2030
        %v2069 = vpack.c.b16 %v2033, %v2032
        %v2070 = vpack.c.b16 %v2035, %v2034
        %v2071 = vpack.c.b16 %v2037, %v2036
        %v2072 = vpack.c.b16 %v2039, %v2038
        %v2073 = vpack.c.b16 %v2041, %v2040
        %2106 = vmatprep.subr.bf16.mxu0 0
        %2107 = vmatpush1.bf16.msra.mxu0 %v2049
        %2108 = vmatprep.subr.bf16.mxu0 0
        %2109 = vmatpush1.bf16.msra.mxu0 %v2048
        %2110 = vmatprep.subr.bf16.mxu0 0
        %2111 = vmatpush1.bf16.msra.mxu0 %v2047
        %2112 = vmatprep.subr.bf16.mxu0 0
        %2113 = vmatpush1.bf16.msra.mxu0 %v2046
        %2114 = vmatprep.subr.bf16.mxu0 0
        %2115 = vmatpush1.bf16.msra.mxu0 %v2045
        %2116 = vmatprep.subr.bf16.mxu0 0
        %2117 = vmatpush1.bf16.msra.mxu0 %v2044
        %2118 = vmatprep.subr.bf16.mxu0 0
        %2119 = vmatpush1.bf16.msra.mxu0 %v2043
        %2120 = vmatprep.subr.bf16.mxu0 0
        %2121 = vmatpush1.bf16.msra.mxu0 %v2042
        %2122 = vmatprep.subr.bf16.mxu0 0
        %2123 = vmatpush2.bf16.msra.mxu0 %v2057
        %2124 = vmatprep.subr.bf16.mxu0 0
        %2125 = vmatpush2.bf16.msra.mxu0 %v2056
        %2126 = vmatprep.subr.bf16.mxu0 0
        %2127 = vmatpush2.bf16.msra.mxu0 %v2055
        %2128 = vmatprep.subr.bf16.mxu0 0
        %2129 = vmatpush2.bf16.msra.mxu0 %v2054
        %2130 = vmatprep.subr.bf16.mxu0 0
        %2131 = vmatpush2.bf16.msra.mxu0 %v2053
        %2132 = vmatprep.subr.bf16.mxu0 0
        %2133 = vmatpush2.bf16.msra.mxu0 %v2052
        %2134 = vmatprep.subr.bf16.mxu0 0
        %2135 = vmatpush2.bf16.msra.mxu0 %v2051
        %2136 = vmatprep.subr.bf16.mxu0 0
        %2137 = vmatpush2.bf16.msra.mxu0 %v2050
        %2138 = vmatprep.mubr.bf16.mxu0 %v1840
        %2139 = vmatmul.mubr.bf16.gmra.mxu0 %v1839
        %v2140 = vpop.f32.mrf.mxu0
        %v2141 = vadd.f32 %v1912, %v2140
        %v2142 = vpop.f32.mrf.mxu0
        %v2143 = vpop.f32.mrf.mxu0
        %v2144 = vpop.f32.mrf.mxu0
        %2145 = vdwg.mxu0
        %2146 = vmatprep.subr.bf16.mxu0 0
        %2147 = vmatpush1.bf16.msra.mxu0 %v2065
        %2148 = vmatprep.subr.bf16.mxu0 0
        %2149 = vmatpush1.bf16.msra.mxu0 %v2064
        %2150 = vmatprep.subr.bf16.mxu0 0
        %2151 = vmatpush1.bf16.msra.mxu0 %v2063
        %2152 = vmatprep.subr.bf16.mxu0 0
        %2153 = vmatpush1.bf16.msra.mxu0 %v2062
        %2154 = vmatprep.subr.bf16.mxu0 0
        %2155 = vmatpush1.bf16.msra.mxu0 %v2061
        %2156 = vmatprep.subr.bf16.mxu0 0
        %2157 = vmatpush1.bf16.msra.mxu0 %v2060
        %2158 = vmatprep.subr.bf16.mxu0 0
        %2159 = vmatpush1.bf16.msra.mxu0 %v2059
        %2160 = vmatprep.subr.bf16.mxu0 0
        %2161 = vmatpush1.bf16.msra.mxu0 %v2058
        %2162 = vmatprep.subr.bf16.mxu0 0
        %2163 = vmatpush2.bf16.msra.mxu0 %v2073
        %2164 = vmatprep.subr.bf16.mxu0 0
        %2165 = vmatpush2.bf16.msra.mxu0 %v2072
        %2166 = vmatprep.subr.bf16.mxu0 0
        %2167 = vmatpush2.bf16.msra.mxu0 %v2071
        %2168 = vmatprep.subr.bf16.mxu0 0
        %2169 = vmatpush2.bf16.msra.mxu0 %v2070
        %2170 = vmatprep.subr.bf16.mxu0 0
        %2171 = vmatpush2.bf16.msra.mxu0 %v2069
        %2172 = vmatprep.subr.bf16.mxu0 0
        %2173 = vmatpush2.bf16.msra.mxu0 %v2068
        %2174 = vmatprep.subr.bf16.mxu0 0
        %2175 = vmatpush2.bf16.msra.mxu0 %v2067
        %2176 = vmatprep.subr.bf16.mxu0 0
        %2177 = vmatpush2.bf16.msra.mxu0 %v2066
        %2178 = vmatprep.mubr.bf16.mxu0 %v1842
        %2179 = vmatmul.mubr.bf16.gmra.mxu0 %v1841
        %v2180 = vpop.f32.mrf.mxu0
        %v2181 = vadd.f32 %v2141, %v2180
        %v2182 = vpop.f32.mrf.mxu0
        %v2183 = vpop.f32.mrf.mxu0
        %v2184 = vpop.f32.mrf.mxu0
        %2185 = vdwg.mxu0
        %v2186 = vadd.f32 %v1474, %v2181
        %s2187 = scalar_lea.vmem %s1, 1
        %v2188 = vld [vmem:[%s2187] sm:$0x1]
        %s2189 = scalar_lea.vmem %s2, 1
        %v2190 = vld [vmem:[%s2189] sm:$0x1]
        %2191 = vadd.xlane.f32.xlu0 %v2186
        %v2192 = vpop.xlane.xlu0 %2191
        %v2193 = vmul.f32 %v2192, %v622
        %v2194 = vsub.f32 %v2186, %v2193
        %v2195 = vmul.f32 %v2194, %v2194
        %2196 = vadd.xlane.f32.xlu0 %v2195
        %v2197 = vpop.xlane.xlu0 %2196
        %v2198 = vmul.f32 %v2197, %v622
        %v2199 = vadd.f32 %v2198, 1e-05
        %v2200 = vrsqrt.pop %v2199
        %v2201 = vmul.f32 %v2194, %v2200
        %v2203 = vlaneseq
        %v2204 = vshrl.u32 %v2203, 7
        %v2205 = vsub.s32 0, %v2204
        %v2206 = vrot.slane %v2188, %v2205
        %v2208 = vmul.f32 %v2201, %v2206
        %v2210 = vlaneseq
        %v2211 = vshrl.u32 %v2210, 7
        %v2212 = vsub.s32 0, %v2211
        %v2213 = vrot.slane %v2190, %v2212
        %v2215 = vadd.f32 %v2208, %v2213
        %v2216 = vpack.c.bf16 %v2215, %v2215
        %s2217 = scalar_lea.vmem [#allocation6], 192
        %v2218 = vld [vmem:[%s2217] sm:$0xff]
        %v2219 = vld [vmem:[%s2217 + $0x8] sm:$0xf]
        %v2220 = vld [vmem:[%s2217 + $0xc] sm:$0xff]
        %v2221 = vld [vmem:[%s2217 + $0x14] sm:$0xf]
        %v2222 = vld [vmem:[%s2217 + $0x18] sm:$0xff]
        %v2223 = vld [vmem:[%s2217 + $0x20] sm:$0xf]
        %v2224 = vld [vmem:[%s2217 + $0x24] sm:$0xff]
        %v2225 = vld [vmem:[%s2217 + $0x2c] sm:$0xf]
        %v2226 = vld [vmem:[%s2217 + $0x30] sm:$0xff]
        %v2227 = vld [vmem:[%s2217 + $0x38] sm:$0xf]
        %v2228 = vld [vmem:[%s2217 + $0x3c] sm:$0xff]
        %v2229 = vld [vmem:[%s2217 + $0x44] sm:$0xf]
        %v2230 = vld [vmem:[%s2217 + $0x48] sm:$0xff]
        %v2231 = vld [vmem:[%s2217 + $0x50] sm:$0xf]
        %v2232 = vld [vmem:[%s2217 + $0x54] sm:$0xff]
        %v2233 = vld [vmem:[%s2217 + $0x5c] sm:$0xf]
        %v2234 = vld [vmem:[%s2217 + $0x60] sm:$0xff]
        %v2235 = vld [vmem:[%s2217 + $0x68] sm:$0xf]
        %v2236 = vld [vmem:[%s2217 + $0x6c] sm:$0xff]
        %v2237 = vld [vmem:[%s2217 + $0x74] sm:$0xf]
        %v2238 = vld [vmem:[%s2217 + $0x78] sm:$0xff]
        %v2239 = vld [vmem:[%s2217 + $0x80] sm:$0xf]
        %v2240 = vld [vmem:[%s2217 + $0x84] sm:$0xff]
        %v2241 = vld [vmem:[%s2217 + $0x8c] sm:$0xf]
        %v2242 = vld [vmem:[%s2217 + $0x90] sm:$0xff]
        %v2243 = vld [vmem:[%s2217 + $0x98] sm:$0xf]
        %v2244 = vld [vmem:[%s2217 + $0x9c] sm:$0xff]
        %v2245 = vld [vmem:[%s2217 + $0xa4] sm:$0xf]
        %v2246 = vld [vmem:[%s2217 + $0xa8] sm:$0xff]
        %v2247 = vld [vmem:[%s2217 + $0xb0] sm:$0xf]
        %v2248 = vld [vmem:[%s2217 + $0xb4] sm:$0xff]
        %v2249 = vld [vmem:[%s2217 + $0xbc] sm:$0xf]
        %v2282 = vunpack.c.l.b16 %v2218
        %v2283 = vunpack.c.h.b16 %v2218
        %v2284 = vunpack.c.l.b16 %v2219
        %v2285 = vunpack.c.l.b16 %v2220
        %v2286 = vunpack.c.h.b16 %v2220
        %v2287 = vunpack.c.l.b16 %v2221
        %v2288 = vunpack.c.l.b16 %v2222
        %v2289 = vunpack.c.h.b16 %v2222
        %v2290 = vunpack.c.l.b16 %v2223
        %v2291 = vunpack.c.l.b16 %v2224
        %v2292 = vunpack.c.h.b16 %v2224
        %v2293 = vunpack.c.l.b16 %v2225
        %v2294 = vunpack.c.l.b16 %v2226
        %v2295 = vunpack.c.h.b16 %v2226
        %v2296 = vunpack.c.l.b16 %v2227
        %v2297 = vunpack.c.l.b16 %v2228
        %v2298 = vunpack.c.h.b16 %v2228
        %v2299 = vunpack.c.l.b16 %v2229
        %v2300 = vunpack.c.l.b16 %v2230
        %v2301 = vunpack.c.h.b16 %v2230
        %v2302 = vunpack.c.l.b16 %v2231
        %v2303 = vunpack.c.l.b16 %v2232
        %v2304 = vunpack.c.h.b16 %v2232
        %v2305 = vunpack.c.l.b16 %v2233
        %v2306 = vunpack.c.l.b16 %v2234
        %v2307 = vunpack.c.h.b16 %v2234
        %v2308 = vunpack.c.l.b16 %v2235
        %v2309 = vunpack.c.l.b16 %v2236
        %v2310 = vunpack.c.h.b16 %v2236
        %v2311 = vunpack.c.l.b16 %v2237
        %v2312 = vunpack.c.l.b16 %v2238
        %v2313 = vunpack.c.h.b16 %v2238
        %v2314 = vunpack.c.l.b16 %v2239
        %v2315 = vunpack.c.l.b16 %v2240
        %v2316 = vunpack.c.h.b16 %v2240
        %v2317 = vunpack.c.l.b16 %v2241
        %v2318 = vunpack.c.l.b16 %v2242
        %v2319 = vunpack.c.h.b16 %v2242
        %v2320 = vunpack.c.l.b16 %v2243
        %v2321 = vunpack.c.l.b16 %v2244
        %v2322 = vunpack.c.h.b16 %v2244
        %v2323 = vunpack.c.l.b16 %v2245
        %v2324 = vunpack.c.l.b16 %v2246
        %v2325 = vunpack.c.h.b16 %v2246
        %v2326 = vunpack.c.l.b16 %v2247
        %v2327 = vunpack.c.l.b16 %v2248
        %v2328 = vunpack.c.h.b16 %v2248
        %v2329 = vunpack.c.l.b16 %v2249
        %v2330 = vpack.c.b16 %v2285, %v2282
        %v2331 = vpack.c.b16 %v2286, %v2283
        %v2332 = vpack.c.b16 %v2287, %v2284
        %v2333 = vpack.c.b16 %v2291, %v2288
        %v2334 = vpack.c.b16 %v2292, %v2289
        %v2335 = vpack.c.b16 %v2293, %v2290
        %v2336 = vpack.c.b16 %v2297, %v2294
        %v2337 = vpack.c.b16 %v2298, %v2295
        %v2338 = vpack.c.b16 %v2299, %v2296
        %v2339 = vpack.c.b16 %v2303, %v2300
        %v2340 = vpack.c.b16 %v2304, %v2301
        %v2341 = vpack.c.b16 %v2305, %v2302
        %v2342 = vpack.c.b16 %v2309, %v2306
        %v2343 = vpack.c.b16 %v2310, %v2307
        %v2344 = vpack.c.b16 %v2311, %v2308
        %v2345 = vpack.c.b16 %v2315, %v2312
        %v2346 = vpack.c.b16 %v2316, %v2313
        %v2347 = vpack.c.b16 %v2317, %v2314
        %v2348 = vpack.c.b16 %v2321, %v2318
        %v2349 = vpack.c.b16 %v2322, %v2319
        %v2350 = vpack.c.b16 %v2323, %v2320
        %v2351 = vpack.c.b16 %v2327, %v2324
        %v2352 = vpack.c.b16 %v2328, %v2325
        %v2353 = vpack.c.b16 %v2329, %v2326
        %2378 = vmatprep.subr.bf16.mxu0 %v2352
        %2379 = vmatpush1.bf16.msra.mxu0 %v2351
        %2380 = vmatprep.subr.bf16.mxu0 %v2349
        %2381 = vmatpush1.bf16.msra.mxu0 %v2348
        %2382 = vmatprep.subr.bf16.mxu0 %v2346
        %2383 = vmatpush1.bf16.msra.mxu0 %v2345
        %2384 = vmatprep.subr.bf16.mxu0 %v2343
        %2385 = vmatpush1.bf16.msra.mxu0 %v2342
        %2386 = vmatprep.subr.bf16.mxu0 %v2340
        %2387 = vmatpush1.bf16.msra.mxu0 %v2339
        %2388 = vmatprep.subr.bf16.mxu0 %v2337
        %2389 = vmatpush1.bf16.msra.mxu0 %v2336
        %2390 = vmatprep.subr.bf16.mxu0 %v2334
        %2391 = vmatpush1.bf16.msra.mxu0 %v2333
        %2392 = vmatprep.subr.bf16.mxu0 %v2331
        %2393 = vmatpush1.bf16.msra.mxu0 %v2330
        %2394 = vmatprep.subr.bf16.mxu0 0
        %2395 = vmatpush2.bf16.msra.mxu0 0
        %2396 = vmatprep.subr.bf16.mxu0 0
        %2397 = vmatpush2.bf16.msra.mxu0 0
        %2398 = vmatprep.subr.bf16.mxu0 0
        %2399 = vmatpush2.bf16.msra.mxu0 0
        %2400 = vmatprep.subr.bf16.mxu0 0
        %2401 = vmatpush2.bf16.msra.mxu0 0
        %2402 = vmatprep.subr.bf16.mxu0 0
        %2403 = vmatpush2.bf16.msra.mxu0 0
        %2404 = vmatprep.subr.bf16.mxu0 0
        %2405 = vmatpush2.bf16.msra.mxu0 0
        %2406 = vmatprep.subr.bf16.mxu0 0
        %2407 = vmatpush2.bf16.msra.mxu0 0
        %2408 = vmatprep.subr.bf16.mxu0 0
        %2409 = vmatpush2.bf16.msra.mxu0 0
        %2410 = vmatprep.mubr.bf16.mxu0 0
        %2411 = vmatmul.mubr.bf16.gmra.mxu0 %v2216
        %v2412 = vpop.f32.mrf.mxu0
        %v2413 = vadd.f32 0.0, %v2412
        %v2414 = vpop.f32.mrf.mxu0
        %v2415 = vadd.f32 0.0, %v2414
        %v2416 = vpop.f32.mrf.mxu0
        %v2417 = vpop.f32.mrf.mxu0
        %2418 = vdwg.mxu0
        %2419 = vmatprep.subr.bf16.mxu0 0
        %2420 = vmatpush1.bf16.msra.mxu0 %v2353
        %2421 = vmatprep.subr.bf16.mxu0 0
        %2422 = vmatpush1.bf16.msra.mxu0 %v2350
        %2423 = vmatprep.subr.bf16.mxu0 0
        %2424 = vmatpush1.bf16.msra.mxu0 %v2347
        %2425 = vmatprep.subr.bf16.mxu0 0
        %2426 = vmatpush1.bf16.msra.mxu0 %v2344
        %2427 = vmatprep.subr.bf16.mxu0 0
        %2428 = vmatpush1.bf16.msra.mxu0 %v2341
        %2429 = vmatprep.subr.bf16.mxu0 0
        %2430 = vmatpush1.bf16.msra.mxu0 %v2338
        %2431 = vmatprep.subr.bf16.mxu0 0
        %2432 = vmatpush1.bf16.msra.mxu0 %v2335
        %2433 = vmatprep.subr.bf16.mxu0 0
        %2434 = vmatpush1.bf16.msra.mxu0 %v2332
        %2435 = vmatprep.subr.bf16.mxu0 0
        %2436 = vmatpush2.bf16.msra.mxu0 0
        %2437 = vmatprep.subr.bf16.mxu0 0
        %2438 = vmatpush2.bf16.msra.mxu0 0
        %2439 = vmatprep.subr.bf16.mxu0 0
        %2440 = vmatpush2.bf16.msra.mxu0 0
        %2441 = vmatprep.subr.bf16.mxu0 0
        %2442 = vmatpush2.bf16.msra.mxu0 0
        %2443 = vmatprep.subr.bf16.mxu0 0
        %2444 = vmatpush2.bf16.msra.mxu0 0
        %2445 = vmatprep.subr.bf16.mxu0 0
        %2446 = vmatpush2.bf16.msra.mxu0 0
        %2447 = vmatprep.subr.bf16.mxu0 0
        %2448 = vmatpush2.bf16.msra.mxu0 0
        %2449 = vmatprep.subr.bf16.mxu0 0
        %2450 = vmatpush2.bf16.msra.mxu0 0
        %2451 = vmatprep.mubr.bf16.mxu0 0
        %2452 = vmatmul.mubr.bf16.gmra.mxu0 %v2216
        %v2453 = vpop.f32.mrf.mxu0
        %v2454 = vadd.f32 0.0, %v2453
        %v2455 = vpop.f32.mrf.mxu0
        %v2456 = vpop.f32.mrf.mxu0
        %v2457 = vpop.f32.mrf.mxu0
        %2458 = vdwg.mxu0
        %v2459 = vpack.c.bf16 %v2413, %v2413
        %v2460 = vpack.c.bf16 %v2415, %v2415
        %v2461 = vpack.c.bf16 %v2454, %v2454
        %v2463 = vsel %vm891, %v2459, 0
        %v2466 = vsel %vm891, %v2460, 0
        %2468 = vmatprep.subr.bf16.mxu0 0
        %2469 = vmatpush1.bf16.xpose.msra.mxu0 0
        %2470 = vmatprep.subr.bf16.mxu0 0
        %2471 = vmatpush1.bf16.xpose.msra.mxu0 0
        %2472 = vmatprep.subr.bf16.mxu0 0
        %2473 = vmatpush1.bf16.xpose.msra.mxu0 0
        %2474 = vmatprep.subr.bf16.mxu0 0
        %2475 = vmatpush1.bf16.xpose.msra.mxu0 0
        %2476 = vmatprep.subr.bf16.mxu0 0
        %2477 = vmatpush1.bf16.xpose.msra.mxu0 0
        %2478 = vmatprep.subr.bf16.mxu0 0
        %2479 = vmatpush1.bf16.xpose.msra.mxu0 0
        %2480 = vmatprep.subr.bf16.mxu0 0
        %2481 = vmatpush1.bf16.xpose.msra.mxu0 0
        %2482 = vmatprep.subr.bf16.mxu0 0
        %2483 = vmatpush1.bf16.xpose.msra.mxu0 %v2466
        %2484 = vmatprep.subr.bf16.mxu0 0
        %2485 = vmatpush2.bf16.xpose.msra.mxu0 0
        %2486 = vmatprep.subr.bf16.mxu0 0
        %2487 = vmatpush2.bf16.xpose.msra.mxu0 0
        %2488 = vmatprep.subr.bf16.mxu0 0
        %2489 = vmatpush2.bf16.xpose.msra.mxu0 0
        %2490 = vmatprep.subr.bf16.mxu0 0
        %2491 = vmatpush2.bf16.xpose.msra.mxu0 0
        %2492 = vmatprep.subr.bf16.mxu0 0
        %2493 = vmatpush2.bf16.xpose.msra.mxu0 0
        %2494 = vmatprep.subr.bf16.mxu0 0
        %2495 = vmatpush2.bf16.xpose.msra.mxu0 0
        %2496 = vmatprep.subr.bf16.mxu0 0
        %2497 = vmatpush2.bf16.xpose.msra.mxu0 0
        %2498 = vmatprep.subr.bf16.mxu0 0
        %2499 = vmatpush2.bf16.xpose.msra.mxu0 0
        %2500 = vmatprep.mubr.bf16.mxu0 0
        %2501 = vmatmul.mubr.bf16.gmra.mxu0 %v2463
        %v2502 = vpop.f32.mrf.mxu0
        %v2503 = vadd.f32 %v617, %v2502
        %v2504 = vpop.f32.mrf.mxu0
        %v2505 = vpop.f32.mrf.mxu0
        %v2506 = vpop.f32.mrf.mxu0
        %2507 = vdwg.mxu0
        %v2508 = vsel %vm938, %v2503, -inf
        %2509 = vmax.xlane.f32.xlu0 %v2508
        %v2510 = vpop.xlane.xlu0 %2509
        %v2511 = vsub.f32 %v2503, %v2510
        %v2512 = vmul.f32 %v2511, 1.442695
        %v2513 = vpow.pop %v2512
        %v2514 = vsel %vm938, %v2513, 0.0
        %2515 = vadd.xlane.f32.xlu0 %v2514
        %v2516 = vpop.xlane.xlu0 %2515
        %v2517 = vrcp.pop %v2516
        %v2518 = vmul.f32 %v2513, %v2517
        %v2519 = vpack.c.bf16 %v2518, %v2518
        %v2521 = vsel %vm938, %v2519, 0
        %v2524 = vsel %vm954, %v2461, 0
        %2526 = vmatprep.subr.bf16.mxu0 0
        %2527 = vmatpush1.bf16.msra.mxu0 0
        %2528 = vmatprep.subr.bf16.mxu0 0
        %2529 = vmatpush1.bf16.msra.mxu0 0
        %2530 = vmatprep.subr.bf16.mxu0 0
        %2531 = vmatpush1.bf16.msra.mxu0 0
        %2532 = vmatprep.subr.bf16.mxu0 0
        %2533 = vmatpush1.bf16.msra.mxu0 0
        %2534 = vmatprep.subr.bf16.mxu0 0
        %2535 = vmatpush1.bf16.msra.mxu0 0
        %2536 = vmatprep.subr.bf16.mxu0 0
        %2537 = vmatpush1.bf16.msra.mxu0 0
        %2538 = vmatprep.subr.bf16.mxu0 0
        %2539 = vmatpush1.bf16.msra.mxu0 0
        %2540 = vmatprep.subr.bf16.mxu0 0
        %2541 = vmatpush1.bf16.msra.mxu0 %v2524
        %2542 = vmatprep.subr.bf16.mxu0 0
        %2543 = vmatpush2.bf16.msra.mxu0 0
        %2544 = vmatprep.subr.bf16.mxu0 0
        %2545 = vmatpush2.bf16.msra.mxu0 0
        %2546 = vmatprep.subr.bf16.mxu0 0
        %2547 = vmatpush2.bf16.msra.mxu0 0
        %2548 = vmatprep.subr.bf16.mxu0 0
        %2549 = vmatpush2.bf16.msra.mxu0 0
        %2550 = vmatprep.subr.bf16.mxu0 0
        %2551 = vmatpush2.bf16.msra.mxu0 0
        %2552 = vmatprep.subr.bf16.mxu0 0
        %2553 = vmatpush2.bf16.msra.mxu0 0
        %2554 = vmatprep.subr.bf16.mxu0 0
        %2555 = vmatpush2.bf16.msra.mxu0 0
        %2556 = vmatprep.subr.bf16.mxu0 0
        %2557 = vmatpush2.bf16.msra.mxu0 0
        %2558 = vmatprep.mubr.bf16.mxu0 0
        %2559 = vmatmul.mubr.bf16.gmra.mxu0 %v2521
        %v2560 = vpop.f32.mrf.mxu0
        %v2561 = vadd.f32 0.0, %v2560
        %v2562 = vpop.f32.mrf.mxu0
        %v2563 = vpop.f32.mrf.mxu0
        %v2564 = vpop.f32.mrf.mxu0
        %2565 = vdwg.mxu0
        %v2566 = vpack.c.bf16 %v2561, %v2561
        %2567 = vst.msk [vmem:[#allocation2] sm:$0xf] %vm999, %v2566
        %2569 = vrot.lane.b32.xlu0 %v2459, 96
        %v2570 = vpop.permute.xlu0 %2569
        %2572 = vrot.lane.b32.xlu0 %v2460, 96
        %v2573 = vpop.permute.xlu0 %2572
        %v2575 = vsel %vm891, %v2570, 0
        %v2578 = vsel %vm891, %v2573, 0
        %2580 = vmatprep.subr.bf16.mxu0 0
        %2581 = vmatpush1.bf16.xpose.msra.mxu0 0
        %2582 = vmatprep.subr.bf16.mxu0 0
        %2583 = vmatpush1.bf16.xpose.msra.mxu0 0
        %2584 = vmatprep.subr.bf16.mxu0 0
        %2585 = vmatpush1.bf16.xpose.msra.mxu0 0
        %2586 = vmatprep.subr.bf16.mxu0 0
        %2587 = vmatpush1.bf16.xpose.msra.mxu0 0
        %2588 = vmatprep.subr.bf16.mxu0 0
        %2589 = vmatpush1.bf16.xpose.msra.mxu0 0
        %2590 = vmatprep.subr.bf16.mxu0 0
        %2591 = vmatpush1.bf16.xpose.msra.mxu0 0
        %2592 = vmatprep.subr.bf16.mxu0 0
        %2593 = vmatpush1.bf16.xpose.msra.mxu0 0
        %2594 = vmatprep.subr.bf16.mxu0 0
        %2595 = vmatpush1.bf16.xpose.msra.mxu0 %v2578
        %2596 = vmatprep.subr.bf16.mxu0 0
        %2597 = vmatpush2.bf16.xpose.msra.mxu0 0
        %2598 = vmatprep.subr.bf16.mxu0 0
        %2599 = vmatpush2.bf16.xpose.msra.mxu0 0
        %2600 = vmatprep.subr.bf16.mxu0 0
        %2601 = vmatpush2.bf16.xpose.msra.mxu0 0
        %2602 = vmatprep.subr.bf16.mxu0 0
        %2603 = vmatpush2.bf16.xpose.msra.mxu0 0
        %2604 = vmatprep.subr.bf16.mxu0 0
        %2605 = vmatpush2.bf16.xpose.msra.mxu0 0
        %2606 = vmatprep.subr.bf16.mxu0 0
        %2607 = vmatpush2.bf16.xpose.msra.mxu0 0
        %2608 = vmatprep.subr.bf16.mxu0 0
        %2609 = vmatpush2.bf16.xpose.msra.mxu0 0
        %2610 = vmatprep.subr.bf16.mxu0 0
        %2611 = vmatpush2.bf16.xpose.msra.mxu0 0
        %2612 = vmatprep.mubr.bf16.mxu0 0
        %2613 = vmatmul.mubr.bf16.gmra.mxu0 %v2575
        %v2614 = vpop.f32.mrf.mxu0
        %v2615 = vadd.f32 %v617, %v2614
        %v2616 = vpop.f32.mrf.mxu0
        %v2617 = vpop.f32.mrf.mxu0
        %v2618 = vpop.f32.mrf.mxu0
        %2619 = vdwg.mxu0
        %v2620 = vsel %vm938, %v2615, -inf
        %2621 = vmax.xlane.f32.xlu0 %v2620
        %v2622 = vpop.xlane.xlu0 %2621
        %v2623 = vsub.f32 %v2615, %v2622
        %v2624 = vmul.f32 %v2623, 1.442695
        %v2625 = vpow.pop %v2624
        %v2626 = vsel %vm938, %v2625, 0.0
        %2627 = vadd.xlane.f32.xlu0 %v2626
        %v2628 = vpop.xlane.xlu0 %2627
        %v2629 = vrcp.pop %v2628
        %v2630 = vmul.f32 %v2625, %v2629
        %v2631 = vpack.c.bf16 %v2630, %v2630
        %2633 = vrot.lane.b32.xlu0 %v2461, 96
        %v2634 = vpop.permute.xlu0 %2633
        %v2636 = vsel %vm938, %v2631, 0
        %v2639 = vsel %vm954, %v2634, 0
        %2641 = vmatprep.subr.bf16.mxu0 0
        %2642 = vmatpush1.bf16.msra.mxu0 0
        %2643 = vmatprep.subr.bf16.mxu0 0
        %2644 = vmatpush1.bf16.msra.mxu0 0
        %2645 = vmatprep.subr.bf16.mxu0 0
        %2646 = vmatpush1.bf16.msra.mxu0 0
        %2647 = vmatprep.subr.bf16.mxu0 0
        %2648 = vmatpush1.bf16.msra.mxu0 0
        %2649 = vmatprep.subr.bf16.mxu0 0
        %2650 = vmatpush1.bf16.msra.mxu0 0
        %2651 = vmatprep.subr.bf16.mxu0 0
        %2652 = vmatpush1.bf16.msra.mxu0 0
        %2653 = vmatprep.subr.bf16.mxu0 0
        %2654 = vmatpush1.bf16.msra.mxu0 0
        %2655 = vmatprep.subr.bf16.mxu0 0
        %2656 = vmatpush1.bf16.msra.mxu0 %v2639
        %2657 = vmatprep.subr.bf16.mxu0 0
        %2658 = vmatpush2.bf16.msra.mxu0 0
        %2659 = vmatprep.subr.bf16.mxu0 0
        %2660 = vmatpush2.bf16.msra.mxu0 0
        %2661 = vmatprep.subr.bf16.mxu0 0
        %2662 = vmatpush2.bf16.msra.mxu0 0
        %2663 = vmatprep.subr.bf16.mxu0 0
        %2664 = vmatpush2.bf16.msra.mxu0 0
        %2665 = vmatprep.subr.bf16.mxu0 0
        %2666 = vmatpush2.bf16.msra.mxu0 0
        %2667 = vmatprep.subr.bf16.mxu0 0
        %2668 = vmatpush2.bf16.msra.mxu0 0
        %2669 = vmatprep.subr.bf16.mxu0 0
        %2670 = vmatpush2.bf16.msra.mxu0 0
        %2671 = vmatprep.subr.bf16.mxu0 0
        %2672 = vmatpush2.bf16.msra.mxu0 0
        %2673 = vmatprep.mubr.bf16.mxu0 0
        %2674 = vmatmul.mubr.bf16.gmra.mxu0 %v2636
        %v2675 = vpop.f32.mrf.mxu0
        %v2676 = vadd.f32 0.0, %v2675
        %v2677 = vpop.f32.mrf.mxu0
        %v2678 = vpop.f32.mrf.mxu0
        %v2679 = vpop.f32.mrf.mxu0
        %2680 = vdwg.mxu0
        %v2681 = vpack.c.bf16 %v2676, %v2676
        %v2683 = vunpack.c.l.b16 %v2681
        %v2684 = vpack.c.b16 %v2683, %v2683
        %2685 = vrot.lane.b32.xlu0 %v2684, 32
        %v2686 = vpop.permute.xlu0 %2685
        %2688 = vst.msk [vmem:[#allocation2] sm:$0xf] %vm1121, %v2686
        %2689 = vrot.lane.b32.xlu0 %v2459, 64
        %v2690 = vpop.permute.xlu0 %2689
        %2691 = vrot.lane.b32.xlu0 %v2460, 64
        %v2692 = vpop.permute.xlu0 %2691
        %v2694 = vsel %vm891, %v2690, 0
        %v2697 = vsel %vm891, %v2692, 0
        %2699 = vmatprep.subr.bf16.mxu0 0
        %2700 = vmatpush1.bf16.xpose.msra.mxu0 0
        %2701 = vmatprep.subr.bf16.mxu0 0
        %2702 = vmatpush1.bf16.xpose.msra.mxu0 0
        %2703 = vmatprep.subr.bf16.mxu0 0
        %2704 = vmatpush1.bf16.xpose.msra.mxu0 0
        %2705 = vmatprep.subr.bf16.mxu0 0
        %2706 = vmatpush1.bf16.xpose.msra.mxu0 0
        %2707 = vmatprep.subr.bf16.mxu0 0
        %2708 = vmatpush1.bf16.xpose.msra.mxu0 0
        %2709 = vmatprep.subr.bf16.mxu0 0
        %2710 = vmatpush1.bf16.xpose.msra.mxu0 0
        %2711 = vmatprep.subr.bf16.mxu0 0
        %2712 = vmatpush1.bf16.xpose.msra.mxu0 0
        %2713 = vmatprep.subr.bf16.mxu0 0
        %2714 = vmatpush1.bf16.xpose.msra.mxu0 %v2697
        %2715 = vmatprep.subr.bf16.mxu0 0
        %2716 = vmatpush2.bf16.xpose.msra.mxu0 0
        %2717 = vmatprep.subr.bf16.mxu0 0
        %2718 = vmatpush2.bf16.xpose.msra.mxu0 0
        %2719 = vmatprep.subr.bf16.mxu0 0
        %2720 = vmatpush2.bf16.xpose.msra.mxu0 0
        %2721 = vmatprep.subr.bf16.mxu0 0
        %2722 = vmatpush2.bf16.xpose.msra.mxu0 0
        %2723 = vmatprep.subr.bf16.mxu0 0
        %2724 = vmatpush2.bf16.xpose.msra.mxu0 0
        %2725 = vmatprep.subr.bf16.mxu0 0
        %2726 = vmatpush2.bf16.xpose.msra.mxu0 0
        %2727 = vmatprep.subr.bf16.mxu0 0
        %2728 = vmatpush2.bf16.xpose.msra.mxu0 0
        %2729 = vmatprep.subr.bf16.mxu0 0
        %2730 = vmatpush2.bf16.xpose.msra.mxu0 0
        %2731 = vmatprep.mubr.bf16.mxu0 0
        %2732 = vmatmul.mubr.bf16.gmra.mxu0 %v2694
        %v2733 = vpop.f32.mrf.mxu0
        %v2734 = vadd.f32 %v617, %v2733
        %v2735 = vpop.f32.mrf.mxu0
        %v2736 = vpop.f32.mrf.mxu0
        %v2737 = vpop.f32.mrf.mxu0
        %2738 = vdwg.mxu0
        %v2739 = vsel %vm938, %v2734, -inf
        %2740 = vmax.xlane.f32.xlu0 %v2739
        %v2741 = vpop.xlane.xlu0 %2740
        %v2742 = vsub.f32 %v2734, %v2741
        %v2743 = vmul.f32 %v2742, 1.442695
        %v2744 = vpow.pop %v2743
        %v2745 = vsel %vm938, %v2744, 0.0
        %2746 = vadd.xlane.f32.xlu0 %v2745
        %v2747 = vpop.xlane.xlu0 %2746
        %v2748 = vrcp.pop %v2747
        %v2749 = vmul.f32 %v2744, %v2748
        %v2750 = vpack.c.bf16 %v2749, %v2749
        %2751 = vrot.lane.b32.xlu0 %v2461, 64
        %v2752 = vpop.permute.xlu0 %2751
        %v2754 = vsel %vm938, %v2750, 0
        %v2757 = vsel %vm954, %v2752, 0
        %2759 = vmatprep.subr.bf16.mxu0 0
        %2760 = vmatpush1.bf16.msra.mxu0 0
        %2761 = vmatprep.subr.bf16.mxu0 0
        %2762 = vmatpush1.bf16.msra.mxu0 0
        %2763 = vmatprep.subr.bf16.mxu0 0
        %2764 = vmatpush1.bf16.msra.mxu0 0
        %2765 = vmatprep.subr.bf16.mxu0 0
        %2766 = vmatpush1.bf16.msra.mxu0 0
        %2767 = vmatprep.subr.bf16.mxu0 0
        %2768 = vmatpush1.bf16.msra.mxu0 0
        %2769 = vmatprep.subr.bf16.mxu0 0
        %2770 = vmatpush1.bf16.msra.mxu0 0
        %2771 = vmatprep.subr.bf16.mxu0 0
        %2772 = vmatpush1.bf16.msra.mxu0 0
        %2773 = vmatprep.subr.bf16.mxu0 0
        %2774 = vmatpush1.bf16.msra.mxu0 %v2757
        %2775 = vmatprep.subr.bf16.mxu0 0
        %2776 = vmatpush2.bf16.msra.mxu0 0
        %2777 = vmatprep.subr.bf16.mxu0 0
        %2778 = vmatpush2.bf16.msra.mxu0 0
        %2779 = vmatprep.subr.bf16.mxu0 0
        %2780 = vmatpush2.bf16.msra.mxu0 0
        %2781 = vmatprep.subr.bf16.mxu0 0
        %2782 = vmatpush2.bf16.msra.mxu0 0
        %2783 = vmatprep.subr.bf16.mxu0 0
        %2784 = vmatpush2.bf16.msra.mxu0 0
        %2785 = vmatprep.subr.bf16.mxu0 0
        %2786 = vmatpush2.bf16.msra.mxu0 0
        %2787 = vmatprep.subr.bf16.mxu0 0
        %2788 = vmatpush2.bf16.msra.mxu0 0
        %2789 = vmatprep.subr.bf16.mxu0 0
        %2790 = vmatpush2.bf16.msra.mxu0 0
        %2791 = vmatprep.mubr.bf16.mxu0 0
        %2792 = vmatmul.mubr.bf16.gmra.mxu0 %v2754
        %v2793 = vpop.f32.mrf.mxu0
        %v2794 = vadd.f32 0.0, %v2793
        %v2795 = vpop.f32.mrf.mxu0
        %v2796 = vpop.f32.mrf.mxu0
        %v2797 = vpop.f32.mrf.mxu0
        %2798 = vdwg.mxu0
        %v2799 = vpack.c.bf16 %v2794, %v2794
        %v2801 = vunpack.c.l.b16 %v2799
        %v2802 = vpack.c.b16 %v2801, %v2801
        %2803 = vrot.lane.b32.xlu0 %v2802, 64
        %v2804 = vpop.permute.xlu0 %2803
        %2806 = vst.msk [vmem:[#allocation2] sm:$0xf] %vm1240, %v2804
        %2807 = vrot.lane.b32.xlu0 %v2459, 32
        %v2808 = vpop.permute.xlu0 %2807
        %2809 = vrot.lane.b32.xlu0 %v2460, 32
        %v2810 = vpop.permute.xlu0 %2809
        %v2812 = vsel %vm891, %v2808, 0
        %v2815 = vsel %vm891, %v2810, 0
        %2817 = vmatprep.subr.bf16.mxu0 0
        %2818 = vmatpush1.bf16.xpose.msra.mxu0 0
        %2819 = vmatprep.subr.bf16.mxu0 0
        %2820 = vmatpush1.bf16.xpose.msra.mxu0 0
        %2821 = vmatprep.subr.bf16.mxu0 0
        %2822 = vmatpush1.bf16.xpose.msra.mxu0 0
        %2823 = vmatprep.subr.bf16.mxu0 0
        %2824 = vmatpush1.bf16.xpose.msra.mxu0 0
        %2825 = vmatprep.subr.bf16.mxu0 0
        %2826 = vmatpush1.bf16.xpose.msra.mxu0 0
        %2827 = vmatprep.subr.bf16.mxu0 0
        %2828 = vmatpush1.bf16.xpose.msra.mxu0 0
        %2829 = vmatprep.subr.bf16.mxu0 0
        %2830 = vmatpush1.bf16.xpose.msra.mxu0 0
        %2831 = vmatprep.subr.bf16.mxu0 0
        %2832 = vmatpush1.bf16.xpose.msra.mxu0 %v2815
        %2833 = vmatprep.subr.bf16.mxu0 0
        %2834 = vmatpush2.bf16.xpose.msra.mxu0 0
        %2835 = vmatprep.subr.bf16.mxu0 0
        %2836 = vmatpush2.bf16.xpose.msra.mxu0 0
        %2837 = vmatprep.subr.bf16.mxu0 0
        %2838 = vmatpush2.bf16.xpose.msra.mxu0 0
        %2839 = vmatprep.subr.bf16.mxu0 0
        %2840 = vmatpush2.bf16.xpose.msra.mxu0 0
        %2841 = vmatprep.subr.bf16.mxu0 0
        %2842 = vmatpush2.bf16.xpose.msra.mxu0 0
        %2843 = vmatprep.subr.bf16.mxu0 0
        %2844 = vmatpush2.bf16.xpose.msra.mxu0 0
        %2845 = vmatprep.subr.bf16.mxu0 0
        %2846 = vmatpush2.bf16.xpose.msra.mxu0 0
        %2847 = vmatprep.subr.bf16.mxu0 0
        %2848 = vmatpush2.bf16.xpose.msra.mxu0 0
        %2849 = vmatprep.mubr.bf16.mxu0 0
        %2850 = vmatmul.mubr.bf16.gmra.mxu0 %v2812
        %v2851 = vpop.f32.mrf.mxu0
        %v2852 = vadd.f32 %v617, %v2851
        %v2853 = vpop.f32.mrf.mxu0
        %v2854 = vpop.f32.mrf.mxu0
        %v2855 = vpop.f32.mrf.mxu0
        %2856 = vdwg.mxu0
        %v2857 = vsel %vm938, %v2852, -inf
        %2858 = vmax.xlane.f32.xlu0 %v2857
        %v2859 = vpop.xlane.xlu0 %2858
        %v2860 = vsub.f32 %v2852, %v2859
        %v2861 = vmul.f32 %v2860, 1.442695
        %v2862 = vpow.pop %v2861
        %v2863 = vsel %vm938, %v2862, 0.0
        %2864 = vadd.xlane.f32.xlu0 %v2863
        %v2865 = vpop.xlane.xlu0 %2864
        %v2866 = vrcp.pop %v2865
        %v2867 = vmul.f32 %v2862, %v2866
        %v2868 = vpack.c.bf16 %v2867, %v2867
        %2869 = vrot.lane.b32.xlu0 %v2461, 32
        %v2870 = vpop.permute.xlu0 %2869
        %v2872 = vsel %vm938, %v2868, 0
        %v2875 = vsel %vm954, %v2870, 0
        %2877 = vmatprep.subr.bf16.mxu0 0
        %2878 = vmatpush1.bf16.msra.mxu0 0
        %2879 = vmatprep.subr.bf16.mxu0 0
        %2880 = vmatpush1.bf16.msra.mxu0 0
        %2881 = vmatprep.subr.bf16.mxu0 0
        %2882 = vmatpush1.bf16.msra.mxu0 0
        %2883 = vmatprep.subr.bf16.mxu0 0
        %2884 = vmatpush1.bf16.msra.mxu0 0
        %2885 = vmatprep.subr.bf16.mxu0 0
        %2886 = vmatpush1.bf16.msra.mxu0 0
        %2887 = vmatprep.subr.bf16.mxu0 0
        %2888 = vmatpush1.bf16.msra.mxu0 0
        %2889 = vmatprep.subr.bf16.mxu0 0
        %2890 = vmatpush1.bf16.msra.mxu0 0
        %2891 = vmatprep.subr.bf16.mxu0 0
        %2892 = vmatpush1.bf16.msra.mxu0 %v2875
        %2893 = vmatprep.subr.bf16.mxu0 0
        %2894 = vmatpush2.bf16.msra.mxu0 0
        %2895 = vmatprep.subr.bf16.mxu0 0
        %2896 = vmatpush2.bf16.msra.mxu0 0
        %2897 = vmatprep.subr.bf16.mxu0 0
        %2898 = vmatpush2.bf16.msra.mxu0 0
        %2899 = vmatprep.subr.bf16.mxu0 0
        %2900 = vmatpush2.bf16.msra.mxu0 0
        %2901 = vmatprep.subr.bf16.mxu0 0
        %2902 = vmatpush2.bf16.msra.mxu0 0
        %2903 = vmatprep.subr.bf16.mxu0 0
        %2904 = vmatpush2.bf16.msra.mxu0 0
        %2905 = vmatprep.subr.bf16.mxu0 0
        %2906 = vmatpush2.bf16.msra.mxu0 0
        %2907 = vmatprep.subr.bf16.mxu0 0
        %2908 = vmatpush2.bf16.msra.mxu0 0
        %2909 = vmatprep.mubr.bf16.mxu0 0
        %2910 = vmatmul.mubr.bf16.gmra.mxu0 %v2872
        %v2911 = vpop.f32.mrf.mxu0
        %v2912 = vadd.f32 0.0, %v2911
        %v2913 = vpop.f32.mrf.mxu0
        %v2914 = vpop.f32.mrf.mxu0
        %v2915 = vpop.f32.mrf.mxu0
        %2916 = vdwg.mxu0
        %v2917 = vpack.c.bf16 %v2912, %v2912
        %v2919 = vunpack.c.l.b16 %v2917
        %v2920 = vpack.c.b16 %v2919, %v2919
        %2921 = vrot.lane.b32.xlu0 %v2920, 96
        %v2922 = vpop.permute.xlu0 %2921
        %2924 = vst.msk [vmem:[#allocation2] sm:$0xf] %vm1359, %v2922
        %v2925 = vld [vmem:[#allocation2] sm:$0xf]
        %s2926 = scalar_lea.vmem [#allocation8], 64
        %v2927 = vld [vmem:[%s2926] sm:$0xf]
        %v2928 = vld [vmem:[%s2926 + $0x4] sm:$0xf]
        %v2929 = vld [vmem:[%s2926 + $0x8] sm:$0xf]
        %v2930 = vld [vmem:[%s2926 + $0xc] sm:$0xf]
        %v2931 = vld [vmem:[%s2926 + $0x10] sm:$0xf]
        %v2932 = vld [vmem:[%s2926 + $0x14] sm:$0xf]
        %v2933 = vld [vmem:[%s2926 + $0x18] sm:$0xf]
        %v2934 = vld [vmem:[%s2926 + $0x1c] sm:$0xf]
        %v2935 = vld [vmem:[%s2926 + $0x20] sm:$0xf]
        %v2936 = vld [vmem:[%s2926 + $0x24] sm:$0xf]
        %v2937 = vld [vmem:[%s2926 + $0x28] sm:$0xf]
        %v2938 = vld [vmem:[%s2926 + $0x2c] sm:$0xf]
        %v2939 = vld [vmem:[%s2926 + $0x30] sm:$0xf]
        %v2940 = vld [vmem:[%s2926 + $0x34] sm:$0xf]
        %v2941 = vld [vmem:[%s2926 + $0x38] sm:$0xf]
        %v2942 = vld [vmem:[%s2926 + $0x3c] sm:$0xf]
        %v2959 = vunpack.c.l.b16 %v2927
        %v2960 = vunpack.c.l.b16 %v2928
        %v2961 = vunpack.c.l.b16 %v2929
        %v2962 = vunpack.c.l.b16 %v2930
        %v2963 = vunpack.c.l.b16 %v2931
        %v2964 = vunpack.c.l.b16 %v2932
        %v2965 = vunpack.c.l.b16 %v2933
        %v2966 = vunpack.c.l.b16 %v2934
        %v2967 = vunpack.c.l.b16 %v2935
        %v2968 = vunpack.c.l.b16 %v2936
        %v2969 = vunpack.c.l.b16 %v2937
        %v2970 = vunpack.c.l.b16 %v2938
        %v2971 = vunpack.c.l.b16 %v2939
        %v2972 = vunpack.c.l.b16 %v2940
        %v2973 = vunpack.c.l.b16 %v2941
        %v2974 = vunpack.c.l.b16 %v2942
        %v2975 = vpack.c.b16 %v2960, %v2959
        %v2976 = vpack.c.b16 %v2962, %v2961
        %v2977 = vpack.c.b16 %v2964, %v2963
        %v2978 = vpack.c.b16 %v2966, %v2965
        %v2979 = vpack.c.b16 %v2968, %v2967
        %v2980 = vpack.c.b16 %v2970, %v2969
        %v2981 = vpack.c.b16 %v2972, %v2971
        %v2982 = vpack.c.b16 %v2974, %v2973
        %2991 = vmatprep.subr.bf16.mxu0 0
        %2992 = vmatpush1.bf16.msra.mxu0 %v2982
        %2993 = vmatprep.subr.bf16.mxu0 0
        %2994 = vmatpush1.bf16.msra.mxu0 %v2981
        %2995 = vmatprep.subr.bf16.mxu0 0
        %2996 = vmatpush1.bf16.msra.mxu0 %v2980
        %2997 = vmatprep.subr.bf16.mxu0 0
        %2998 = vmatpush1.bf16.msra.mxu0 %v2979
        %2999 = vmatprep.subr.bf16.mxu0 0
        %3000 = vmatpush1.bf16.msra.mxu0 %v2978
        %3001 = vmatprep.subr.bf16.mxu0 0
        %3002 = vmatpush1.bf16.msra.mxu0 %v2977
        %3003 = vmatprep.subr.bf16.mxu0 0
        %3004 = vmatpush1.bf16.msra.mxu0 %v2976
        %3005 = vmatprep.subr.bf16.mxu0 0
        %3006 = vmatpush1.bf16.msra.mxu0 %v2975
        %3007 = vmatprep.subr.bf16.mxu0 0
        %3008 = vmatpush2.bf16.msra.mxu0 0
        %3009 = vmatprep.subr.bf16.mxu0 0
        %3010 = vmatpush2.bf16.msra.mxu0 0
        %3011 = vmatprep.subr.bf16.mxu0 0
        %3012 = vmatpush2.bf16.msra.mxu0 0
        %3013 = vmatprep.subr.bf16.mxu0 0
        %3014 = vmatpush2.bf16.msra.mxu0 0
        %3015 = vmatprep.subr.bf16.mxu0 0
        %3016 = vmatpush2.bf16.msra.mxu0 0
        %3017 = vmatprep.subr.bf16.mxu0 0
        %3018 = vmatpush2.bf16.msra.mxu0 0
        %3019 = vmatprep.subr.bf16.mxu0 0
        %3020 = vmatpush2.bf16.msra.mxu0 0
        %3021 = vmatprep.subr.bf16.mxu0 0
        %3022 = vmatpush2.bf16.msra.mxu0 0
        %3023 = vmatprep.mubr.bf16.mxu0 0
        %3024 = vmatmul.mubr.bf16.gmra.mxu0 %v2925
        %v3025 = vpop.f32.mrf.mxu0
        %v3026 = vadd.f32 0.0, %v3025
        %v3027 = vpop.f32.mrf.mxu0
        %v3028 = vpop.f32.mrf.mxu0
        %v3029 = vpop.f32.mrf.mxu0
        %3030 = vdwg.mxu0
        %v3031 = vadd.f32 %v2186, %v3026
        %s3032 = scalar_lea.vmem %s5, 1
        %v3033 = vld [vmem:[%s3032] sm:$0x1]
        %v3035 = vlaneseq
        %v3036 = vshrl.u32 %v3035, 7
        %v3037 = vsub.s32 0, %v3036
        %v3038 = vrot.slane %v3033, %v3037
        %v3040 = vadd.f32 %v3031, %v3038
        %s3041 = scalar_lea.vmem %s6, 1
        %v3042 = vld [vmem:[%s3041] sm:$0x1]
        %s3043 = scalar_lea.vmem %s7, 1
        %v3044 = vld [vmem:[%s3043] sm:$0x1]
        %3045 = vadd.xlane.f32.xlu0 %v3040
        %v3046 = vpop.xlane.xlu0 %3045
        %v3047 = vmul.f32 %v3046, %v622
        %v3048 = vsub.f32 %v3040, %v3047
        %v3049 = vmul.f32 %v3048, %v3048
        %3050 = vadd.xlane.f32.xlu0 %v3049
        %v3051 = vpop.xlane.xlu0 %3050
        %v3052 = vmul.f32 %v3051, %v622
        %v3053 = vadd.f32 %v3052, 1e-05
        %v3054 = vrsqrt.pop %v3053
        %v3055 = vmul.f32 %v3048, %v3054
        %v3057 = vlaneseq
        %v3058 = vshrl.u32 %v3057, 7
        %v3059 = vsub.s32 0, %v3058
        %v3060 = vrot.slane %v3042, %v3059
        %v3062 = vmul.f32 %v3055, %v3060
        %v3064 = vlaneseq
        %v3065 = vshrl.u32 %v3064, 7
        %v3066 = vsub.s32 0, %v3065
        %v3067 = vrot.slane %v3044, %v3066
        %v3069 = vadd.f32 %v3062, %v3067
        %v3070 = vpack.c.bf16 %v3069, %v3069
        %s3071 = scalar_lea.vmem [#allocation9], 256
        %v3072 = vld [vmem:[%s3071] sm:$0xff]
        %v3073 = vld [vmem:[%s3071 + $0x8] sm:$0xff]
        %v3074 = vld [vmem:[%s3071 + $0x10] sm:$0xff]
        %v3075 = vld [vmem:[%s3071 + $0x18] sm:$0xff]
        %v3076 = vld [vmem:[%s3071 + $0x20] sm:$0xff]
        %v3077 = vld [vmem:[%s3071 + $0x28] sm:$0xff]
        %v3078 = vld [vmem:[%s3071 + $0x30] sm:$0xff]
        %v3079 = vld [vmem:[%s3071 + $0x38] sm:$0xff]
        %v3080 = vld [vmem:[%s3071 + $0x40] sm:$0xff]
        %v3081 = vld [vmem:[%s3071 + $0x48] sm:$0xff]
        %v3082 = vld [vmem:[%s3071 + $0x50] sm:$0xff]
        %v3083 = vld [vmem:[%s3071 + $0x58] sm:$0xff]
        %v3084 = vld [vmem:[%s3071 + $0x60] sm:$0xff]
        %v3085 = vld [vmem:[%s3071 + $0x68] sm:$0xff]
        %v3086 = vld [vmem:[%s3071 + $0x70] sm:$0xff]
        %v3087 = vld [vmem:[%s3071 + $0x78] sm:$0xff]
        %v3088 = vld [vmem:[%s3071 + $0x80] sm:$0xff]
        %v3089 = vld [vmem:[%s3071 + $0x88] sm:$0xff]
        %v3090 = vld [vmem:[%s3071 + $0x90] sm:$0xff]
        %v3091 = vld [vmem:[%s3071 + $0x98] sm:$0xff]
        %v3092 = vld [vmem:[%s3071 + $0xa0] sm:$0xff]
        %v3093 = vld [vmem:[%s3071 + $0xa8] sm:$0xff]
        %v3094 = vld [vmem:[%s3071 + $0xb0] sm:$0xff]
        %v3095 = vld [vmem:[%s3071 + $0xb8] sm:$0xff]
        %v3096 = vld [vmem:[%s3071 + $0xc0] sm:$0xff]
        %v3097 = vld [vmem:[%s3071 + $0xc8] sm:$0xff]
        %v3098 = vld [vmem:[%s3071 + $0xd0] sm:$0xff]
        %v3099 = vld [vmem:[%s3071 + $0xd8] sm:$0xff]
        %v3100 = vld [vmem:[%s3071 + $0xe0] sm:$0xff]
        %v3101 = vld [vmem:[%s3071 + $0xe8] sm:$0xff]
        %v3102 = vld [vmem:[%s3071 + $0xf0] sm:$0xff]
        %v3103 = vld [vmem:[%s3071 + $0xf8] sm:$0xff]
        %v3136 = vunpack.c.l.b16 %v3072
        %v3137 = vunpack.c.h.b16 %v3072
        %v3138 = vunpack.c.l.b16 %v3073
        %v3139 = vunpack.c.h.b16 %v3073
        %v3140 = vunpack.c.l.b16 %v3074
        %v3141 = vunpack.c.h.b16 %v3074
        %v3142 = vunpack.c.l.b16 %v3075
        %v3143 = vunpack.c.h.b16 %v3075
        %v3144 = vunpack.c.l.b16 %v3076
        %v3145 = vunpack.c.h.b16 %v3076
        %v3146 = vunpack.c.l.b16 %v3077
        %v3147 = vunpack.c.h.b16 %v3077
        %v3148 = vunpack.c.l.b16 %v3078
        %v3149 = vunpack.c.h.b16 %v3078
        %v3150 = vunpack.c.l.b16 %v3079
        %v3151 = vunpack.c.h.b16 %v3079
        %v3152 = vunpack.c.l.b16 %v3080
        %v3153 = vunpack.c.h.b16 %v3080
        %v3154 = vunpack.c.l.b16 %v3081
        %v3155 = vunpack.c.h.b16 %v3081
        %v3156 = vunpack.c.l.b16 %v3082
        %v3157 = vunpack.c.h.b16 %v3082
        %v3158 = vunpack.c.l.b16 %v3083
        %v3159 = vunpack.c.h.b16 %v3083
        %v3160 = vunpack.c.l.b16 %v3084
        %v3161 = vunpack.c.h.b16 %v3084
        %v3162 = vunpack.c.l.b16 %v3085
        %v3163 = vunpack.c.h.b16 %v3085
        %v3164 = vunpack.c.l.b16 %v3086
        %v3165 = vunpack.c.h.b16 %v3086
        %v3166 = vunpack.c.l.b16 %v3087
        %v3167 = vunpack.c.h.b16 %v3087
        %v3168 = vunpack.c.l.b16 %v3088
        %v3169 = vunpack.c.h.b16 %v3088
        %v3170 = vunpack.c.l.b16 %v3089
        %v3171 = vunpack.c.h.b16 %v3089
        %v3172 = vunpack.c.l.b16 %v3090
        %v3173 = vunpack.c.h.b16 %v3090
        %v3174 = vunpack.c.l.b16 %v3091
        %v3175 = vunpack.c.h.b16 %v3091
        %v3176 = vunpack.c.l.b16 %v3092
        %v3177 = vunpack.c.h.b16 %v3092
        %v3178 = vunpack.c.l.b16 %v3093
        %v3179 = vunpack.c.h.b16 %v3093
        %v3180 = vunpack.c.l.b16 %v3094
        %v3181 = vunpack.c.h.b16 %v3094
        %v3182 = vunpack.c.l.b16 %v3095
        %v3183 = vunpack.c.h.b16 %v3095
        %v3184 = vunpack.c.l.b16 %v3096
        %v3185 = vunpack.c.h.b16 %v3096
        %v3186 = vunpack.c.l.b16 %v3097
        %v3187 = vunpack.c.h.b16 %v3097
        %v3188 = vunpack.c.l.b16 %v3098
        %v3189 = vunpack.c.h.b16 %v3098
        %v3190 = vunpack.c.l.b16 %v3099
        %v3191 = vunpack.c.h.b16 %v3099
        %v3192 = vunpack.c.l.b16 %v3100
        %v3193 = vunpack.c.h.b16 %v3100
        %v3194 = vunpack.c.l.b16 %v3101
        %v3195 = vunpack.c.h.b16 %v3101
        %v3196 = vunpack.c.l.b16 %v3102
        %v3197 = vunpack.c.h.b16 %v3102
        %v3198 = vunpack.c.l.b16 %v3103
        %v3199 = vunpack.c.h.b16 %v3103
        %v3200 = vpack.c.b16 %v3140, %v3136
        %v3201 = vpack.c.b16 %v3141, %v3137
        %v3202 = vpack.c.b16 %v3142, %v3138
        %v3203 = vpack.c.b16 %v3143, %v3139
        %v3204 = vpack.c.b16 %v3148, %v3144
        %v3205 = vpack.c.b16 %v3149, %v3145
        %v3206 = vpack.c.b16 %v3150, %v3146
        %v3207 = vpack.c.b16 %v3151, %v3147
        %v3208 = vpack.c.b16 %v3156, %v3152
        %v3209 = vpack.c.b16 %v3157, %v3153
        %v3210 = vpack.c.b16 %v3158, %v3154
        %v3211 = vpack.c.b16 %v3159, %v3155
        %v3212 = vpack.c.b16 %v3164, %v3160
        %v3213 = vpack.c.b16 %v3165, %v3161
        %v3214 = vpack.c.b16 %v3166, %v3162
        %v3215 = vpack.c.b16 %v3167, %v3163
        %v3216 = vpack.c.b16 %v3172, %v3168
        %v3217 = vpack.c.b16 %v3173, %v3169
        %v3218 = vpack.c.b16 %v3174, %v3170
        %v3219 = vpack.c.b16 %v3175, %v3171
        %v3220 = vpack.c.b16 %v3180, %v3176
        %v3221 = vpack.c.b16 %v3181, %v3177
        %v3222 = vpack.c.b16 %v3182, %v3178
        %v3223 = vpack.c.b16 %v3183, %v3179
        %v3224 = vpack.c.b16 %v3188, %v3184
        %v3225 = vpack.c.b16 %v3189, %v3185
        %v3226 = vpack.c.b16 %v3190, %v3186
        %v3227 = vpack.c.b16 %v3191, %v3187
        %v3228 = vpack.c.b16 %v3196, %v3192
        %v3229 = vpack.c.b16 %v3197, %v3193
        %v3230 = vpack.c.b16 %v3198, %v3194
        %v3231 = vpack.c.b16 %v3199, %v3195
        %3264 = vmatprep.subr.bf16.mxu0 %v3229
        %3265 = vmatpush1.bf16.msra.mxu0 %v3228
        %3266 = vmatprep.subr.bf16.mxu0 %v3225
        %3267 = vmatpush1.bf16.msra.mxu0 %v3224
        %3268 = vmatprep.subr.bf16.mxu0 %v3221
        %3269 = vmatpush1.bf16.msra.mxu0 %v3220
        %3270 = vmatprep.subr.bf16.mxu0 %v3217
        %3271 = vmatpush1.bf16.msra.mxu0 %v3216
        %3272 = vmatprep.subr.bf16.mxu0 %v3213
        %3273 = vmatpush1.bf16.msra.mxu0 %v3212
        %3274 = vmatprep.subr.bf16.mxu0 %v3209
        %3275 = vmatpush1.bf16.msra.mxu0 %v3208
        %3276 = vmatprep.subr.bf16.mxu0 %v3205
        %3277 = vmatpush1.bf16.msra.mxu0 %v3204
        %3278 = vmatprep.subr.bf16.mxu0 %v3201
        %3279 = vmatpush1.bf16.msra.mxu0 %v3200
        %3280 = vmatprep.subr.bf16.mxu0 0
        %3281 = vmatpush2.bf16.msra.mxu0 0
        %3282 = vmatprep.subr.bf16.mxu0 0
        %3283 = vmatpush2.bf16.msra.mxu0 0
        %3284 = vmatprep.subr.bf16.mxu0 0
        %3285 = vmatpush2.bf16.msra.mxu0 0
        %3286 = vmatprep.subr.bf16.mxu0 0
        %3287 = vmatpush2.bf16.msra.mxu0 0
        %3288 = vmatprep.subr.bf16.mxu0 0
        %3289 = vmatpush2.bf16.msra.mxu0 0
        %3290 = vmatprep.subr.bf16.mxu0 0
        %3291 = vmatpush2.bf16.msra.mxu0 0
        %3292 = vmatprep.subr.bf16.mxu0 0
        %3293 = vmatpush2.bf16.msra.mxu0 0
        %3294 = vmatprep.subr.bf16.mxu0 0
        %3295 = vmatpush2.bf16.msra.mxu0 0
        %3296 = vmatprep.mubr.bf16.mxu0 0
        %3297 = vmatmul.mubr.bf16.gmra.mxu0 %v3070
        %v3298 = vpop.f32.mrf.mxu0
        %v3299 = vadd.f32 0.0, %v3298
        %v3300 = vpop.f32.mrf.mxu0
        %v3301 = vadd.f32 0.0, %v3300
        %v3302 = vpop.f32.mrf.mxu0
        %v3303 = vpop.f32.mrf.mxu0
        %3304 = vdwg.mxu0
        %3305 = vmatprep.subr.bf16.mxu0 %v3231
        %3306 = vmatpush1.bf16.msra.mxu0 %v3230
        %3307 = vmatprep.subr.bf16.mxu0 %v3227
        %3308 = vmatpush1.bf16.msra.mxu0 %v3226
        %3309 = vmatprep.subr.bf16.mxu0 %v3223
        %3310 = vmatpush1.bf16.msra.mxu0 %v3222
        %3311 = vmatprep.subr.bf16.mxu0 %v3219
        %3312 = vmatpush1.bf16.msra.mxu0 %v3218
        %3313 = vmatprep.subr.bf16.mxu0 %v3215
        %3314 = vmatpush1.bf16.msra.mxu0 %v3214
        %3315 = vmatprep.subr.bf16.mxu0 %v3211
        %3316 = vmatpush1.bf16.msra.mxu0 %v3210
        %3317 = vmatprep.subr.bf16.mxu0 %v3207
        %3318 = vmatpush1.bf16.msra.mxu0 %v3206
        %3319 = vmatprep.subr.bf16.mxu0 %v3203
        %3320 = vmatpush1.bf16.msra.mxu0 %v3202
        %3321 = vmatprep.subr.bf16.mxu0 0
        %3322 = vmatpush2.bf16.msra.mxu0 0
        %3323 = vmatprep.subr.bf16.mxu0 0
        %3324 = vmatpush2.bf16.msra.mxu0 0
        %3325 = vmatprep.subr.bf16.mxu0 0
        %3326 = vmatpush2.bf16.msra.mxu0 0
        %3327 = vmatprep.subr.bf16.mxu0 0
        %3328 = vmatpush2.bf16.msra.mxu0 0
        %3329 = vmatprep.subr.bf16.mxu0 0
        %3330 = vmatpush2.bf16.msra.mxu0 0
        %3331 = vmatprep.subr.bf16.mxu0 0
        %3332 = vmatpush2.bf16.msra.mxu0 0
        %3333 = vmatprep.subr.bf16.mxu0 0
        %3334 = vmatpush2.bf16.msra.mxu0 0
        %3335 = vmatprep.subr.bf16.mxu0 0
        %3336 = vmatpush2.bf16.msra.mxu0 0
        %3337 = vmatprep.mubr.bf16.mxu0 0
        %3338 = vmatmul.mubr.bf16.gmra.mxu0 %v3070
        %v3339 = vpop.f32.mrf.mxu0
        %v3340 = vadd.f32 0.0, %v3339
        %v3341 = vpop.f32.mrf.mxu0
        %v3342 = vadd.f32 0.0, %v3341
        %v3343 = vpop.f32.mrf.mxu0
        %v3344 = vpop.f32.mrf.mxu0
        %3345 = vdwg.mxu0
        %v3346 = vpack.c.bf16 %v3299, %v3299
        %v3347 = vpack.c.bf16 %v3301, %v3301
        %v3348 = vpack.c.bf16 %v3340, %v3340
        %v3349 = vpack.c.bf16 %v3342, %v3342
        %s3350 = scalar_lea.vmem %s9, 4
        %v3351 = vld [vmem:[%s3350] sm:$0xf]
        %v3354 = vunpack.c.l.s4 1966171168
        %v3355 = vunpack.c.0.s8 %v3354
        %v3356 = vlaneseq
        %v3357 = vshrl.u32 %v3356, 7
        %v3358 = vsub.s32 %v3355, %v3357
        %v3359 = vrot.slane %v3351, %v3358
        %v3360 = vcombine.high %v3359, %v3359
        %v3362 = vunpack.c.l.s4 1966171168
        %v3363 = vunpack.c.0.s8 %v3362
        %v3364 = vlaneseq
        %v3365 = vshrl.u32 %v3364, 7
        %v3366 = vsub.s32 %v3363, %v3365
        %v3367 = vrot.slane %v3359, %v3366
        %v3369 = vunpack.c.l.s4 1966171168
        %v3370 = vunpack.c.0.s8 %v3369
        %v3371 = vlaneseq
        %v3372 = vshrl.u32 %v3371, 7
        %v3373 = vsub.s32 %v3370, %v3372
        %v3374 = vrot.slane %v3360, %v3373
        %v3375 = vcombine.high %v3367, %v3367
        %v3376 = vcombine.high %v3374, %v3374
        %v3378 = vpack.i.b16 %v3367, %v3367
        %v3380 = vlaneseq
        %v3381 = vshrl.u32 %v3380, 7
        %v3382 = vsub.s32 0, %v3381
        %v3383 = vrot.slane %v3378, %v3382
        %v3385 = vpack.i.b16 %v3374, %v3374
        %v3387 = vlaneseq
        %v3388 = vshrl.u32 %v3387, 7
        %v3389 = vsub.s32 0, %v3388
        %v3390 = vrot.slane %v3385, %v3389
        %v3392 = vpack.i.b16 %v3375, %v3375
        %v3394 = vlaneseq
        %v3395 = vshrl.u32 %v3394, 7
        %v3396 = vsub.s32 0, %v3395
        %v3397 = vrot.slane %v3392, %v3396
        %v3399 = vpack.i.b16 %v3376, %v3376
        %v3401 = vlaneseq
        %v3402 = vshrl.u32 %v3401, 7
        %v3403 = vsub.s32 0, %v3402
        %v3404 = vrot.slane %v3399, %v3403
        %v3405 = vadd.bf16 %v3346, %v3383
        %v3406 = vadd.bf16 %v3347, %v3390
        %v3407 = vadd.bf16 %v3348, %v3397
        %v3408 = vadd.bf16 %v3349, %v3404
        %v3409 = vmax.bf16 %v3405, 0
        %v3410 = vmax.bf16 %v3406, 0
        %v3411 = vmax.bf16 %v3407, 0
        %v3412 = vmax.bf16 %v3408, 0
        %s3413 = scalar_lea.vmem [#allocation11], 256
        %v3414 = vld [vmem:[%s3413] sm:$0xf]
        %v3415 = vld [vmem:[%s3413 + $0x4] sm:$0xf]
        %v3416 = vld [vmem:[%s3413 + $0x8] sm:$0xf]
        %v3417 = vld [vmem:[%s3413 + $0xc] sm:$0xf]
        %v3418 = vld [vmem:[%s3413 + $0x10] sm:$0xf]
        %v3419 = vld [vmem:[%s3413 + $0x14] sm:$0xf]
        %v3420 = vld [vmem:[%s3413 + $0x18] sm:$0xf]
        %v3421 = vld [vmem:[%s3413 + $0x1c] sm:$0xf]
        %v3422 = vld [vmem:[%s3413 + $0x20] sm:$0xf]
        %v3423 = vld [vmem:[%s3413 + $0x24] sm:$0xf]
        %v3424 = vld [vmem:[%s3413 + $0x28] sm:$0xf]
        %v3425 = vld [vmem:[%s3413 + $0x2c] sm:$0xf]
        %v3426 = vld [vmem:[%s3413 + $0x30] sm:$0xf]
        %v3427 = vld [vmem:[%s3413 + $0x34] sm:$0xf]
        %v3428 = vld [vmem:[%s3413 + $0x38] sm:$0xf]
        %v3429 = vld [vmem:[%s3413 + $0x3c] sm:$0xf]
        %v3430 = vld [vmem:[%s3413 + $0x40] sm:$0xf]
        %v3431 = vld [vmem:[%s3413 + $0x44] sm:$0xf]
        %v3432 = vld [vmem:[%s3413 + $0x48] sm:$0xf]
        %v3433 = vld [vmem:[%s3413 + $0x4c] sm:$0xf]
        %v3434 = vld [vmem:[%s3413 + $0x50] sm:$0xf]
        %v3435 = vld [vmem:[%s3413 + $0x54] sm:$0xf]
        %v3436 = vld [vmem:[%s3413 + $0x58] sm:$0xf]
        %v3437 = vld [vmem:[%s3413 + $0x5c] sm:$0xf]
        %v3438 = vld [vmem:[%s3413 + $0x60] sm:$0xf]
        %v3439 = vld [vmem:[%s3413 + $0x64] sm:$0xf]
        %v3440 = vld [vmem:[%s3413 + $0x68] sm:$0xf]
        %v3441 = vld [vmem:[%s3413 + $0x6c] sm:$0xf]
        %v3442 = vld [vmem:[%s3413 + $0x70] sm:$0xf]
        %v3443 = vld [vmem:[%s3413 + $0x74] sm:$0xf]
        %v3444 = vld [vmem:[%s3413 + $0x78] sm:$0xf]
        %v3445 = vld [vmem:[%s3413 + $0x7c] sm:$0xf]
        %v3446 = vld [vmem:[%s3413 + $0x80] sm:$0xf]
        %v3447 = vld [vmem:[%s3413 + $0x84] sm:$0xf]
        %v3448 = vld [vmem:[%s3413 + $0x88] sm:$0xf]
        %v3449 = vld [vmem:[%s3413 + $0x8c] sm:$0xf]
        %v3450 = vld [vmem:[%s3413 + $0x90] sm:$0xf]
        %v3451 = vld [vmem:[%s3413 + $0x94] sm:$0xf]
        %v3452 = vld [vmem:[%s3413 + $0x98] sm:$0xf]
        %v3453 = vld [vmem:[%s3413 + $0x9c] sm:$0xf]
        %v3454 = vld [vmem:[%s3413 + $0xa0] sm:$0xf]
        %v3455 = vld [vmem:[%s3413 + $0xa4] sm:$0xf]
        %v3456 = vld [vmem:[%s3413 + $0xa8] sm:$0xf]
        %v3457 = vld [vmem:[%s3413 + $0xac] sm:$0xf]
        %v3458 = vld [vmem:[%s3413 + $0xb0] sm:$0xf]
        %v3459 = vld [vmem:[%s3413 + $0xb4] sm:$0xf]
        %v3460 = vld [vmem:[%s3413 + $0xb8] sm:$0xf]
        %v3461 = vld [vmem:[%s3413 + $0xbc] sm:$0xf]
        %v3462 = vld [vmem:[%s3413 + $0xc0] sm:$0xf]
        %v3463 = vld [vmem:[%s3413 + $0xc4] sm:$0xf]
        %v3464 = vld [vmem:[%s3413 + $0xc8] sm:$0xf]
        %v3465 = vld [vmem:[%s3413 + $0xcc] sm:$0xf]
        %v3466 = vld [vmem:[%s3413 + $0xd0] sm:$0xf]
        %v3467 = vld [vmem:[%s3413 + $0xd4] sm:$0xf]
        %v3468 = vld [vmem:[%s3413 + $0xd8] sm:$0xf]
        %v3469 = vld [vmem:[%s3413 + $0xdc] sm:$0xf]
        %v3470 = vld [vmem:[%s3413 + $0xe0] sm:$0xf]
        %v3471 = vld [vmem:[%s3413 + $0xe4] sm:$0xf]
        %v3472 = vld [vmem:[%s3413 + $0xe8] sm:$0xf]
        %v3473 = vld [vmem:[%s3413 + $0xec] sm:$0xf]
        %v3474 = vld [vmem:[%s3413 + $0xf0] sm:$0xf]
        %v3475 = vld [vmem:[%s3413 + $0xf4] sm:$0xf]
        %v3476 = vld [vmem:[%s3413 + $0xf8] sm:$0xf]
        %v3477 = vld [vmem:[%s3413 + $0xfc] sm:$0xf]
        %s3478 = scalar_lea.vmem %s11, 1
        %v3479 = vld [vmem:[%s3478] sm:$0x1]
        %v3481 = vlaneseq
        %v3482 = vshrl.u32 %v3481, 7
        %v3483 = vsub.s32 0, %v3482
        %v3484 = vrot.slane %v3479, %v3483
        %v3550 = vunpack.c.l.b16 %v3414
        %v3551 = vunpack.c.l.b16 %v3415
        %v3552 = vunpack.c.l.b16 %v3416
        %v3553 = vunpack.c.l.b16 %v3417
        %v3554 = vunpack.c.l.b16 %v3418
        %v3555 = vunpack.c.l.b16 %v3419
        %v3556 = vunpack.c.l.b16 %v3420
        %v3557 = vunpack.c.l.b16 %v3421
        %v3558 = vunpack.c.l.b16 %v3422
        %v3559 = vunpack.c.l.b16 %v3423
        %v3560 = vunpack.c.l.b16 %v3424
        %v3561 = vunpack.c.l.b16 %v3425
        %v3562 = vunpack.c.l.b16 %v3426
        %v3563 = vunpack.c.l.b16 %v3427
        %v3564 = vunpack.c.l.b16 %v3428
        %v3565 = vunpack.c.l.b16 %v3429
        %v3566 = vunpack.c.l.b16 %v3430
        %v3567 = vunpack.c.l.b16 %v3431
        %v3568 = vunpack.c.l.b16 %v3432
        %v3569 = vunpack.c.l.b16 %v3433
        %v3570 = vunpack.c.l.b16 %v3434
        %v3571 = vunpack.c.l.b16 %v3435
        %v3572 = vunpack.c.l.b16 %v3436
        %v3573 = vunpack.c.l.b16 %v3437
        %v3574 = vunpack.c.l.b16 %v3438
        %v3575 = vunpack.c.l.b16 %v3439
        %v3576 = vunpack.c.l.b16 %v3440
        %v3577 = vunpack.c.l.b16 %v3441
        %v3578 = vunpack.c.l.b16 %v3442
        %v3579 = vunpack.c.l.b16 %v3443
        %v3580 = vunpack.c.l.b16 %v3444
        %v3581 = vunpack.c.l.b16 %v3445
        %v3582 = vunpack.c.l.b16 %v3446
        %v3583 = vunpack.c.l.b16 %v3447
        %v3584 = vunpack.c.l.b16 %v3448
        %v3585 = vunpack.c.l.b16 %v3449
        %v3586 = vunpack.c.l.b16 %v3450
        %v3587 = vunpack.c.l.b16 %v3451
        %v3588 = vunpack.c.l.b16 %v3452
        %v3589 = vunpack.c.l.b16 %v3453
        %v3590 = vunpack.c.l.b16 %v3454
        %v3591 = vunpack.c.l.b16 %v3455
        %v3592 = vunpack.c.l.b16 %v3456
        %v3593 = vunpack.c.l.b16 %v3457
        %v3594 = vunpack.c.l.b16 %v3458
        %v3595 = vunpack.c.l.b16 %v3459
        %v3596 = vunpack.c.l.b16 %v3460
        %v3597 = vunpack.c.l.b16 %v3461
        %v3598 = vunpack.c.l.b16 %v3462
        %v3599 = vunpack.c.l.b16 %v3463
        %v3600 = vunpack.c.l.b16 %v3464
        %v3601 = vunpack.c.l.b16 %v3465
        %v3602 = vunpack.c.l.b16 %v3466
        %v3603 = vunpack.c.l.b16 %v3467
        %v3604 = vunpack.c.l.b16 %v3468
        %v3605 = vunpack.c.l.b16 %v3469
        %v3606 = vunpack.c.l.b16 %v3470
        %v3607 = vunpack.c.l.b16 %v3471
        %v3608 = vunpack.c.l.b16 %v3472
        %v3609 = vunpack.c.l.b16 %v3473
        %v3610 = vunpack.c.l.b16 %v3474
        %v3611 = vunpack.c.l.b16 %v3475
        %v3612 = vunpack.c.l.b16 %v3476
        %v3613 = vunpack.c.l.b16 %v3477
        %v3614 = vpack.c.b16 %v3551, %v3550
        %v3615 = vpack.c.b16 %v3553, %v3552
        %v3616 = vpack.c.b16 %v3555, %v3554
        %v3617 = vpack.c.b16 %v3557, %v3556
        %v3618 = vpack.c.b16 %v3559, %v3558
        %v3619 = vpack.c.b16 %v3561, %v3560
        %v3620 = vpack.c.b16 %v3563, %v3562
        %v3621 = vpack.c.b16 %v3565, %v3564
        %v3622 = vpack.c.b16 %v3567, %v3566
        %v3623 = vpack.c.b16 %v3569, %v3568
        %v3624 = vpack.c.b16 %v3571, %v3570
        %v3625 = vpack.c.b16 %v3573, %v3572
        %v3626 = vpack.c.b16 %v3575, %v3574
        %v3627 = vpack.c.b16 %v3577, %v3576
        %v3628 = vpack.c.b16 %v3579, %v3578
        %v3629 = vpack.c.b16 %v3581, %v3580
        %v3630 = vpack.c.b16 %v3583, %v3582
        %v3631 = vpack.c.b16 %v3585, %v3584
        %v3632 = vpack.c.b16 %v3587, %v3586
        %v3633 = vpack.c.b16 %v3589, %v3588
        %v3634 = vpack.c.b16 %v3591, %v3590
        %v3635 = vpack.c.b16 %v3593, %v3592
        %v3636 = vpack.c.b16 %v3595, %v3594
        %v3637 = vpack.c.b16 %v3597, %v3596
        %v3638 = vpack.c.b16 %v3599, %v3598
        %v3639 = vpack.c.b16 %v3601, %v3600
        %v3640 = vpack.c.b16 %v3603, %v3602
        %v3641 = vpack.c.b16 %v3605, %v3604
        %v3642 = vpack.c.b16 %v3607, %v3606
        %v3643 = vpack.c.b16 %v3609, %v3608
        %v3644 = vpack.c.b16 %v3611, %v3610
        %v3645 = vpack.c.b16 %v3613, %v3612
        %3678 = vmatprep.subr.bf16.mxu0 0
        %3679 = vmatpush1.bf16.msra.mxu0 %v3621
        %3680 = vmatprep.subr.bf16.mxu0 0
        %3681 = vmatpush1.bf16.msra.mxu0 %v3620
        %3682 = vmatprep.subr.bf16.mxu0 0
        %3683 = vmatpush1.bf16.msra.mxu0 %v3619
        %3684 = vmatprep.subr.bf16.mxu0 0
        %3685 = vmatpush1.bf16.msra.mxu0 %v3618
        %3686 = vmatprep.subr.bf16.mxu0 0
        %3687 = vmatpush1.bf16.msra.mxu0 %v3617
        %3688 = vmatprep.subr.bf16.mxu0 0
        %3689 = vmatpush1.bf16.msra.mxu0 %v3616
        %3690 = vmatprep.subr.bf16.mxu0 0
        %3691 = vmatpush1.bf16.msra.mxu0 %v3615
        %3692 = vmatprep.subr.bf16.mxu0 0
        %3693 = vmatpush1.bf16.msra.mxu0 %v3614
        %3694 = vmatprep.subr.bf16.mxu0 0
        %3695 = vmatpush2.bf16.msra.mxu0 %v3629
        %3696 = vmatprep.subr.bf16.mxu0 0
        %3697 = vmatpush2.bf16.msra.mxu0 %v3628
        %3698 = vmatprep.subr.bf16.mxu0 0
        %3699 = vmatpush2.bf16.msra.mxu0 %v3627
        %3700 = vmatprep.subr.bf16.mxu0 0
        %3701 = vmatpush2.bf16.msra.mxu0 %v3626
        %3702 = vmatprep.subr.bf16.mxu0 0
        %3703 = vmatpush2.bf16.msra.mxu0 %v3625
        %3704 = vmatprep.subr.bf16.mxu0 0
        %3705 = vmatpush2.bf16.msra.mxu0 %v3624
        %3706 = vmatprep.subr.bf16.mxu0 0
        %3707 = vmatpush2.bf16.msra.mxu0 %v3623
        %3708 = vmatprep.subr.bf16.mxu0 0
        %3709 = vmatpush2.bf16.msra.mxu0 %v3622
        %3710 = vmatprep.mubr.bf16.mxu0 %v3410
        %3711 = vmatmul.mubr.bf16.gmra.mxu0 %v3409
        %v3712 = vpop.f32.mrf.mxu0
        %v3713 = vadd.f32 %v3484, %v3712
        %v3714 = vpop.f32.mrf.mxu0
        %v3715 = vpop.f32.mrf.mxu0
        %v3716 = vpop.f32.mrf.mxu0
        %3717 = vdwg.mxu0
        %3718 = vmatprep.subr.bf16.mxu0 0
        %3719 = vmatpush1.bf16.msra.mxu0 %v3637
        %3720 = vmatprep.subr.bf16.mxu0 0
        %3721 = vmatpush1.bf16.msra.mxu0 %v3636
        %3722 = vmatprep.subr.bf16.mxu0 0
        %3723 = vmatpush1.bf16.msra.mxu0 %v3635
        %3724 = vmatprep.subr.bf16.mxu0 0
        %3725 = vmatpush1.bf16.msra.mxu0 %v3634
        %3726 = vmatprep.subr.bf16.mxu0 0
        %3727 = vmatpush1.bf16.msra.mxu0 %v3633
        %3728 = vmatprep.subr.bf16.mxu0 0
        %3729 = vmatpush1.bf16.msra.mxu0 %v3632
        %3730 = vmatprep.subr.bf16.mxu0 0
        %3731 = vmatpush1.bf16.msra.mxu0 %v3631
        %3732 = vmatprep.subr.bf16.mxu0 0
        %3733 = vmatpush1.bf16.msra.mxu0 %v3630
        %3734 = vmatprep.subr.bf16.mxu0 0
        %3735 = vmatpush2.bf16.msra.mxu0 %v3645
        %3736 = vmatprep.subr.bf16.mxu0 0
        %3737 = vmatpush2.bf16.msra.mxu0 %v3644
        %3738 = vmatprep.subr.bf16.mxu0 0
        %3739 = vmatpush2.bf16.msra.mxu0 %v3643
        %3740 = vmatprep.subr.bf16.mxu0 0
        %3741 = vmatpush2.bf16.msra.mxu0 %v3642
        %3742 = vmatprep.subr.bf16.mxu0 0
        %3743 = vmatpush2.bf16.msra.mxu0 %v3641
        %3744 = vmatprep.subr.bf16.mxu0 0
        %3745 = vmatpush2.bf16.msra.mxu0 %v3640
        %3746 = vmatprep.subr.bf16.mxu0 0
        %3747 = vmatpush2.bf16.msra.mxu0 %v3639
        %3748 = vmatprep.subr.bf16.mxu0 0
        %3749 = vmatpush2.bf16.msra.mxu0 %v3638
        %3750 = vmatprep.mubr.bf16.mxu0 %v3412
        %3751 = vmatmul.mubr.bf16.gmra.mxu0 %v3411
        %v3752 = vpop.f32.mrf.mxu0
        %v3753 = vadd.f32 %v3713, %v3752
        %v3754 = vpop.f32.mrf.mxu0
        %v3755 = vpop.f32.mrf.mxu0
        %v3756 = vpop.f32.mrf.mxu0
        %3757 = vdwg.mxu0
        %v3758 = vadd.f32 %v3040, %v3753
        %v3759 = vld [vmem:[%s12] sm:$0x1]
        %v3760 = vld [vmem:[%s13] sm:$0x1]
        %3761 = vadd.xlane.f32.xlu0 %v3758
        %v3762 = vpop.xlane.xlu0 %3761
        %v3763 = vmul.f32 %v3762, %v622
        %v3764 = vsub.f32 %v3758, %v3763
        %v3765 = vmul.f32 %v3764, %v3764
        %3766 = vadd.xlane.f32.xlu0 %v3765
        %v3767 = vpop.xlane.xlu0 %3766
        %v3768 = vmul.f32 %v3767, %v622
        %v3769 = vadd.f32 %v3768, 1e-05
        %v3770 = vrsqrt.pop %v3769
        %v3771 = vmul.f32 %v3764, %v3770
        %v3773 = vlaneseq
        %v3774 = vshrl.u32 %v3773, 7
        %v3775 = vsub.s32 0, %v3774
        %v3776 = vrot.slane %v3759, %v3775
        %v3778 = vmul.f32 %v3771, %v3776
        %v3780 = vlaneseq
        %v3781 = vshrl.u32 %v3780, 7
        %v3782 = vsub.s32 0, %v3781
        %v3783 = vrot.slane %v3760, %v3782
        %v3785 = vadd.f32 %v3778, %v3783
        %v3786 = vpack.c.bf16 %v3785, %v3785
        %v3787 = vld [vmem:[#allocation12] sm:$0xf]
        %v3788 = vld [vmem:[#allocation12 + $0x4] sm:$0xf]
        %v3789 = vld [vmem:[#allocation12 + $0x8] sm:$0xf]
        %v3790 = vld [vmem:[#allocation12 + $0xc] sm:$0xf]
        %v3791 = vld [vmem:[#allocation12 + $0x10] sm:$0xf]
        %v3792 = vld [vmem:[#allocation12 + $0x14] sm:$0xf]
        %v3793 = vld [vmem:[#allocation12 + $0x18] sm:$0xf]
        %v3794 = vld [vmem:[#allocation12 + $0x1c] sm:$0xf]
        %v3795 = vld [vmem:[#allocation12 + $0x20] sm:$0xf]
        %v3796 = vld [vmem:[#allocation12 + $0x24] sm:$0xf]
        %v3797 = vld [vmem:[#allocation12 + $0x28] sm:$0xf]
        %v3798 = vld [vmem:[#allocation12 + $0x2c] sm:$0xf]
        %v3799 = vld [vmem:[#allocation12 + $0x30] sm:$0xf]
        %v3800 = vld [vmem:[#allocation12 + $0x34] sm:$0xf]
        %v3801 = vld [vmem:[#allocation12 + $0x38] sm:$0xf]
        %v3802 = vld [vmem:[#allocation12 + $0x3c] sm:$0xf]
        %v3803 = vld [vmem:[%s15] sm:$0x1]
        %v3805 = vlaneseq
        %v3806 = vshrl.u32 %v3805, 7
        %v3807 = vsub.s32 0, %v3806
        %v3808 = vrot.slane %v3803, %v3807
        %v3826 = vunpack.c.l.b16 %v3787
        %v3827 = vunpack.c.l.b16 %v3788
        %v3828 = vunpack.c.l.b16 %v3789
        %v3829 = vunpack.c.l.b16 %v3790
        %v3830 = vunpack.c.l.b16 %v3791
        %v3831 = vunpack.c.l.b16 %v3792
        %v3832 = vunpack.c.l.b16 %v3793
        %v3833 = vunpack.c.l.b16 %v3794
        %v3834 = vunpack.c.l.b16 %v3795
        %v3835 = vunpack.c.l.b16 %v3796
        %v3836 = vunpack.c.l.b16 %v3797
        %v3837 = vunpack.c.l.b16 %v3798
        %v3838 = vunpack.c.l.b16 %v3799
        %v3839 = vunpack.c.l.b16 %v3800
        %v3840 = vunpack.c.l.b16 %v3801
        %v3841 = vunpack.c.l.b16 %v3802
        %v3842 = vpack.c.b16 %v3827, %v3826
        %v3843 = vpack.c.b16 %v3829, %v3828
        %v3844 = vpack.c.b16 %v3831, %v3830
        %v3845 = vpack.c.b16 %v3833, %v3832
        %v3846 = vpack.c.b16 %v3835, %v3834
        %v3847 = vpack.c.b16 %v3837, %v3836
        %v3848 = vpack.c.b16 %v3839, %v3838
        %v3849 = vpack.c.b16 %v3841, %v3840
        %3858 = vmatprep.subr.bf16.mxu0 0
        %3859 = vmatpush1.bf16.msra.mxu0 %v3849
        %3860 = vmatprep.subr.bf16.mxu0 0
        %3861 = vmatpush1.bf16.msra.mxu0 %v3848
        %3862 = vmatprep.subr.bf16.mxu0 0
        %3863 = vmatpush1.bf16.msra.mxu0 %v3847
        %3864 = vmatprep.subr.bf16.mxu0 0
        %3865 = vmatpush1.bf16.msra.mxu0 %v3846
        %3866 = vmatprep.subr.bf16.mxu0 0
        %3867 = vmatpush1.bf16.msra.mxu0 %v3845
        %3868 = vmatprep.subr.bf16.mxu0 0
        %3869 = vmatpush1.bf16.msra.mxu0 %v3844
        %3870 = vmatprep.subr.bf16.mxu0 0
        %3871 = vmatpush1.bf16.msra.mxu0 %v3843
        %3872 = vmatprep.subr.bf16.mxu0 0
        %3873 = vmatpush1.bf16.msra.mxu0 %v3842
        %3874 = vmatprep.subr.bf16.mxu0 0
        %3875 = vmatpush2.bf16.msra.mxu0 0
        %3876 = vmatprep.subr.bf16.mxu0 0
        %3877 = vmatpush2.bf16.msra.mxu0 0
        %3878 = vmatprep.subr.bf16.mxu0 0
        %3879 = vmatpush2.bf16.msra.mxu0 0
        %3880 = vmatprep.subr.bf16.mxu0 0
        %3881 = vmatpush2.bf16.msra.mxu0 0
        %3882 = vmatprep.subr.bf16.mxu0 0
        %3883 = vmatpush2.bf16.msra.mxu0 0
        %3884 = vmatprep.subr.bf16.mxu0 0
        %3885 = vmatpush2.bf16.msra.mxu0 0
        %3886 = vmatprep.subr.bf16.mxu0 0
        %3887 = vmatpush2.bf16.msra.mxu0 0
        %3888 = vmatprep.subr.bf16.mxu0 0
        %3889 = vmatpush2.bf16.msra.mxu0 0
        %3890 = vmatprep.mubr.bf16.mxu0 0
        %3891 = vmatmul.mubr.bf16.gmra.mxu0 %v3786
        %v3892 = vpop.f32.mrf.mxu0
        %v3893 = vadd.f32 %v3808, %v3892
        %v3894 = vpop.f32.mrf.mxu0
        %v3895 = vpop.f32.mrf.mxu0
        %v3896 = vpop.f32.mrf.mxu0
        %3897 = vdwg.mxu0
        %3898 = vst [vmem:[%s609] sm:$0xff] %v3893
        %s3899 = sand.u32 %s385, 1
        %s3900 = scalar_lea.sflag [#allocation5], %s3899
        %s3901 = sand.u32 %s385, 1
        %s3902 = smul.addr %s3901, 8
        %s3903 = scalar_lea.vmem [#allocation14], %s3902
        // Predicated region
        $region109: #{tpu_custom_call.1} parent=83 // pred_check
          %p3904 = pneg %p395
        $region110: #{tpu_custom_call.1} parent=83 // pred_check_branch
          %3906 = sbr.rel (%p3904) target = $region112
        $region111: #{tpu_custom_call.1} parent=83 // pred_region
          %s3908 = ssub.s32 128, 128
          %3909 = vsyncadd %s3900, %s3908
          %s3910 = smul.addr %s36, 128
          %s3911 = scalar_lea.hbm %s16, %s3910
          %s3913 = sshll.u32 %s3903, 4
          %s3914 = int_to_ptr.vmem [resolvable:$true] %s3913
          %3916 = dma.vmem_to_hbm [thread:$0]  %s3914, 128, %s3911, %s3900
        $region112: #{tpu_custom_call.1} parent=83 // pred_fallthru
          _
      $region84: #{tpu_custom_call.1} parent=5 // pred_fallthru
        _
      %p3917 = scmp.le.s32.totalorder 2, %s31
      // Predicated region
      $region113: #{tpu_custom_call.1} parent=5 // pred_check
        %p3918 = pneg %p3917
      $region114: #{tpu_custom_call.1} parent=5 // pred_check_branch
        %3920 = sbr.rel (%p3918) target = $region116
      $region115: #{tpu_custom_call.1} parent=5 // pred_region
        %s3921 = ssub.s32 %s31, 2
        // Predicated region
        $region117: #{tpu_custom_call.1} parent=115 // pred_check
          %p3922 = pneg %p401
        $region118: #{tpu_custom_call.1} parent=115 // pred_check_branch
          %3924 = sbr.rel (%p3922) target = $region120
        $region119: #{tpu_custom_call.1} parent=115 // pred_region
          %s3925 = sand.u32 %s386, 1
          %s3926 = scalar_lea.sflag [#allocation5], %s3925
          %s3927 = sand.u32 %s386, 1
          %s3928 = smul.addr %s3927, 8
          %s3929 = scalar_lea.vmem [#allocation14], %s3928
          %3930 = dma.done %s3926, 128
        $region120: #{tpu_custom_call.1} parent=115 // pred_fallthru
          _
      $region116: #{tpu_custom_call.1} parent=5 // pred_fallthru
        _
    $region6: #{tpu_custom_call.1} parent=1 // loop_footer
      %s35 = sadd.s32 1, %s31
    $region7: #{tpu_custom_call.1} parent=1 // loop_footer_branch
      %30 = sbr.rel target = $region3
    $region8: #{tpu_custom_call.1} parent=1 // loop_exit
      _
    %3931 = vsyncpa [#allocation4], 1
    %s3932 = scalar_lea.sflag [#allocation4], 1
    %3933 = vsyncpa %s3932, 1
    %3934 = vsyncpa [#allocation7], 1
    %3935 = vsyncpa [#allocation10], 1
    %3936 = vsyncpa [#allocation13], 1
    %3937 = vsyncpa [#allocation5], 1
    %s3938 = scalar_lea.sflag [#allocation5], 1
    %3939 = vsyncpa %s3938, 1

</llo_original>
